<compile_context>
chip_gen: v6e
topology: v6e:2x2x1
jax: 0.10.0
libtpu: 0.0.40
codegen_flags: <defaults>
</compile_context>

<pallas_src>
import jax
import jax.numpy as jnp
from jax.experimental import pallas as pl
from jax.experimental.pallas import tpu as pltpu

NEG_SLOPE = 0.01  # PyTorch nn.LeakyReLU default negative_slope


def _res_kernel(x_ref, w1_ref, b1_ref, w2_ref, b2_ref, o_ref, pad_ref):
    """One image per grid step; everything lane-dense in a (rows, W*C) layout.

    x_ref  : (1, H, W*C)    f32   input image (lane-dense)
    w*_ref : (3, W*C, W*C)  bf16  banded conv weights, one slab per kernel row
    b*_ref : (1, W*C)       f32   bias tiled across W
    o_ref  : (1, H, W*C)    f32   output
    pad_ref: (H+2, W*C)     f32   VMEM scratch, height-padded working image
    """
    H = x_ref.shape[1]
    WC = x_ref.shape[2]

    # Zero the two height-padding rows once; rows 1..H are rewritten per conv.
    zero_row = jnp.zeros((1, WC), jnp.float32)
    pad_ref[pl.ds(0, 1), :] = zero_row
    pad_ref[pl.ds(H + 1, 1), :] = zero_row

    def conv3x3(w_ref, b_ref):
        # 3x3 conv == 3 MXU matmuls, one per kernel row (kh).  Each banded
        # (W*Cin, W*Cout) slab implements all three kw taps plus the
        # width-direction zero padding, so K = W*C = 512 and N = W*C = 512.
        acc = None
        for kh in range(3):
            rows = pad_ref[pl.ds(kh, H), :].astype(jnp.bfloat16)   # (H, W*C)
            part = jnp.dot(rows, w_ref[kh],
                           preferred_element_type=jnp.float32)     # f32 accum
            acc = part if acc is None else acc + part
        return acc + b_ref[...]                                    # bias once

    x = x_ref[0]                                      # (H, W*C) f32

    pad_ref[pl.ds(1, H), :] = x
    y = conv3x3(w1_ref, b1_ref)
    y = jnp.where(y > 0, y, NEG_SLOPE * y)            # LeakyReLU (f32)

    pad_ref[pl.ds(1, H), :] = y
    z = conv3x3(w2_ref, b2_ref)
    o_ref[0] = (z + x).astype(o_ref.dtype)            # residual add (f32)


def _band_weights(w_hwio, width):
    """HWIO (3, 3, Cin, Cout) -> (3, width*Cin, width*Cout) banded matrices.

    band[kh][w_in*Cin + ci, w_out*Cout + co] = w[kh, kw, ci, co] with
    kw = w_in - w_out + 1 (zero outside 0..2), so multiplying an (H, width*Cin)
    row slab by band[kh] applies all kw taps AND the width-direction 'SAME'
    zero padding in a single K = width*Cin contraction.
    """
    _, _, cin, cout = w_hwio.shape
    w = w_hwio.astype(jnp.float32)
    bands = []
    for kh in range(3):
        blk = jnp.zeros((width, cin, width, cout), jnp.float32)
        for kw in range(3):
            sel = jnp.eye(width, k=1 - kw, dtype=jnp.float32)   # sel[w_in, w_out]
            blk = blk + sel[:, None, :, None] * w[kh, kw][None, :, None, :]
        bands.append(blk.reshape(width * cin, width * cout))
    return jnp.stack(bands, axis=0)


@jax.jit
def res_forward(x_nchw, w1, b1, w2, b2):
    """x_nchw: (N, C, H, W) f32; w*: (3, 3, Cin, Cout) HWIO; b*: (Cout,)."""
    x = jnp.transpose(x_nchw, (0, 2, 3, 1))           # -> NHWC
    N, H, Wd, C = x.shape
    Cout = w1.shape[-1]
    assert Cout == C, "residual add requires in_channels == out_channels"
    WC = Wd * C

    x2 = x.reshape(N, H, WC).astype(jnp.float32)      # lane-dense: last dim 512
    w1b = _band_weights(w1, Wd).astype(jnp.bfloat16)  # bf16 MXU operands
    w2b = _band_weights(w2, Wd).astype(jnp.bfloat16)
    b1t = jnp.tile(b1.astype(jnp.float32), Wd).reshape(1, WC)
    b2t = jnp.tile(b2.astype(jnp.float32), Wd).reshape(1, WC)

    out2 = pl.pallas_call(
        _res_kernel,
        out_shape=jax.ShapeDtypeStruct((N, H, WC), jnp.float32),
        grid_spec=pltpu.PrefetchScalarGridSpec(
            num_scalar_prefetch=0,
            grid=(N,),                                # one image per grid step
            in_specs=[
                pl.BlockSpec((1, H, WC), lambda n: (n, 0, 0)),
                pl.BlockSpec((3, WC, WC), lambda n: (0, 0, 0)),
                pl.BlockSpec((1, WC), lambda n: (0, 0)),
                pl.BlockSpec((3, WC, WC), lambda n: (0, 0, 0)),
                pl.BlockSpec((1, WC), lambda n: (0, 0)),
            ],
            out_specs=pl.BlockSpec((1, H, WC), lambda n: (n, 0, 0)),
            scratch_shapes=[pltpu.VMEM((H + 2, WC), jnp.float32)],
        ),
        compiler_params=pltpu.CompilerParams(
            dimension_semantics=("parallel",)),       # v7x: one image per TC
    )(x2, w1b, b1t, w2b, b2t)

    out = out2.reshape(N, H, Wd, Cout)
    return jnp.transpose(out, (0, 3, 1, 2))           # -> NCHW


@jax.jit
def _ref_forward(x_nchw, w1, b1, w2, b2):
    """Pure-JAX f32 reference (for correctness check)."""
    x = jnp.transpose(x_nchw, (0, 2, 3, 1))
    dn = jax.lax.conv_dimension_numbers(x.shape, w1.shape,
                                        ('NHWC', 'HWIO', 'NHWC'))
    y = jax.lax.conv_general_dilated(x, w1, (1, 1), 'SAME',
                                     dimension_numbers=dn) + b1
    y = jnp.where(y > 0, y, NEG_SLOPE * y)
    z = jax.lax.conv_general_dilated(y, w2, (1, 1), 'SAME',
                                     dimension_numbers=dn) + b2
    out = z + x
    return jnp.transpose(out, (0, 3, 1, 2))


if __name__ == "__main__":
    # res_ defaults: in_channels = out_channels = 32, 3x3 kernel, stride 1, pad 1
    N, C, H, W = 2, 32, 16, 16

    key = jax.random.PRNGKey(0)
    kx, kw1, kb1, kw2, kb2 = jax.random.split(key, 5)

    x = jax.random.normal(kx, (N, C, H, W), dtype=jnp.float32)          # NCHW
    # deterministic synthetic parameters (HWIO layout)
    w1 = jax.random.normal(kw1, (3, 3, C, C), dtype=jnp.float32) * 0.1
    b1 = jax.random.normal(kb1, (C,), dtype=jnp.float32) * 0.1
    w2 = jax.random.normal(kw2, (3, 3, C, C), dtype=jnp.float32) * 0.1
    b2 = jax.random.normal(kb2, (C,), dtype=jnp.float32) * 0.1

    out = jax.block_until_ready(res_forward(x, w1, b1, w2, b2))
    ref = jax.block_until_ready(_ref_forward(x, w1, b1, w2, b2))

    assert out.shape == (N, C, H, W)
    # bf16 matmul operands (f32 accumulation) -> tolerance loosened vs pure f32
    max_err = float(jnp.max(jnp.abs(out - ref)))
    scale = float(jnp.max(jnp.abs(ref)))
    assert max_err <= 2e-2 * scale + 1e-3, (
        f"mismatch vs reference: max_err={max_err}, scale={scale}")

    print("KERNEL_OK")
</pallas_src>

<mosaic_0001>
module attributes {stable_mosaic.version = 11 : i64} {
  func.func @_res_kernel(%arg0: i32, %arg1: memref<1x16x512xf32, #tpu.memory_space<vmem>>, %arg2: memref<3x512x512xbf16, #tpu.memory_space<vmem>>, %arg3: memref<1x512xf32, #tpu.memory_space<vmem>>, %arg4: memref<3x512x512xbf16, #tpu.memory_space<vmem>>, %arg5: memref<1x512xf32, #tpu.memory_space<vmem>>, %arg6: memref<1x16x512xf32, #tpu.memory_space<vmem>>, %arg7: memref<18x512xf32, #tpu.memory_space<vmem>>) attributes {dimension_semantics = [#tpu.dimension_semantics<parallel>], iteration_bounds = array<i64: 2>, scalar_prefetch = 0 : i64, scratch_operands = 1 : i64, tpu.core_type = #tpu.core_type<tc>, window_params = [{transform_indices = @transform_0, window_bounds = array<i64: 1, 16, 512>}, {pipeline_mode = #tpu.pipeline_mode<synchronous>, transform_indices = @transform_1, window_bounds = array<i64: 3, 512, 512>}, {pipeline_mode = #tpu.pipeline_mode<synchronous>, transform_indices = @transform_2, window_bounds = array<i64: 1, 512>}, {pipeline_mode = #tpu.pipeline_mode<synchronous>, transform_indices = @transform_3, window_bounds = array<i64: 3, 512, 512>}, {pipeline_mode = #tpu.pipeline_mode<synchronous>, transform_indices = @transform_4, window_bounds = array<i64: 1, 512>}, {transform_indices = @transform_5, window_bounds = array<i64: 1, 16, 512>}]} {
    %cst = arith.constant 0.000000e+00 : f32
    %0 = vector.broadcast %cst : f32 to vector<1x512xf32>
    %c0 = arith.constant 0 : index
    %c0_0 = arith.constant 0 : index
    %1 = vector.load %arg7[%c0, %c0_0] : memref<18x512xf32, #tpu.memory_space<vmem>>, vector<1x512xf32>
    tpu.vector_store %arg7[%c0, %c0_0], %0 {strides = array<i32>} : memref<18x512xf32, #tpu.memory_space<vmem>>, vector<1x512xf32>,
    %c17 = arith.constant 17 : index
    %c0_1 = arith.constant 0 : index
    %2 = vector.load %arg7[%c17, %c0_1] : memref<18x512xf32, #tpu.memory_space<vmem>>, vector<1x512xf32>
    tpu.vector_store %arg7[%c17, %c0_1], %0 {strides = array<i32>} : memref<18x512xf32, #tpu.memory_space<vmem>>, vector<1x512xf32>,
    %c0_2 = arith.constant 0 : index
    %c0_3 = arith.constant 0 : index
    %c0_4 = arith.constant 0 : index
    %3 = vector.load %arg1[%c0_2, %c0_3, %c0_4] : memref<1x16x512xf32, #tpu.memory_space<vmem>>, vector<1x16x512xf32>
    %4 = vector.shape_cast %3 : vector<1x16x512xf32> to vector<16x512xf32>
    %c1 = arith.constant 1 : index
    %c0_5 = arith.constant 0 : index
    %5 = vector.load %arg7[%c1, %c0_5] : memref<18x512xf32, #tpu.memory_space<vmem>>, vector<16x512xf32>
    tpu.vector_store %arg7[%c1, %c0_5], %4 {strides = array<i32>} : memref<18x512xf32, #tpu.memory_space<vmem>>, vector<16x512xf32>,
    %c0_6 = arith.constant 0 : index
    %c0_7 = arith.constant 0 : index
    %6 = vector.load %arg7[%c0_6, %c0_7] : memref<18x512xf32, #tpu.memory_space<vmem>>, vector<16x512xf32>
    %7 = arith.truncf %6 : vector<16x512xf32> to vector<16x512xbf16>
    %c0_8 = arith.constant 0 : index
    %c0_9 = arith.constant 0 : index
    %c0_10 = arith.constant 0 : index
    %8 = vector.load %arg2[%c0_8, %c0_9, %c0_10] : memref<3x512x512xbf16, #tpu.memory_space<vmem>>, vector<1x512x512xbf16>
    %9 = vector.shape_cast %8 : vector<1x512x512xbf16> to vector<512x512xbf16>
    %cst_11 = arith.constant dense<0.000000e+00> : vector<16x512xf32>
    %10 = tpu.matmul %7, %9, %cst_11 {dimension_numbers = #tpu.dot_dimension_numbers<[1], [0], [0], [1], [0, 0, 1, 1], [], []>} : vector<16x512xbf16>, vector<512x512xbf16>, vector<16x512xf32> -> vector<16x512xf32>
    %c1_12 = arith.constant 1 : index
    %c0_13 = arith.constant 0 : index
    %11 = vector.load %arg7[%c1_12, %c0_13] : memref<18x512xf32, #tpu.memory_space<vmem>>, vector<16x512xf32>
    %12 = arith.truncf %11 : vector<16x512xf32> to vector<16x512xbf16>
    %c1_14 = arith.constant 1 : index
    %c0_15 = arith.constant 0 : index
    %c0_16 = arith.constant 0 : index
    %13 = vector.load %arg2[%c1_14, %c0_15, %c0_16] : memref<3x512x512xbf16, #tpu.memory_space<vmem>>, vector<1x512x512xbf16>
    %14 = vector.shape_cast %13 : vector<1x512x512xbf16> to vector<512x512xbf16>
    %cst_17 = arith.constant dense<0.000000e+00> : vector<16x512xf32>
    %15 = tpu.matmul %12, %14, %cst_17 {dimension_numbers = #tpu.dot_dimension_numbers<[1], [0], [0], [1], [0, 0, 1, 1], [], []>} : vector<16x512xbf16>, vector<512x512xbf16>, vector<16x512xf32> -> vector<16x512xf32>
    %16 = arith.addf %10, %15 : vector<16x512xf32>
    %c2 = arith.constant 2 : index
    %c0_18 = arith.constant 0 : index
    %17 = vector.load %arg7[%c2, %c0_18] : memref<18x512xf32, #tpu.memory_space<vmem>>, vector<16x512xf32>
    %18 = arith.truncf %17 : vector<16x512xf32> to vector<16x512xbf16>
    %c2_19 = arith.constant 2 : index
    %c0_20 = arith.constant 0 : index
    %c0_21 = arith.constant 0 : index
    %19 = vector.load %arg2[%c2_19, %c0_20, %c0_21] : memref<3x512x512xbf16, #tpu.memory_space<vmem>>, vector<1x512x512xbf16>
    %20 = vector.shape_cast %19 : vector<1x512x512xbf16> to vector<512x512xbf16>
    %cst_22 = arith.constant dense<0.000000e+00> : vector<16x512xf32>
    %21 = tpu.matmul %18, %20, %cst_22 {dimension_numbers = #tpu.dot_dimension_numbers<[1], [0], [0], [1], [0, 0, 1, 1], [], []>} : vector<16x512xbf16>, vector<512x512xbf16>, vector<16x512xf32> -> vector<16x512xf32>
    %22 = arith.addf %16, %21 : vector<16x512xf32>
    %c0_23 = arith.constant 0 : index
    %c0_24 = arith.constant 0 : index
    %23 = vector.load %arg3[%c0_23, %c0_24] : memref<1x512xf32, #tpu.memory_space<vmem>>, vector<1x512xf32>
    %24 = vector.broadcast %23 : vector<1x512xf32> to vector<16x512xf32>
    %25 = arith.addf %22, %24 : vector<16x512xf32>
    %cst_25 = arith.constant 0.000000e+00 : f32
    %26 = vector.broadcast %cst_25 : f32 to vector<16x512xf32>
    %27 = arith.cmpf ogt, %25, %26 : vector<16x512xf32>
    %cst_26 = arith.constant 0.00999999977 : f32
    %28 = vector.broadcast %cst_26 : f32 to vector<16x512xf32>
    %29 = arith.mulf %28, %25 : vector<16x512xf32>
    %30 = arith.select %27, %25, %29 : vector<16x512xi1>, vector<16x512xf32>
    %c1_27 = arith.constant 1 : index
    %c0_28 = arith.constant 0 : index
    %31 = vector.load %arg7[%c1_27, %c0_28] : memref<18x512xf32, #tpu.memory_space<vmem>>, vector<16x512xf32>
    tpu.vector_store %arg7[%c1_27, %c0_28], %30 {strides = array<i32>} : memref<18x512xf32, #tpu.memory_space<vmem>>, vector<16x512xf32>,
    %c0_29 = arith.constant 0 : index
    %c0_30 = arith.constant 0 : index
    %32 = vector.load %arg7[%c0_29, %c0_30] : memref<18x512xf32, #tpu.memory_space<vmem>>, vector<16x512xf32>
    %33 = arith.truncf %32 : vector<16x512xf32> to vector<16x512xbf16>
    %c0_31 = arith.constant 0 : index
    %c0_32 = arith.constant 0 : index
    %c0_33 = arith.constant 0 : index
    %34 = vector.load %arg4[%c0_31, %c0_32, %c0_33] : memref<3x512x512xbf16, #tpu.memory_space<vmem>>, vector<1x512x512xbf16>
    %35 = vector.shape_cast %34 : vector<1x512x512xbf16> to vector<512x512xbf16>
    %cst_34 = arith.constant dense<0.000000e+00> : vector<16x512xf32>
    %36 = tpu.matmul %33, %35, %cst_34 {dimension_numbers = #tpu.dot_dimension_numbers<[1], [0], [0], [1], [0, 0, 1, 1], [], []>} : vector<16x512xbf16>, vector<512x512xbf16>, vector<16x512xf32> -> vector<16x512xf32>
    %c1_35 = arith.constant 1 : index
    %c0_36 = arith.constant 0 : index
    %37 = vector.load %arg7[%c1_35, %c0_36] : memref<18x512xf32, #tpu.memory_space<vmem>>, vector<16x512xf32>
    %38 = arith.truncf %37 : vector<16x512xf32> to vector<16x512xbf16>
    %c1_37 = arith.constant 1 : index
    %c0_38 = arith.constant 0 : index
    %c0_39 = arith.constant 0 : index
    %39 = vector.load %arg4[%c1_37, %c0_38, %c0_39] : memref<3x512x512xbf16, #tpu.memory_space<vmem>>, vector<1x512x512xbf16>
    %40 = vector.shape_cast %39 : vector<1x512x512xbf16> to vector<512x512xbf16>
    %cst_40 = arith.constant dense<0.000000e+00> : vector<16x512xf32>
    %41 = tpu.matmul %38, %40, %cst_40 {dimension_numbers = #tpu.dot_dimension_numbers<[1], [0], [0], [1], [0, 0, 1, 1], [], []>} : vector<16x512xbf16>, vector<512x512xbf16>, vector<16x512xf32> -> vector<16x512xf32>
    %42 = arith.addf %36, %41 : vector<16x512xf32>
    %c2_41 = arith.constant 2 : index
    %c0_42 = arith.constant 0 : index
    %43 = vector.load %arg7[%c2_41, %c0_42] : memref<18x512xf32, #tpu.memory_space<vmem>>, vector<16x512xf32>
    %44 = arith.truncf %43 : vector<16x512xf32> to vector<16x512xbf16>
    %c2_43 = arith.constant 2 : index
    %c0_44 = arith.constant 0 : index
    %c0_45 = arith.constant 0 : index
    %45 = vector.load %arg4[%c2_43, %c0_44, %c0_45] : memref<3x512x512xbf16, #tpu.memory_space<vmem>>, vector<1x512x512xbf16>
    %46 = vector.shape_cast %45 : vector<1x512x512xbf16> to vector<512x512xbf16>
    %cst_46 = arith.constant dense<0.000000e+00> : vector<16x512xf32>
    %47 = tpu.matmul %44, %46, %cst_46 {dimension_numbers = #tpu.dot_dimension_numbers<[1], [0], [0], [1], [0, 0, 1, 1], [], []>} : vector<16x512xbf16>, vector<512x512xbf16>, vector<16x512xf32> -> vector<16x512xf32>
    %48 = arith.addf %42, %47 : vector<16x512xf32>
    %c0_47 = arith.constant 0 : index
    %c0_48 = arith.constant 0 : index
    %49 = vector.load %arg5[%c0_47, %c0_48] : memref<1x512xf32, #tpu.memory_space<vmem>>, vector<1x512xf32>
    %50 = vector.broadcast %49 : vector<1x512xf32> to vector<16x512xf32>
    %51 = arith.addf %48, %50 : vector<16x512xf32>
    %52 = arith.addf %51, %4 : vector<16x512xf32>
    %c0_49 = arith.constant 0 : index
    %c0_50 = arith.constant 0 : index
    %c0_51 = arith.constant 0 : index
    %53 = vector.load %arg6[%c0_49, %c0_50, %c0_51] : memref<1x16x512xf32, #tpu.memory_space<vmem>>, vector<1x16x512xf32>
    %54 = vector.shape_cast %53 : vector<1x16x512xf32> to vector<16x512xf32>
    %55 = vector.shape_cast %52 : vector<16x512xf32> to vector<1x16x512xf32>
    tpu.vector_store %arg6[%c0_49, %c0_50, %c0_51], %55 {strides = array<i32>} : memref<1x16x512xf32, #tpu.memory_space<vmem>>, vector<1x16x512xf32>,
    return
  }
  func.func @transform_0(%arg0: i32) -> (i32, i32, i32) {
    %c0_i32 = arith.constant 0 : i32
    %c0_i32_0 = arith.constant 0 : i32
    %c0_i32_1 = arith.constant 0 : i32
    return %arg0, %c0_i32, %c0_i32_0 : i32, i32, i32
  }
  func.func @transform_1(%arg0: i32) -> (i32, i32, i32) {
    %c0_i32 = arith.constant 0 : i32
    %c0_i32_0 = arith.constant 0 : i32
    %c0_i32_1 = arith.constant 0 : i32
    %c0_i32_2 = arith.constant 0 : i32
    return %c0_i32, %c0_i32_0, %c0_i32_1 : i32, i32, i32
  }
  func.func @transform_2(%arg0: i32) -> (i32, i32) {
    %c0_i32 = arith.constant 0 : i32
    %c0_i32_0 = arith.constant 0 : i32
    %c0_i32_1 = arith.constant 0 : i32
    return %c0_i32, %c0_i32_0 : i32, i32
  }
  func.func @transform_3(%arg0: i32) -> (i32, i32, i32) {
    %c0_i32 = arith.constant 0 : i32
    %c0_i32_0 = arith.constant 0 : i32
    %c0_i32_1 = arith.constant 0 : i32
    %c0_i32_2 = arith.constant 0 : i32
    return %c0_i32, %c0_i32_0, %c0_i32_1 : i32, i32, i32
  }
  func.func @transform_4(%arg0: i32) -> (i32, i32) {
    %c0_i32 = arith.constant 0 : i32
    %c0_i32_0 = arith.constant 0 : i32
    %c0_i32_1 = arith.constant 0 : i32
    return %c0_i32, %c0_i32_0 : i32, i32
  }
  func.func @transform_5(%arg0: i32) -> (i32, i32, i32) {
    %c0_i32 = arith.constant 0 : i32
    %c0_i32_0 = arith.constant 0 : i32
    %c0_i32_1 = arith.constant 0 : i32
    return %arg0, %c0_i32, %c0_i32_0 : i32, i32, i32
  }
}

</mosaic_0001>

<llo_original>
// kernel: tile.13
$region0: #{tile.13}
  #allocation0 [shape = 's32[1]{0}', space=sflag, size = 0x4, scoped, tag = 'scoped memory for tile.13']
  %s0 = inlined_call_operand.vmem [shape: f32[32], index: 0, kind: input, shape index: {}]
  %s1 = inlined_call_operand.vmem [shape: f32[16,32], index: 1, kind: output, shape index: {}]
  // Predicated region
  $region2: #{tile.13} parent=0 // pred_check
    _
  $region3: #{tile.13} parent=0 // pred_check_branch
    %3 = sbr.rel (0) target = $region5
  $region4: #{tile.13} parent=0 // pred_region
    _
  $region5: #{tile.13} parent=0 // pred_fallthru
    _
  %v4 = vld [vmem:[%s0] ss:$0 sm:$0xff]
  %5 = vst [vmem:[%s1] sm:$0xff] %v4
  %s6 = scalar_lea.vmem %s1, 8
  %7 = vst [vmem:[%s6] sm:$0xff] %v4

// kernel: tile.14
$region0: #{tile.14}
  %s0 = inlined_call_operand.vmem [shape: f32[16,32], index: 0, kind: input, shape index: {}]
  %s1 = inlined_call_operand.vmem [shape: f32[1,512], index: 1, kind: output, shape index: {}]
  $region1: #{tile.14} parent=0
    #allocation0 [shape = 'u8[16384]{0}', space=vmem, size = 0x4000, scoped, tag = 'scoped mem for output reshape']
    %v2 = vld [vmem:[%s0] ss:$4 sm:$0xf]
    %vm3 = vcmask 261120
    %4 = vst.msk [vmem:[#allocation0] ss:$8 sm:$0xf] %vm3, %v2
    %s5 = scalar_lea.vmem %s0, 3
    %v6 = vld [vmem:[%s5] ss:$4 sm:$0xf]
    %7 = vrot.lane.b32.xlu0 %v6, 96
    %v8 = vpop.permute.xlu0 %7
    %vm9 = vcmask 1048320
    %10 = vst.msk [vmem:[#allocation0] ss:$8 sm:$0xf] %vm9, %v8
    %s11 = scalar_lea.vmem %s0, 2
    %v12 = vld [vmem:[%s11] ss:$4 sm:$0xf]
    %13 = vrot.lane.b32.xlu0 %v12, 64
    %v14 = vpop.permute.xlu0 %13
    %vm15 = vcmask 785920
    %16 = vst.msk [vmem:[#allocation0] ss:$8 sm:$0xf] %vm15, %v14
    %s17 = scalar_lea.vmem %s0, 1
    %v18 = vld [vmem:[%s17] ss:$4 sm:$0xf]
    %19 = vrot.lane.b32.xlu0 %v18, 32
    %v20 = vpop.permute.xlu0 %19
    %vm21 = vcmask 523520
    %22 = vst.msk [vmem:[#allocation0] ss:$8 sm:$0xf] %vm21, %v20
    %s24 = sshll.u32 1, 1
    %s25 = ssub.s32 %s24, 1
    %v27 = vld [vmem:[#allocation0] sm:%s25]
    %s28 = sshll.u32 1, 1
    %s29 = ssub.s32 %s28, 1
    %30 = vst [vmem:[%s1] sm:%s29] %v27
    %s31 = scalar_lea.vmem [#allocation0], 8
    %v32 = vld [vmem:[%s31] sm:%s25]
    %s33 = sshll.u32 1, 1
    %s34 = ssub.s32 %s33, 1
    %s35 = scalar_lea.vmem %s1, 1
    %36 = vst [vmem:[%s35] sm:%s34] %v32
    %s37 = scalar_lea.vmem [#allocation0], 16
    %v38 = vld [vmem:[%s37] sm:%s25]
    %s39 = sshll.u32 1, 1
    %s40 = ssub.s32 %s39, 1
    %s41 = smul.addr 1, 2
    %s42 = scalar_lea.vmem %s1, %s41
    %43 = vst [vmem:[%s42] sm:%s40] %v38
    %s44 = scalar_lea.vmem [#allocation0], 24
    %v45 = vld [vmem:[%s44] sm:%s25]
    %s46 = sshll.u32 1, 1
    %s47 = ssub.s32 %s46, 1
    %s48 = smul.addr 1, 3
    %s49 = scalar_lea.vmem %s1, %s48
    %50 = vst [vmem:[%s49] sm:%s47] %v45

// kernel: res_forward.1
$region0: #{res_forward.1}
  #allocation0 [shape = 'u32[]', space=smem, size = 0x4, offset = 0x4, fixed_abs, tag = 'smem constant byte address 0x4 - core index']
  #allocation1 [shape = 'u32[144,128]{1,0:T(1,128)}', space=vmem, size = 0x12000, scoped, tag = 'internal scratch']
  #allocation2 [shape = 'f32[18,512]{1,0:T(8,128)}', space=vmem, size = 0xc000, scoped, tag = 'scratch operand']
  %s0 = inlined_call_operand.vmem [shape: f32[2,16,512], index: 0, kind: input, shape index: {}]
  %s1 = inlined_call_operand.vmem [shape: bf16[3,512,512], index: 1, kind: input, shape index: {}]
  %s2 = inlined_call_operand.vmem [shape: f32[1,512], index: 2, kind: input, shape index: {}]
  %s3 = inlined_call_operand.vmem [shape: bf16[3,512,512], index: 3, kind: input, shape index: {}]
  %s4 = inlined_call_operand.vmem [shape: f32[1,512], index: 4, kind: input, shape index: {}]
  %s5 = inlined_call_operand.vmem [shape: f32[2,16,512], index: 5, kind: output, shape index: {}]
  %s6 = sld [smem:[#allocation0]]
  $region53: #{res_forward.1} parent=0
    _
  %s8 = ssub.s32 1, %s6
  %s9 = scalar_select 0, %s8, %s6
  loop: start=0, step=1, limit=4
  $region2: #{res_forward.1} parent=0 // loop_pre_header
    _
  $region3: #{res_forward.1} parent=0 // loop_header
    %s11 = sphi 0, %s15
    %p12 = scmp.ge.s32.totalorder %s11, 4
    %s21 = sphi 0, %s23
    %s24 = sphi 0, %s21
    %s25 = sphi 0, %s24
    %s41 = sphi 0, %s25
    %s45 = sphi 0, %s45
    %s47 = sphi 0, %s45
    %s48 = sphi 0, %s47
    %s62 = sphi 0, %s48
    %s66 = sphi 0, %s66
    %s68 = sphi 0, %s66
    %s69 = sphi 0, %s68
    %s83 = sphi 0, %s69
    %s87 = sphi 0, %s87
    %s89 = sphi 0, %s87
    %s90 = sphi 0, %s89
    %s104 = sphi 0, %s90
    %s108 = sphi 0, %s108
    %s110 = sphi 0, %s108
    %s111 = sphi 0, %s110
    %s125 = sphi 0, %s111
    %s131 = sphi 0, %s133
    %s134 = sphi 0, %s131
    %s135 = sphi 0, %s134
    %s151 = sphi 0, %s135
  $region4: #{res_forward.1} parent=0 // loop_header_branch
    %14 = sbr.rel (%p12) target = $region8
  $region5: #{res_forward.1} parent=0 // loop_body
    %s16 = ssub.s32 %s11, 1
    %s17 = ssub.s32 %s11, 2
    %s18 = sadd.s32 %s11, 1
    %s19 = ssub.s32 %s11, %s18
    %p20 = scmp.eq.s32.totalorder %s19, 0
    %s22 = sadd.s32 %s21, 1
    %s23 = scalar_select %p20, %s21, %s22
    %p26 = pneg %p20
    %p27 = scmp.eq.s32.totalorder %s11, 1
    %p28 = por %p26, %p27
    %p29 = scmp.ne.s32.totalorder %s21, %s24
    %p30 = scmp.eq.s32.totalorder %s11, 0
    %p31 = por %p29, %p30
    %p32 = scmp.ne.s32.totalorder %s21, %s24
    %p33 = scmp.eq.s32.totalorder %s16, 1
    %p34 = por %p32, %p33
    %p35 = scmp.ne.s32.totalorder %s24, %s25
    %p36 = scmp.eq.s32.totalorder %s16, 0
    %p37 = por %p35, %p36
    %p38 = scmp.ne.s32.totalorder %s24, %s25
    %p39 = scmp.eq.s32.totalorder %s17, 1
    %p40 = por %p38, %p39
    %p42 = scmp.ne.s32.totalorder %s25, %s41
    %p43 = scmp.eq.s32.totalorder %s17, 0
    %p44 = por %p42, %p43
    %s46 = sadd.s32 %s45, 1
    %p49 = scmp.eq.s32.totalorder %s11, 1
    %p50 = scmp.ne.s32.totalorder %s45, %s47
    %p51 = scmp.eq.s32.totalorder %s11, 0
    %p52 = por %p50, %p51
    %p53 = scmp.ne.s32.totalorder %s45, %s47
    %p54 = scmp.eq.s32.totalorder %s16, 1
    %p55 = por %p53, %p54
    %p56 = scmp.ne.s32.totalorder %s47, %s48
    %p57 = scmp.eq.s32.totalorder %s16, 0
    %p58 = por %p56, %p57
    %p59 = scmp.ne.s32.totalorder %s47, %s48
    %p60 = scmp.eq.s32.totalorder %s17, 1
    %p61 = por %p59, %p60
    %p63 = scmp.ne.s32.totalorder %s48, %s62
    %p64 = scmp.eq.s32.totalorder %s17, 0
    %p65 = por %p63, %p64
    %s67 = sadd.s32 %s66, 1
    %p70 = scmp.eq.s32.totalorder %s11, 1
    %p71 = scmp.ne.s32.totalorder %s66, %s68
    %p72 = scmp.eq.s32.totalorder %s11, 0
    %p73 = por %p71, %p72
    %p74 = scmp.ne.s32.totalorder %s66, %s68
    %p75 = scmp.eq.s32.totalorder %s16, 1
    %p76 = por %p74, %p75
    %p77 = scmp.ne.s32.totalorder %s68, %s69
    %p78 = scmp.eq.s32.totalorder %s16, 0
    %p79 = por %p77, %p78
    %p80 = scmp.ne.s32.totalorder %s68, %s69
    %p81 = scmp.eq.s32.totalorder %s17, 1
    %p82 = por %p80, %p81
    %p84 = scmp.ne.s32.totalorder %s69, %s83
    %p85 = scmp.eq.s32.totalorder %s17, 0
    %p86 = por %p84, %p85
    %s88 = sadd.s32 %s87, 1
    %p91 = scmp.eq.s32.totalorder %s11, 1
    %p92 = scmp.ne.s32.totalorder %s87, %s89
    %p93 = scmp.eq.s32.totalorder %s11, 0
    %p94 = por %p92, %p93
    %p95 = scmp.ne.s32.totalorder %s87, %s89
    %p96 = scmp.eq.s32.totalorder %s16, 1
    %p97 = por %p95, %p96
    %p98 = scmp.ne.s32.totalorder %s89, %s90
    %p99 = scmp.eq.s32.totalorder %s16, 0
    %p100 = por %p98, %p99
    %p101 = scmp.ne.s32.totalorder %s89, %s90
    %p102 = scmp.eq.s32.totalorder %s17, 1
    %p103 = por %p101, %p102
    %p105 = scmp.ne.s32.totalorder %s90, %s104
    %p106 = scmp.eq.s32.totalorder %s17, 0
    %p107 = por %p105, %p106
    %s109 = sadd.s32 %s108, 1
    %p112 = scmp.eq.s32.totalorder %s11, 1
    %p113 = scmp.ne.s32.totalorder %s108, %s110
    %p114 = scmp.eq.s32.totalorder %s11, 0
    %p115 = por %p113, %p114
    %p116 = scmp.ne.s32.totalorder %s108, %s110
    %p117 = scmp.eq.s32.totalorder %s16, 1
    %p118 = por %p116, %p117
    %p119 = scmp.ne.s32.totalorder %s110, %s111
    %p120 = scmp.eq.s32.totalorder %s16, 0
    %p121 = por %p119, %p120
    %p122 = scmp.ne.s32.totalorder %s110, %s111
    %p123 = scmp.eq.s32.totalorder %s17, 1
    %p124 = por %p122, %p123
    %p126 = scmp.ne.s32.totalorder %s111, %s125
    %p127 = scmp.eq.s32.totalorder %s17, 0
    %p128 = por %p126, %p127
    %s129 = ssub.s32 %s11, %s18
    %p130 = scmp.eq.s32.totalorder %s129, 0
    %s132 = sadd.s32 %s131, 1
    %s133 = scalar_select %p130, %s131, %s132
    %p136 = pneg %p130
    %p137 = scmp.eq.s32.totalorder %s11, 1
    %p138 = por %p136, %p137
    %p139 = scmp.ne.s32.totalorder %s131, %s134
    %p140 = scmp.eq.s32.totalorder %s11, 0
    %p141 = por %p139, %p140
    %p142 = scmp.ne.s32.totalorder %s131, %s134
    %p143 = scmp.eq.s32.totalorder %s16, 1
    %p144 = por %p142, %p143
    %p145 = scmp.ne.s32.totalorder %s134, %s135
    %p146 = scmp.eq.s32.totalorder %s16, 0
    %p147 = por %p145, %p146
    %p148 = scmp.ne.s32.totalorder %s134, %s135
    %p149 = scmp.eq.s32.totalorder %s17, 1
    %p150 = por %p148, %p149
    %p152 = scmp.ne.s32.totalorder %s135, %s151
    %p153 = scmp.eq.s32.totalorder %s17, 0
    %p154 = por %p152, %p153
    %p155 = scmp.le.s32.totalorder 1, %s11
    %p156 = scmp.lt.s32.totalorder %s11, 3
    %p157 = pnand %p155, %p156
    %p158 = pneg %p157
    // Predicated region
    $region9: #{res_forward.1} parent=5 // pred_check
      _
    $region10: #{res_forward.1} parent=5 // pred_check_branch
      %160 = sbr.rel (%p157) target = $region12
    $region11: #{res_forward.1} parent=5 // pred_region
      %s161 = ssub.s32 %s11, 1
      // Predicated region
      $region13: #{res_forward.1} parent=11 // pred_check
        %p162 = pneg %p58
      $region14: #{res_forward.1} parent=11 // pred_check_branch
        %164 = sbr.rel (%p162) target = $region16
      $region15: #{res_forward.1} parent=11 // pred_region
        _
      $region16: #{res_forward.1} parent=11 // pred_fallthru
        _
      // Predicated region
      $region17: #{res_forward.1} parent=11 // pred_check
        %p165 = pneg %p79
      $region18: #{res_forward.1} parent=11 // pred_check_branch
        %167 = sbr.rel (%p165) target = $region20
      $region19: #{res_forward.1} parent=11 // pred_region
        _
      $region20: #{res_forward.1} parent=11 // pred_fallthru
        _
      // Predicated region
      $region21: #{res_forward.1} parent=11 // pred_check
        %p168 = pneg %p100
      $region22: #{res_forward.1} parent=11 // pred_check_branch
        %170 = sbr.rel (%p168) target = $region24
      $region23: #{res_forward.1} parent=11 // pred_region
        _
      $region24: #{res_forward.1} parent=11 // pred_fallthru
        _
      // Predicated region
      $region25: #{res_forward.1} parent=11 // pred_check
        %p171 = pneg %p121
      $region26: #{res_forward.1} parent=11 // pred_check_branch
        %173 = sbr.rel (%p171) target = $region28
      $region27: #{res_forward.1} parent=11 // pred_region
        _
      $region28: #{res_forward.1} parent=11 // pred_fallthru
        _
    $region12: #{res_forward.1} parent=5 // pred_fallthru
      _
    %p174 = scmp.lt.s32.totalorder %s11, 2
    // Predicated region
    $region29: #{res_forward.1} parent=5 // pred_check
      %p175 = pneg %p174
    $region30: #{res_forward.1} parent=5 // pred_check_branch
      %177 = sbr.rel (%p175) target = $region32
    $region31: #{res_forward.1} parent=5 // pred_region
      // Predicated region
      $region33: #{res_forward.1} parent=31 // pred_check
        %p178 = pneg %p31
      $region34: #{res_forward.1} parent=31 // pred_check_branch
        %180 = sbr.rel (%p178) target = $region36
      $region35: #{res_forward.1} parent=31 // pred_region
        %p181 = scmp.lt.s32.totalorder %s11, 1
        %s182 = scalar_select %p181, %s11, 1
        %s183 = smul.addr %s182, 8
        %s184 = smul.addr %s183, 8
        %s185 = scalar_lea.vmem %s0, %s184
      $region36: #{res_forward.1} parent=31 // pred_fallthru
        _
    $region32: #{res_forward.1} parent=5 // pred_fallthru
      _
    %p186 = scmp.le.s32.totalorder 1, %s11
    %p187 = scmp.lt.s32.totalorder %s11, 3
    %p188 = pnand %p186, %p187
    %p189 = pneg %p188
    // Predicated region
    $region37: #{res_forward.1} parent=5 // pred_check
      _
    $region38: #{res_forward.1} parent=5 // pred_check_branch
      %191 = sbr.rel (%p188) target = $region40
    $region39: #{res_forward.1} parent=5 // pred_region
      %s192 = ssub.s32 %s11, 1
      %p193 = scmp.lt.s32.totalorder %s16, 1
      %s194 = scalar_select %p193, %s16, 1
      %s195 = smul.addr %s194, 8
      %s196 = smul.addr %s195, 8
      %s197 = scalar_lea.vmem %s0, %s196
      %p198 = pneg %p37
      %p199 = pneg %p34
      %p200 = pneg %p58
      %p201 = pneg %p55
      %p202 = pneg %p79
      %p203 = pneg %p76
      %p204 = pneg %p100
      %p205 = pneg %p97
      %p206 = pneg %p121
      %p207 = pneg %p118
      %p208 = pneg %p147
      %p209 = pneg %p144
      %p210 = scmp.lt.s32.totalorder %s16, 1
      %s211 = scalar_select %p210, %s16, 1
      %s212 = smul.addr %s211, 8
      %s213 = smul.addr %s212, 8
      %s214 = scalar_lea.vmem %s5, %s213
      %p215 = scmp.lt.s32.totalorder %s16, 1
      %s216 = scalar_select %p215, %s16, 1
      %s217 = smul.addr %s216, 8
      %s218 = smul.addr %s217, 8
      %s219 = scalar_lea.vmem %s0, %s218
      %p220 = scmp.lt.s32.totalorder %s16, 1
      %s221 = scalar_select %p220, %s16, 1
      %s222 = smul.addr %s221, 8
      %s223 = smul.addr %s222, 8
      %s224 = scalar_lea.vmem %s5, %s223
      %v225 = vlaneseq
      %vm226 = vcmp.ge.s32.totalorder %v225, 0
      %vm227 = vcmp.lt.s32.totalorder %v225, 512
      %vm228 = vmand %vm226, %vm227
      %229 = vst.msk [vmem:[#allocation2] ss:$8 sm:$0xf] %vm228, 0.0
      %230 = vst.msk [vmem:[#allocation2] ss:$8 sm:$0x0] %vm228, 0.0
      %s231 = scalar_lea.vmem [#allocation2], 65
      %232 = vst.msk [vmem:[%s231] ss:$8 sm:$0xf] %vm228, 0.0
      %233 = vst.msk [vmem:[%s231] ss:$8 sm:$0x0] %vm228, 0.0
      %v234 = vld [vmem:[%s219] sm:$0xff]
      %v235 = vld [vmem:[%s219 + $0x8] sm:$0xff]
      %v236 = vld [vmem:[%s219 + $0x10] sm:$0xff]
      %v237 = vld [vmem:[%s219 + $0x18] sm:$0xff]
      %v238 = vld [vmem:[%s219 + $0x20] sm:$0xff]
      %v239 = vld [vmem:[%s219 + $0x28] sm:$0xff]
      %v240 = vld [vmem:[%s219 + $0x30] sm:$0xff]
      %v241 = vld [vmem:[%s219 + $0x38] sm:$0xff]
      %vm250 = vcmask 1040384
      %v251 = vrot.slane %v234, 7
      %v252 = vrot.slane %v235, 7
      %v253 = vrot.slane %v236, 7
      %v254 = vrot.slane %v237, 7
      %v255 = vrot.slane %v238, 7
      %v256 = vsel %vm250, %v251, %v255
      %v257 = vrot.slane %v239, 7
      %v258 = vsel %vm250, %v252, %v257
      %v259 = vrot.slane %v240, 7
      %v260 = vsel %vm250, %v253, %v259
      %v261 = vrot.slane %v241, 7
      %v262 = vsel %vm250, %v254, %v261
      %275 = vst [vmem:[#allocation2] sm:$0xfe] %v251
      %276 = vst [vmem:[#allocation2 + $0x8] sm:$0xfe] %v252
      %277 = vst [vmem:[#allocation2 + $0x10] sm:$0xfe] %v253
      %278 = vst [vmem:[#allocation2 + $0x18] sm:$0xfe] %v254
      %279 = vst [vmem:[#allocation2 + $0x20] sm:$0xff] %v256
      %280 = vst [vmem:[#allocation2 + $0x28] sm:$0xff] %v258
      %281 = vst [vmem:[#allocation2 + $0x30] sm:$0xff] %v260
      %282 = vst [vmem:[#allocation2 + $0x38] sm:$0xff] %v262
      %283 = vst [vmem:[#allocation2 + $0x40] sm:$0x1] %v255
      %284 = vst [vmem:[#allocation2 + $0x48] sm:$0x1] %v257
      %285 = vst [vmem:[#allocation2 + $0x50] sm:$0x1] %v259
      %286 = vst [vmem:[#allocation2 + $0x58] sm:$0x1] %v261
      %v287 = vld [vmem:[#allocation2] sm:$0xff]
      %v288 = vld [vmem:[#allocation2 + $0x8] sm:$0xff]
      %v289 = vld [vmem:[#allocation2 + $0x10] sm:$0xff]
      %v290 = vld [vmem:[#allocation2 + $0x18] sm:$0xff]
      %v291 = vld [vmem:[#allocation2 + $0x20] sm:$0xff]
      %v292 = vld [vmem:[#allocation2 + $0x28] sm:$0xff]
      %v293 = vld [vmem:[#allocation2 + $0x30] sm:$0xff]
      %v294 = vld [vmem:[#allocation2 + $0x38] sm:$0xff]
      %v295 = vpack.c.bf16 %v291, %v287
      %v296 = vpack.c.bf16 %v292, %v288
      %v297 = vpack.c.bf16 %v293, %v289
      %v298 = vpack.c.bf16 %v294, %v290
      %v299 = vld [vmem:[%s1] sm:$0xff]
      %v300 = vld [vmem:[%s1 + $0x8] sm:$0xff]
      %v301 = vld [vmem:[%s1 + $0x10] sm:$0xff]
      %v302 = vld [vmem:[%s1 + $0x18] sm:$0xff]
      %v303 = vld [vmem:[%s1 + $0x20] sm:$0xff]
      %v304 = vld [vmem:[%s1 + $0x28] sm:$0xff]
      %v305 = vld [vmem:[%s1 + $0x30] sm:$0xff]
      %v306 = vld [vmem:[%s1 + $0x38] sm:$0xff]
      %v307 = vld [vmem:[%s1 + $0x40] sm:$0xff]
      %v308 = vld [vmem:[%s1 + $0x48] sm:$0xff]
      %v309 = vld [vmem:[%s1 + $0x50] sm:$0xff]
      %v310 = vld [vmem:[%s1 + $0x58] sm:$0xff]
      %v311 = vld [vmem:[%s1 + $0x60] sm:$0xff]
      %v312 = vld [vmem:[%s1 + $0x68] sm:$0xff]
      %v313 = vld [vmem:[%s1 + $0x70] sm:$0xff]
      %v314 = vld [vmem:[%s1 + $0x78] sm:$0xff]
      %v315 = vld [vmem:[%s1 + $0x80] sm:$0xff]
      %v316 = vld [vmem:[%s1 + $0x88] sm:$0xff]
      %v317 = vld [vmem:[%s1 + $0x90] sm:$0xff]
      %v318 = vld [vmem:[%s1 + $0x98] sm:$0xff]
      %v319 = vld [vmem:[%s1 + $0xa0] sm:$0xff]
      %v320 = vld [vmem:[%s1 + $0xa8] sm:$0xff]
      %v321 = vld [vmem:[%s1 + $0xb0] sm:$0xff]
      %v322 = vld [vmem:[%s1 + $0xb8] sm:$0xff]
      %v323 = vld [vmem:[%s1 + $0xc0] sm:$0xff]
      %v324 = vld [vmem:[%s1 + $0xc8] sm:$0xff]
      %v325 = vld [vmem:[%s1 + $0xd0] sm:$0xff]
      %v326 = vld [vmem:[%s1 + $0xd8] sm:$0xff]
      %v327 = vld [vmem:[%s1 + $0xe0] sm:$0xff]
      %v328 = vld [vmem:[%s1 + $0xe8] sm:$0xff]
      %v329 = vld [vmem:[%s1 + $0xf0] sm:$0xff]
      %v330 = vld [vmem:[%s1 + $0xf8] sm:$0xff]
      %v331 = vld [vmem:[%s1 + $0x100] sm:$0xff]
      %v332 = vld [vmem:[%s1 + $0x108] sm:$0xff]
      %v333 = vld [vmem:[%s1 + $0x110] sm:$0xff]
      %v334 = vld [vmem:[%s1 + $0x118] sm:$0xff]
      %v335 = vld [vmem:[%s1 + $0x120] sm:$0xff]
      %v336 = vld [vmem:[%s1 + $0x128] sm:$0xff]
      %v337 = vld [vmem:[%s1 + $0x130] sm:$0xff]
      %v338 = vld [vmem:[%s1 + $0x138] sm:$0xff]
      %v339 = vld [vmem:[%s1 + $0x140] sm:$0xff]
      %v340 = vld [vmem:[%s1 + $0x148] sm:$0xff]
      %v341 = vld [vmem:[%s1 + $0x150] sm:$0xff]
      %v342 = vld [vmem:[%s1 + $0x158] sm:$0xff]
      %v343 = vld [vmem:[%s1 + $0x160] sm:$0xff]
      %v344 = vld [vmem:[%s1 + $0x168] sm:$0xff]
      %v345 = vld [vmem:[%s1 + $0x170] sm:$0xff]
      %v346 = vld [vmem:[%s1 + $0x178] sm:$0xff]
      %v347 = vld [vmem:[%s1 + $0x180] sm:$0xff]
      %v348 = vld [vmem:[%s1 + $0x188] sm:$0xff]
      %v349 = vld [vmem:[%s1 + $0x190] sm:$0xff]
      %v350 = vld [vmem:[%s1 + $0x198] sm:$0xff]
      %v351 = vld [vmem:[%s1 + $0x1a0] sm:$0xff]
      %v352 = vld [vmem:[%s1 + $0x1a8] sm:$0xff]
      %v353 = vld [vmem:[%s1 + $0x1b0] sm:$0xff]
      %v354 = vld [vmem:[%s1 + $0x1b8] sm:$0xff]
      %v355 = vld [vmem:[%s1 + $0x1c0] sm:$0xff]
      %v356 = vld [vmem:[%s1 + $0x1c8] sm:$0xff]
      %v357 = vld [vmem:[%s1 + $0x1d0] sm:$0xff]
      %v358 = vld [vmem:[%s1 + $0x1d8] sm:$0xff]
      %v359 = vld [vmem:[%s1 + $0x1e0] sm:$0xff]
      %v360 = vld [vmem:[%s1 + $0x1e8] sm:$0xff]
      %v361 = vld [vmem:[%s1 + $0x1f0] sm:$0xff]
      %v362 = vld [vmem:[%s1 + $0x1f8] sm:$0xff]
      %v363 = vld [vmem:[%s1 + $0x200] sm:$0xff]
      %v364 = vld [vmem:[%s1 + $0x208] sm:$0xff]
      %v365 = vld [vmem:[%s1 + $0x210] sm:$0xff]
      %v366 = vld [vmem:[%s1 + $0x218] sm:$0xff]
      %v367 = vld [vmem:[%s1 + $0x220] sm:$0xff]
      %v368 = vld [vmem:[%s1 + $0x228] sm:$0xff]
      %v369 = vld [vmem:[%s1 + $0x230] sm:$0xff]
      %v370 = vld [vmem:[%s1 + $0x238] sm:$0xff]
      %v371 = vld [vmem:[%s1 + $0x240] sm:$0xff]
      %v372 = vld [vmem:[%s1 + $0x248] sm:$0xff]
      %v373 = vld [vmem:[%s1 + $0x250] sm:$0xff]
      %v374 = vld [vmem:[%s1 + $0x258] sm:$0xff]
      %v375 = vld [vmem:[%s1 + $0x260] sm:$0xff]
      %v376 = vld [vmem:[%s1 + $0x268] sm:$0xff]
      %v377 = vld [vmem:[%s1 + $0x270] sm:$0xff]
      %v378 = vld [vmem:[%s1 + $0x278] sm:$0xff]
      %v379 = vld [vmem:[%s1 + $0x280] sm:$0xff]
      %v380 = vld [vmem:[%s1 + $0x288] sm:$0xff]
      %v381 = vld [vmem:[%s1 + $0x290] sm:$0xff]
      %v382 = vld [vmem:[%s1 + $0x298] sm:$0xff]
      %v383 = vld [vmem:[%s1 + $0x2a0] sm:$0xff]
      %v384 = vld [vmem:[%s1 + $0x2a8] sm:$0xff]
      %v385 = vld [vmem:[%s1 + $0x2b0] sm:$0xff]
      %v386 = vld [vmem:[%s1 + $0x2b8] sm:$0xff]
      %v387 = vld [vmem:[%s1 + $0x2c0] sm:$0xff]
      %v388 = vld [vmem:[%s1 + $0x2c8] sm:$0xff]
      %v389 = vld [vmem:[%s1 + $0x2d0] sm:$0xff]
      %v390 = vld [vmem:[%s1 + $0x2d8] sm:$0xff]
      %v391 = vld [vmem:[%s1 + $0x2e0] sm:$0xff]
      %v392 = vld [vmem:[%s1 + $0x2e8] sm:$0xff]
      %v393 = vld [vmem:[%s1 + $0x2f0] sm:$0xff]
      %v394 = vld [vmem:[%s1 + $0x2f8] sm:$0xff]
      %v395 = vld [vmem:[%s1 + $0x300] sm:$0xff]
      %v396 = vld [vmem:[%s1 + $0x308] sm:$0xff]
      %v397 = vld [vmem:[%s1 + $0x310] sm:$0xff]
      %v398 = vld [vmem:[%s1 + $0x318] sm:$0xff]
      %v399 = vld [vmem:[%s1 + $0x320] sm:$0xff]
      %v400 = vld [vmem:[%s1 + $0x328] sm:$0xff]
      %v401 = vld [vmem:[%s1 + $0x330] sm:$0xff]
      %v402 = vld [vmem:[%s1 + $0x338] sm:$0xff]
      %v403 = vld [vmem:[%s1 + $0x340] sm:$0xff]
      %v404 = vld [vmem:[%s1 + $0x348] sm:$0xff]
      %v405 = vld [vmem:[%s1 + $0x350] sm:$0xff]
      %v406 = vld [vmem:[%s1 + $0x358] sm:$0xff]
      %v407 = vld [vmem:[%s1 + $0x360] sm:$0xff]
      %v408 = vld [vmem:[%s1 + $0x368] sm:$0xff]
      %v409 = vld [vmem:[%s1 + $0x370] sm:$0xff]
      %v410 = vld [vmem:[%s1 + $0x378] sm:$0xff]
      %v411 = vld [vmem:[%s1 + $0x380] sm:$0xff]
      %v412 = vld [vmem:[%s1 + $0x388] sm:$0xff]
      %v413 = vld [vmem:[%s1 + $0x390] sm:$0xff]
      %v414 = vld [vmem:[%s1 + $0x398] sm:$0xff]
      %v415 = vld [vmem:[%s1 + $0x3a0] sm:$0xff]
      %v416 = vld [vmem:[%s1 + $0x3a8] sm:$0xff]
      %v417 = vld [vmem:[%s1 + $0x3b0] sm:$0xff]
      %v418 = vld [vmem:[%s1 + $0x3b8] sm:$0xff]
      %v419 = vld [vmem:[%s1 + $0x3c0] sm:$0xff]
      %v420 = vld [vmem:[%s1 + $0x3c8] sm:$0xff]
      %v421 = vld [vmem:[%s1 + $0x3d0] sm:$0xff]
      %v422 = vld [vmem:[%s1 + $0x3d8] sm:$0xff]
      %v423 = vld [vmem:[%s1 + $0x3e0] sm:$0xff]
      %v424 = vld [vmem:[%s1 + $0x3e8] sm:$0xff]
      %v425 = vld [vmem:[%s1 + $0x3f0] sm:$0xff]
      %v426 = vld [vmem:[%s1 + $0x3f8] sm:$0xff]
      %v427 = vld [vmem:[#allocation2] sm:$0xfe]
      %v428 = vld [vmem:[#allocation2 + $0x8] sm:$0xfe]
      %v429 = vld [vmem:[#allocation2 + $0x10] sm:$0xfe]
      %v430 = vld [vmem:[#allocation2 + $0x18] sm:$0xfe]
      %v431 = vld [vmem:[#allocation2 + $0x40] sm:$0x1]
      %v432 = vld [vmem:[#allocation2 + $0x48] sm:$0x1]
      %v433 = vld [vmem:[#allocation2 + $0x50] sm:$0x1]
      %v434 = vld [vmem:[#allocation2 + $0x58] sm:$0x1]
      %v435 = vpack.c.bf16 %v291, %v427
      %v436 = vpack.c.bf16 %v292, %v428
      %v437 = vpack.c.bf16 %v293, %v429
      %v438 = vpack.c.bf16 %v294, %v430
      %v439 = vpack.c.bf16 %v431, %v431
      %v440 = vpack.c.bf16 %v432, %v432
      %v441 = vpack.c.bf16 %v433, %v433
      %v442 = vpack.c.bf16 %v434, %v434
      %s443 = scalar_lea.vmem %s1, 1024
      %v444 = vld [vmem:[%s443] sm:$0xff]
      %v445 = vld [vmem:[%s443 + $0x8] sm:$0xff]
      %v446 = vld [vmem:[%s443 + $0x10] sm:$0xff]
      %v447 = vld [vmem:[%s443 + $0x18] sm:$0xff]
      %v448 = vld [vmem:[%s443 + $0x20] sm:$0xff]
      %v449 = vld [vmem:[%s443 + $0x28] sm:$0xff]
      %v450 = vld [vmem:[%s443 + $0x30] sm:$0xff]
      %v451 = vld [vmem:[%s443 + $0x38] sm:$0xff]
      %v452 = vld [vmem:[%s443 + $0x40] sm:$0xff]
      %v453 = vld [vmem:[%s443 + $0x48] sm:$0xff]
      %v454 = vld [vmem:[%s443 + $0x50] sm:$0xff]
      %v455 = vld [vmem:[%s443 + $0x58] sm:$0xff]
      %v456 = vld [vmem:[%s443 + $0x60] sm:$0xff]
      %v457 = vld [vmem:[%s443 + $0x68] sm:$0xff]
      %v458 = vld [vmem:[%s443 + $0x70] sm:$0xff]
      %v459 = vld [vmem:[%s443 + $0x78] sm:$0xff]
      %v460 = vld [vmem:[%s443 + $0x80] sm:$0xff]
      %v461 = vld [vmem:[%s443 + $0x88] sm:$0xff]
      %v462 = vld [vmem:[%s443 + $0x90] sm:$0xff]
      %v463 = vld [vmem:[%s443 + $0x98] sm:$0xff]
      %v464 = vld [vmem:[%s443 + $0xa0] sm:$0xff]
      %v465 = vld [vmem:[%s443 + $0xa8] sm:$0xff]
      %v466 = vld [vmem:[%s443 + $0xb0] sm:$0xff]
      %v467 = vld [vmem:[%s443 + $0xb8] sm:$0xff]
      %v468 = vld [vmem:[%s443 + $0xc0] sm:$0xff]
      %v469 = vld [vmem:[%s443 + $0xc8] sm:$0xff]
      %v470 = vld [vmem:[%s443 + $0xd0] sm:$0xff]
      %v471 = vld [vmem:[%s443 + $0xd8] sm:$0xff]
      %v472 = vld [vmem:[%s443 + $0xe0] sm:$0xff]
      %v473 = vld [vmem:[%s443 + $0xe8] sm:$0xff]
      %v474 = vld [vmem:[%s443 + $0xf0] sm:$0xff]
      %v475 = vld [vmem:[%s443 + $0xf8] sm:$0xff]
      %v476 = vld [vmem:[%s443 + $0x100] sm:$0xff]
      %v477 = vld [vmem:[%s443 + $0x108] sm:$0xff]
      %v478 = vld [vmem:[%s443 + $0x110] sm:$0xff]
      %v479 = vld [vmem:[%s443 + $0x118] sm:$0xff]
      %v480 = vld [vmem:[%s443 + $0x120] sm:$0xff]
      %v481 = vld [vmem:[%s443 + $0x128] sm:$0xff]
      %v482 = vld [vmem:[%s443 + $0x130] sm:$0xff]
      %v483 = vld [vmem:[%s443 + $0x138] sm:$0xff]
      %v484 = vld [vmem:[%s443 + $0x140] sm:$0xff]
      %v485 = vld [vmem:[%s443 + $0x148] sm:$0xff]
      %v486 = vld [vmem:[%s443 + $0x150] sm:$0xff]
      %v487 = vld [vmem:[%s443 + $0x158] sm:$0xff]
      %v488 = vld [vmem:[%s443 + $0x160] sm:$0xff]
      %v489 = vld [vmem:[%s443 + $0x168] sm:$0xff]
      %v490 = vld [vmem:[%s443 + $0x170] sm:$0xff]
      %v491 = vld [vmem:[%s443 + $0x178] sm:$0xff]
      %v492 = vld [vmem:[%s443 + $0x180] sm:$0xff]
      %v493 = vld [vmem:[%s443 + $0x188] sm:$0xff]
      %v494 = vld [vmem:[%s443 + $0x190] sm:$0xff]
      %v495 = vld [vmem:[%s443 + $0x198] sm:$0xff]
      %v496 = vld [vmem:[%s443 + $0x1a0] sm:$0xff]
      %v497 = vld [vmem:[%s443 + $0x1a8] sm:$0xff]
      %v498 = vld [vmem:[%s443 + $0x1b0] sm:$0xff]
      %v499 = vld [vmem:[%s443 + $0x1b8] sm:$0xff]
      %v500 = vld [vmem:[%s443 + $0x1c0] sm:$0xff]
      %v501 = vld [vmem:[%s443 + $0x1c8] sm:$0xff]
      %v502 = vld [vmem:[%s443 + $0x1d0] sm:$0xff]
      %v503 = vld [vmem:[%s443 + $0x1d8] sm:$0xff]
      %v504 = vld [vmem:[%s443 + $0x1e0] sm:$0xff]
      %v505 = vld [vmem:[%s443 + $0x1e8] sm:$0xff]
      %v506 = vld [vmem:[%s443 + $0x1f0] sm:$0xff]
      %v507 = vld [vmem:[%s443 + $0x1f8] sm:$0xff]
      %v508 = vld [vmem:[%s443 + $0x200] sm:$0xff]
      %v509 = vld [vmem:[%s443 + $0x208] sm:$0xff]
      %v510 = vld [vmem:[%s443 + $0x210] sm:$0xff]
      %v511 = vld [vmem:[%s443 + $0x218] sm:$0xff]
      %v512 = vld [vmem:[%s443 + $0x220] sm:$0xff]
      %v513 = vld [vmem:[%s443 + $0x228] sm:$0xff]
      %v514 = vld [vmem:[%s443 + $0x230] sm:$0xff]
      %v515 = vld [vmem:[%s443 + $0x238] sm:$0xff]
      %v516 = vld [vmem:[%s443 + $0x240] sm:$0xff]
      %v517 = vld [vmem:[%s443 + $0x248] sm:$0xff]
      %v518 = vld [vmem:[%s443 + $0x250] sm:$0xff]
      %v519 = vld [vmem:[%s443 + $0x258] sm:$0xff]
      %v520 = vld [vmem:[%s443 + $0x260] sm:$0xff]
      %v521 = vld [vmem:[%s443 + $0x268] sm:$0xff]
      %v522 = vld [vmem:[%s443 + $0x270] sm:$0xff]
      %v523 = vld [vmem:[%s443 + $0x278] sm:$0xff]
      %v524 = vld [vmem:[%s443 + $0x280] sm:$0xff]
      %v525 = vld [vmem:[%s443 + $0x288] sm:$0xff]
      %v526 = vld [vmem:[%s443 + $0x290] sm:$0xff]
      %v527 = vld [vmem:[%s443 + $0x298] sm:$0xff]
      %v528 = vld [vmem:[%s443 + $0x2a0] sm:$0xff]
      %v529 = vld [vmem:[%s443 + $0x2a8] sm:$0xff]
      %v530 = vld [vmem:[%s443 + $0x2b0] sm:$0xff]
      %v531 = vld [vmem:[%s443 + $0x2b8] sm:$0xff]
      %v532 = vld [vmem:[%s443 + $0x2c0] sm:$0xff]
      %v533 = vld [vmem:[%s443 + $0x2c8] sm:$0xff]
      %v534 = vld [vmem:[%s443 + $0x2d0] sm:$0xff]
      %v535 = vld [vmem:[%s443 + $0x2d8] sm:$0xff]
      %v536 = vld [vmem:[%s443 + $0x2e0] sm:$0xff]
      %v537 = vld [vmem:[%s443 + $0x2e8] sm:$0xff]
      %v538 = vld [vmem:[%s443 + $0x2f0] sm:$0xff]
      %v539 = vld [vmem:[%s443 + $0x2f8] sm:$0xff]
      %v540 = vld [vmem:[%s443 + $0x300] sm:$0xff]
      %v541 = vld [vmem:[%s443 + $0x308] sm:$0xff]
      %v542 = vld [vmem:[%s443 + $0x310] sm:$0xff]
      %v543 = vld [vmem:[%s443 + $0x318] sm:$0xff]
      %v544 = vld [vmem:[%s443 + $0x320] sm:$0xff]
      %v545 = vld [vmem:[%s443 + $0x328] sm:$0xff]
      %v546 = vld [vmem:[%s443 + $0x330] sm:$0xff]
      %v547 = vld [vmem:[%s443 + $0x338] sm:$0xff]
      %v548 = vld [vmem:[%s443 + $0x340] sm:$0xff]
      %v549 = vld [vmem:[%s443 + $0x348] sm:$0xff]
      %v550 = vld [vmem:[%s443 + $0x350] sm:$0xff]
      %v551 = vld [vmem:[%s443 + $0x358] sm:$0xff]
      %v552 = vld [vmem:[%s443 + $0x360] sm:$0xff]
      %v553 = vld [vmem:[%s443 + $0x368] sm:$0xff]
      %v554 = vld [vmem:[%s443 + $0x370] sm:$0xff]
      %v555 = vld [vmem:[%s443 + $0x378] sm:$0xff]
      %v556 = vld [vmem:[%s443 + $0x380] sm:$0xff]
      %v557 = vld [vmem:[%s443 + $0x388] sm:$0xff]
      %v558 = vld [vmem:[%s443 + $0x390] sm:$0xff]
      %v559 = vld [vmem:[%s443 + $0x398] sm:$0xff]
      %v560 = vld [vmem:[%s443 + $0x3a0] sm:$0xff]
      %v561 = vld [vmem:[%s443 + $0x3a8] sm:$0xff]
      %v562 = vld [vmem:[%s443 + $0x3b0] sm:$0xff]
      %v563 = vld [vmem:[%s443 + $0x3b8] sm:$0xff]
      %v564 = vld [vmem:[%s443 + $0x3c0] sm:$0xff]
      %v565 = vld [vmem:[%s443 + $0x3c8] sm:$0xff]
      %v566 = vld [vmem:[%s443 + $0x3d0] sm:$0xff]
      %v567 = vld [vmem:[%s443 + $0x3d8] sm:$0xff]
      %v568 = vld [vmem:[%s443 + $0x3e0] sm:$0xff]
      %v569 = vld [vmem:[%s443 + $0x3e8] sm:$0xff]
      %v570 = vld [vmem:[%s443 + $0x3f0] sm:$0xff]
      %v571 = vld [vmem:[%s443 + $0x3f8] sm:$0xff]
      %vm572 = vsmask.f32 7424
      %v574 = vshrl.u32 %v435, 16
      %v576 = vshll.u32 %v435, 16
      %v578 = vrot.slane %v576, 1
      %v579 = vor.u32 %v574, %v578
      %v581 = vshll.u32 %v439, 16
      %v583 = vrot.slane %v581, 1
      %v584 = vsel %vm572, %v579, %v583
      %v586 = vshrl.u32 %v436, 16
      %v588 = vshll.u32 %v436, 16
      %v590 = vrot.slane %v588, 1
      %v591 = vor.u32 %v586, %v590
      %v593 = vshll.u32 %v440, 16
      %v595 = vrot.slane %v593, 1
      %v596 = vsel %vm572, %v591, %v595
      %v598 = vshrl.u32 %v437, 16
      %v600 = vshll.u32 %v437, 16
      %v602 = vrot.slane %v600, 1
      %v603 = vor.u32 %v598, %v602
      %v605 = vshll.u32 %v441, 16
      %v607 = vrot.slane %v605, 1
      %v608 = vsel %vm572, %v603, %v607
      %v610 = vshrl.u32 %v438, 16
      %v612 = vshll.u32 %v438, 16
      %v614 = vrot.slane %v612, 1
      %v615 = vor.u32 %v610, %v614
      %v617 = vshll.u32 %v442, 16
      %v619 = vrot.slane %v617, 1
      %v620 = vsel %vm572, %v615, %v619
      %v753 = vunpack.c.l.b16 %v444
      %v754 = vunpack.c.h.b16 %v444
      %v755 = vunpack.c.l.b16 %v445
      %v756 = vunpack.c.h.b16 %v445
      %v757 = vunpack.c.l.b16 %v446
      %v758 = vunpack.c.h.b16 %v446
      %v759 = vunpack.c.l.b16 %v447
      %v760 = vunpack.c.h.b16 %v447
      %v761 = vunpack.c.l.b16 %v448
      %v762 = vunpack.c.h.b16 %v448
      %v763 = vunpack.c.l.b16 %v449
      %v764 = vunpack.c.h.b16 %v449
      %v765 = vunpack.c.l.b16 %v450
      %v766 = vunpack.c.h.b16 %v450
      %v767 = vunpack.c.l.b16 %v451
      %v768 = vunpack.c.h.b16 %v451
      %v769 = vunpack.c.l.b16 %v452
      %v770 = vunpack.c.h.b16 %v452
      %v771 = vunpack.c.l.b16 %v453
      %v772 = vunpack.c.h.b16 %v453
      %v773 = vunpack.c.l.b16 %v454
      %v774 = vunpack.c.h.b16 %v454
      %v775 = vunpack.c.l.b16 %v455
      %v776 = vunpack.c.h.b16 %v455
      %v777 = vunpack.c.l.b16 %v456
      %v778 = vunpack.c.h.b16 %v456
      %v779 = vunpack.c.l.b16 %v457
      %v780 = vunpack.c.h.b16 %v457
      %v781 = vunpack.c.l.b16 %v458
      %v782 = vunpack.c.h.b16 %v458
      %v783 = vunpack.c.l.b16 %v459
      %v784 = vunpack.c.h.b16 %v459
      %v785 = vunpack.c.l.b16 %v460
      %v786 = vunpack.c.h.b16 %v460
      %v787 = vunpack.c.l.b16 %v461
      %v788 = vunpack.c.h.b16 %v461
      %v789 = vunpack.c.l.b16 %v462
      %v790 = vunpack.c.h.b16 %v462
      %v791 = vunpack.c.l.b16 %v463
      %v792 = vunpack.c.h.b16 %v463
      %v793 = vunpack.c.l.b16 %v464
      %v794 = vunpack.c.h.b16 %v464
      %v795 = vunpack.c.l.b16 %v465
      %v796 = vunpack.c.h.b16 %v465
      %v797 = vunpack.c.l.b16 %v466
      %v798 = vunpack.c.h.b16 %v466
      %v799 = vunpack.c.l.b16 %v467
      %v800 = vunpack.c.h.b16 %v467
      %v801 = vunpack.c.l.b16 %v468
      %v802 = vunpack.c.h.b16 %v468
      %v803 = vunpack.c.l.b16 %v469
      %v804 = vunpack.c.h.b16 %v469
      %v805 = vunpack.c.l.b16 %v470
      %v806 = vunpack.c.h.b16 %v470
      %v807 = vunpack.c.l.b16 %v471
      %v808 = vunpack.c.h.b16 %v471
      %v809 = vunpack.c.l.b16 %v472
      %v810 = vunpack.c.h.b16 %v472
      %v811 = vunpack.c.l.b16 %v473
      %v812 = vunpack.c.h.b16 %v473
      %v813 = vunpack.c.l.b16 %v474
      %v814 = vunpack.c.h.b16 %v474
      %v815 = vunpack.c.l.b16 %v475
      %v816 = vunpack.c.h.b16 %v475
      %v817 = vunpack.c.l.b16 %v476
      %v818 = vunpack.c.h.b16 %v476
      %v819 = vunpack.c.l.b16 %v477
      %v820 = vunpack.c.h.b16 %v477
      %v821 = vunpack.c.l.b16 %v478
      %v822 = vunpack.c.h.b16 %v478
      %v823 = vunpack.c.l.b16 %v479
      %v824 = vunpack.c.h.b16 %v479
      %v825 = vunpack.c.l.b16 %v480
      %v826 = vunpack.c.h.b16 %v480
      %v827 = vunpack.c.l.b16 %v481
      %v828 = vunpack.c.h.b16 %v481
      %v829 = vunpack.c.l.b16 %v482
      %v830 = vunpack.c.h.b16 %v482
      %v831 = vunpack.c.l.b16 %v483
      %v832 = vunpack.c.h.b16 %v483
      %v833 = vunpack.c.l.b16 %v484
      %v834 = vunpack.c.h.b16 %v484
      %v835 = vunpack.c.l.b16 %v485
      %v836 = vunpack.c.h.b16 %v485
      %v837 = vunpack.c.l.b16 %v486
      %v838 = vunpack.c.h.b16 %v486
      %v839 = vunpack.c.l.b16 %v487
      %v840 = vunpack.c.h.b16 %v487
      %v841 = vunpack.c.l.b16 %v488
      %v842 = vunpack.c.h.b16 %v488
      %v843 = vunpack.c.l.b16 %v489
      %v844 = vunpack.c.h.b16 %v489
      %v845 = vunpack.c.l.b16 %v490
      %v846 = vunpack.c.h.b16 %v490
      %v847 = vunpack.c.l.b16 %v491
      %v848 = vunpack.c.h.b16 %v491
      %v849 = vunpack.c.l.b16 %v492
      %v850 = vunpack.c.h.b16 %v492
      %v851 = vunpack.c.l.b16 %v493
      %v852 = vunpack.c.h.b16 %v493
      %v853 = vunpack.c.l.b16 %v494
      %v854 = vunpack.c.h.b16 %v494
      %v855 = vunpack.c.l.b16 %v495
      %v856 = vunpack.c.h.b16 %v495
      %v857 = vunpack.c.l.b16 %v496
      %v858 = vunpack.c.h.b16 %v496
      %v859 = vunpack.c.l.b16 %v497
      %v860 = vunpack.c.h.b16 %v497
      %v861 = vunpack.c.l.b16 %v498
      %v862 = vunpack.c.h.b16 %v498
      %v863 = vunpack.c.l.b16 %v499
      %v864 = vunpack.c.h.b16 %v499
      %v865 = vunpack.c.l.b16 %v500
      %v866 = vunpack.c.h.b16 %v500
      %v867 = vunpack.c.l.b16 %v501
      %v868 = vunpack.c.h.b16 %v501
      %v869 = vunpack.c.l.b16 %v502
      %v870 = vunpack.c.h.b16 %v502
      %v871 = vunpack.c.l.b16 %v503
      %v872 = vunpack.c.h.b16 %v503
      %v873 = vunpack.c.l.b16 %v504
      %v874 = vunpack.c.h.b16 %v504
      %v875 = vunpack.c.l.b16 %v505
      %v876 = vunpack.c.h.b16 %v505
      %v877 = vunpack.c.l.b16 %v506
      %v878 = vunpack.c.h.b16 %v506
      %v879 = vunpack.c.l.b16 %v507
      %v880 = vunpack.c.h.b16 %v507
      %v881 = vunpack.c.l.b16 %v508
      %v882 = vunpack.c.h.b16 %v508
      %v883 = vunpack.c.l.b16 %v509
      %v884 = vunpack.c.h.b16 %v509
      %v885 = vunpack.c.l.b16 %v510
      %v886 = vunpack.c.h.b16 %v510
      %v887 = vunpack.c.l.b16 %v511
      %v888 = vunpack.c.h.b16 %v511
      %v889 = vunpack.c.l.b16 %v512
      %v890 = vunpack.c.h.b16 %v512
      %v891 = vunpack.c.l.b16 %v513
      %v892 = vunpack.c.h.b16 %v513
      %v893 = vunpack.c.l.b16 %v514
      %v894 = vunpack.c.h.b16 %v514
      %v895 = vunpack.c.l.b16 %v515
      %v896 = vunpack.c.h.b16 %v515
      %v897 = vunpack.c.l.b16 %v516
      %v898 = vunpack.c.h.b16 %v516
      %v899 = vunpack.c.l.b16 %v517
      %v900 = vunpack.c.h.b16 %v517
      %v901 = vunpack.c.l.b16 %v518
      %v902 = vunpack.c.h.b16 %v518
      %v903 = vunpack.c.l.b16 %v519
      %v904 = vunpack.c.h.b16 %v519
      %v905 = vunpack.c.l.b16 %v520
      %v906 = vunpack.c.h.b16 %v520
      %v907 = vunpack.c.l.b16 %v521
      %v908 = vunpack.c.h.b16 %v521
      %v909 = vunpack.c.l.b16 %v522
      %v910 = vunpack.c.h.b16 %v522
      %v911 = vunpack.c.l.b16 %v523
      %v912 = vunpack.c.h.b16 %v523
      %v913 = vunpack.c.l.b16 %v524
      %v914 = vunpack.c.h.b16 %v524
      %v915 = vunpack.c.l.b16 %v525
      %v916 = vunpack.c.h.b16 %v525
      %v917 = vunpack.c.l.b16 %v526
      %v918 = vunpack.c.h.b16 %v526
      %v919 = vunpack.c.l.b16 %v527
      %v920 = vunpack.c.h.b16 %v527
      %v921 = vunpack.c.l.b16 %v528
      %v922 = vunpack.c.h.b16 %v528
      %v923 = vunpack.c.l.b16 %v529
      %v924 = vunpack.c.h.b16 %v529
      %v925 = vunpack.c.l.b16 %v530
      %v926 = vunpack.c.h.b16 %v530
      %v927 = vunpack.c.l.b16 %v531
      %v928 = vunpack.c.h.b16 %v531
      %v929 = vunpack.c.l.b16 %v532
      %v930 = vunpack.c.h.b16 %v532
      %v931 = vunpack.c.l.b16 %v533
      %v932 = vunpack.c.h.b16 %v533
      %v933 = vunpack.c.l.b16 %v534
      %v934 = vunpack.c.h.b16 %v534
      %v935 = vunpack.c.l.b16 %v535
      %v936 = vunpack.c.h.b16 %v535
      %v937 = vunpack.c.l.b16 %v536
      %v938 = vunpack.c.h.b16 %v536
      %v939 = vunpack.c.l.b16 %v537
      %v940 = vunpack.c.h.b16 %v537
      %v941 = vunpack.c.l.b16 %v538
      %v942 = vunpack.c.h.b16 %v538
      %v943 = vunpack.c.l.b16 %v539
      %v944 = vunpack.c.h.b16 %v539
      %v945 = vunpack.c.l.b16 %v540
      %v946 = vunpack.c.h.b16 %v540
      %v947 = vunpack.c.l.b16 %v541
      %v948 = vunpack.c.h.b16 %v541
      %v949 = vunpack.c.l.b16 %v542
      %v950 = vunpack.c.h.b16 %v542
      %v951 = vunpack.c.l.b16 %v543
      %v952 = vunpack.c.h.b16 %v543
      %v953 = vunpack.c.l.b16 %v544
      %v954 = vunpack.c.h.b16 %v544
      %v955 = vunpack.c.l.b16 %v545
      %v956 = vunpack.c.h.b16 %v545
      %v957 = vunpack.c.l.b16 %v546
      %v958 = vunpack.c.h.b16 %v546
      %v959 = vunpack.c.l.b16 %v547
      %v960 = vunpack.c.h.b16 %v547
      %v961 = vunpack.c.l.b16 %v548
      %v962 = vunpack.c.h.b16 %v548
      %v963 = vunpack.c.l.b16 %v549
      %v964 = vunpack.c.h.b16 %v549
      %v965 = vunpack.c.l.b16 %v550
      %v966 = vunpack.c.h.b16 %v550
      %v967 = vunpack.c.l.b16 %v551
      %v968 = vunpack.c.h.b16 %v551
      %v969 = vunpack.c.l.b16 %v552
      %v970 = vunpack.c.h.b16 %v552
      %v971 = vunpack.c.l.b16 %v553
      %v972 = vunpack.c.h.b16 %v553
      %v973 = vunpack.c.l.b16 %v554
      %v974 = vunpack.c.h.b16 %v554
      %v975 = vunpack.c.l.b16 %v555
      %v976 = vunpack.c.h.b16 %v555
      %v977 = vunpack.c.l.b16 %v556
      %v978 = vunpack.c.h.b16 %v556
      %v979 = vunpack.c.l.b16 %v557
      %v980 = vunpack.c.h.b16 %v557
      %v981 = vunpack.c.l.b16 %v558
      %v982 = vunpack.c.h.b16 %v558
      %v983 = vunpack.c.l.b16 %v559
      %v984 = vunpack.c.h.b16 %v559
      %v985 = vunpack.c.l.b16 %v560
      %v986 = vunpack.c.h.b16 %v560
      %v987 = vunpack.c.l.b16 %v561
      %v988 = vunpack.c.h.b16 %v561
      %v989 = vunpack.c.l.b16 %v562
      %v990 = vunpack.c.h.b16 %v562
      %v991 = vunpack.c.l.b16 %v563
      %v992 = vunpack.c.h.b16 %v563
      %v993 = vunpack.c.l.b16 %v564
      %v994 = vunpack.c.h.b16 %v564
      %v995 = vunpack.c.l.b16 %v565
      %v996 = vunpack.c.h.b16 %v565
      %v997 = vunpack.c.l.b16 %v566
      %v998 = vunpack.c.h.b16 %v566
      %v999 = vunpack.c.l.b16 %v567
      %v1000 = vunpack.c.h.b16 %v567
      %v1001 = vunpack.c.l.b16 %v568
      %v1002 = vunpack.c.h.b16 %v568
      %v1003 = vunpack.c.l.b16 %v569
      %v1004 = vunpack.c.h.b16 %v569
      %v1005 = vunpack.c.l.b16 %v570
      %v1006 = vunpack.c.h.b16 %v570
      %v1007 = vunpack.c.l.b16 %v571
      %v1008 = vunpack.c.h.b16 %v571
      %v1009 = vpack.c.b16 %v757, %v753
      %v1010 = vpack.c.b16 %v758, %v754
      %v1011 = vpack.c.b16 %v759, %v755
      %v1012 = vpack.c.b16 %v760, %v756
      %v1013 = vpack.c.b16 %v765, %v761
      %v1014 = vpack.c.b16 %v766, %v762
      %v1015 = vpack.c.b16 %v767, %v763
      %v1016 = vpack.c.b16 %v768, %v764
      %v1017 = vpack.c.b16 %v773, %v769
      %v1018 = vpack.c.b16 %v774, %v770
      %v1019 = vpack.c.b16 %v775, %v771
      %v1020 = vpack.c.b16 %v776, %v772
      %v1021 = vpack.c.b16 %v781, %v777
      %v1022 = vpack.c.b16 %v782, %v778
      %v1023 = vpack.c.b16 %v783, %v779
      %v1024 = vpack.c.b16 %v784, %v780
      %v1025 = vpack.c.b16 %v789, %v785
      %v1026 = vpack.c.b16 %v790, %v786
      %v1027 = vpack.c.b16 %v791, %v787
      %v1028 = vpack.c.b16 %v792, %v788
      %v1029 = vpack.c.b16 %v797, %v793
      %v1030 = vpack.c.b16 %v798, %v794
      %v1031 = vpack.c.b16 %v799, %v795
      %v1032 = vpack.c.b16 %v800, %v796
      %v1033 = vpack.c.b16 %v805, %v801
      %v1034 = vpack.c.b16 %v806, %v802
      %v1035 = vpack.c.b16 %v807, %v803
      %v1036 = vpack.c.b16 %v808, %v804
      %v1037 = vpack.c.b16 %v813, %v809
      %v1038 = vpack.c.b16 %v814, %v810
      %v1039 = vpack.c.b16 %v815, %v811
      %v1040 = vpack.c.b16 %v816, %v812
      %v1041 = vpack.c.b16 %v821, %v817
      %v1042 = vpack.c.b16 %v822, %v818
      %v1043 = vpack.c.b16 %v823, %v819
      %v1044 = vpack.c.b16 %v824, %v820
      %v1045 = vpack.c.b16 %v829, %v825
      %v1046 = vpack.c.b16 %v830, %v826
      %v1047 = vpack.c.b16 %v831, %v827
      %v1048 = vpack.c.b16 %v832, %v828
      %v1049 = vpack.c.b16 %v837, %v833
      %v1050 = vpack.c.b16 %v838, %v834
      %v1051 = vpack.c.b16 %v839, %v835
      %v1052 = vpack.c.b16 %v840, %v836
      %v1053 = vpack.c.b16 %v845, %v841
      %v1054 = vpack.c.b16 %v846, %v842
      %v1055 = vpack.c.b16 %v847, %v843
      %v1056 = vpack.c.b16 %v848, %v844
      %v1057 = vpack.c.b16 %v853, %v849
      %v1058 = vpack.c.b16 %v854, %v850
      %v1059 = vpack.c.b16 %v855, %v851
      %v1060 = vpack.c.b16 %v856, %v852
      %v1061 = vpack.c.b16 %v861, %v857
      %v1062 = vpack.c.b16 %v862, %v858
      %v1063 = vpack.c.b16 %v863, %v859
      %v1064 = vpack.c.b16 %v864, %v860
      %v1065 = vpack.c.b16 %v869, %v865
      %v1066 = vpack.c.b16 %v870, %v866
      %v1067 = vpack.c.b16 %v871, %v867
      %v1068 = vpack.c.b16 %v872, %v868
      %v1069 = vpack.c.b16 %v877, %v873
      %v1070 = vpack.c.b16 %v878, %v874
      %v1071 = vpack.c.b16 %v879, %v875
      %v1072 = vpack.c.b16 %v880, %v876
      %v1073 = vpack.c.b16 %v885, %v881
      %v1074 = vpack.c.b16 %v886, %v882
      %v1075 = vpack.c.b16 %v887, %v883
      %v1076 = vpack.c.b16 %v888, %v884
      %v1077 = vpack.c.b16 %v893, %v889
      %v1078 = vpack.c.b16 %v894, %v890
      %v1079 = vpack.c.b16 %v895, %v891
      %v1080 = vpack.c.b16 %v896, %v892
      %v1081 = vpack.c.b16 %v901, %v897
      %v1082 = vpack.c.b16 %v902, %v898
      %v1083 = vpack.c.b16 %v903, %v899
      %v1084 = vpack.c.b16 %v904, %v900
      %v1085 = vpack.c.b16 %v909, %v905
      %v1086 = vpack.c.b16 %v910, %v906
      %v1087 = vpack.c.b16 %v911, %v907
      %v1088 = vpack.c.b16 %v912, %v908
      %v1089 = vpack.c.b16 %v917, %v913
      %v1090 = vpack.c.b16 %v918, %v914
      %v1091 = vpack.c.b16 %v919, %v915
      %v1092 = vpack.c.b16 %v920, %v916
      %v1093 = vpack.c.b16 %v925, %v921
      %v1094 = vpack.c.b16 %v926, %v922
      %v1095 = vpack.c.b16 %v927, %v923
      %v1096 = vpack.c.b16 %v928, %v924
      %v1097 = vpack.c.b16 %v933, %v929
      %v1098 = vpack.c.b16 %v934, %v930
      %v1099 = vpack.c.b16 %v935, %v931
      %v1100 = vpack.c.b16 %v936, %v932
      %v1101 = vpack.c.b16 %v941, %v937
      %v1102 = vpack.c.b16 %v942, %v938
      %v1103 = vpack.c.b16 %v943, %v939
      %v1104 = vpack.c.b16 %v944, %v940
      %v1105 = vpack.c.b16 %v949, %v945
      %v1106 = vpack.c.b16 %v950, %v946
      %v1107 = vpack.c.b16 %v951, %v947
      %v1108 = vpack.c.b16 %v952, %v948
      %v1109 = vpack.c.b16 %v957, %v953
      %v1110 = vpack.c.b16 %v958, %v954
      %v1111 = vpack.c.b16 %v959, %v955
      %v1112 = vpack.c.b16 %v960, %v956
      %v1113 = vpack.c.b16 %v965, %v961
      %v1114 = vpack.c.b16 %v966, %v962
      %v1115 = vpack.c.b16 %v967, %v963
      %v1116 = vpack.c.b16 %v968, %v964
      %v1117 = vpack.c.b16 %v973, %v969
      %v1118 = vpack.c.b16 %v974, %v970
      %v1119 = vpack.c.b16 %v975, %v971
      %v1120 = vpack.c.b16 %v976, %v972
      %v1121 = vpack.c.b16 %v981, %v977
      %v1122 = vpack.c.b16 %v982, %v978
      %v1123 = vpack.c.b16 %v983, %v979
      %v1124 = vpack.c.b16 %v984, %v980
      %v1125 = vpack.c.b16 %v989, %v985
      %v1126 = vpack.c.b16 %v990, %v986
      %v1127 = vpack.c.b16 %v991, %v987
      %v1128 = vpack.c.b16 %v992, %v988
      %v1129 = vpack.c.b16 %v997, %v993
      %v1130 = vpack.c.b16 %v998, %v994
      %v1131 = vpack.c.b16 %v999, %v995
      %v1132 = vpack.c.b16 %v1000, %v996
      %v1133 = vpack.c.b16 %v1005, %v1001
      %v1134 = vpack.c.b16 %v1006, %v1002
      %v1135 = vpack.c.b16 %v1007, %v1003
      %v1136 = vpack.c.b16 %v1008, %v1004
      %1265 = vmatprep.subr.bf16.mxu0 %v1038
      %1266 = vmatpush1.bf16.msra.mxu0 %v1037
      %1267 = vmatprep.subr.bf16.mxu0 %v1034
      %1268 = vmatpush1.bf16.msra.mxu0 %v1033
      %1269 = vmatprep.subr.bf16.mxu0 %v1030
      %1270 = vmatpush1.bf16.msra.mxu0 %v1029
      %1271 = vmatprep.subr.bf16.mxu0 %v1026
      %1272 = vmatpush1.bf16.msra.mxu0 %v1025
      %1273 = vmatprep.subr.bf16.mxu0 %v1022
      %1274 = vmatpush1.bf16.msra.mxu0 %v1021
      %1275 = vmatprep.subr.bf16.mxu0 %v1018
      %1276 = vmatpush1.bf16.msra.mxu0 %v1017
      %1277 = vmatprep.subr.bf16.mxu0 %v1014
      %1278 = vmatpush1.bf16.msra.mxu0 %v1013
      %1279 = vmatprep.subr.bf16.mxu0 %v1010
      %1280 = vmatpush1.bf16.msra.mxu0 %v1009
      %1281 = vmatprep.subr.bf16.mxu0 %v1070
      %1282 = vmatpush2.bf16.msra.mxu0 %v1069
      %1283 = vmatprep.subr.bf16.mxu0 %v1066
      %1284 = vmatpush2.bf16.msra.mxu0 %v1065
      %1285 = vmatprep.subr.bf16.mxu0 %v1062
      %1286 = vmatpush2.bf16.msra.mxu0 %v1061
      %1287 = vmatprep.subr.bf16.mxu0 %v1058
      %1288 = vmatpush2.bf16.msra.mxu0 %v1057
      %1289 = vmatprep.subr.bf16.mxu0 %v1054
      %1290 = vmatpush2.bf16.msra.mxu0 %v1053
      %1291 = vmatprep.subr.bf16.mxu0 %v1050
      %1292 = vmatpush2.bf16.msra.mxu0 %v1049
      %1293 = vmatprep.subr.bf16.mxu0 %v1046
      %1294 = vmatpush2.bf16.msra.mxu0 %v1045
      %1295 = vmatprep.subr.bf16.mxu0 %v1042
      %1296 = vmatpush2.bf16.msra.mxu0 %v1041
      %1297 = vmatprep.mubr.bf16.mxu0 %v596
      %1298 = vmatmul.mubr.bf16.gmra.mxu0 %v584
      %v1299 = vpop.f32.mrf.mxu0
      %v1300 = vadd.f32 0.0, %v1299
      %v1301 = vpop.f32.mrf.mxu0
      %v1302 = vadd.f32 0.0, %v1301
      %v1303 = vpop.f32.mrf.mxu0
      %v1304 = vadd.f32 0.0, %v1303
      %v1305 = vpop.f32.mrf.mxu0
      %v1306 = vadd.f32 0.0, %v1305
      %1307 = vdwg.mxu0
      %1308 = vmatprep.subr.bf16.mxu0 %v1102
      %1309 = vmatpush1.bf16.msra.mxu0 %v1101
      %1310 = vmatprep.subr.bf16.mxu0 %v1098
      %1311 = vmatpush1.bf16.msra.mxu0 %v1097
      %1312 = vmatprep.subr.bf16.mxu0 %v1094
      %1313 = vmatpush1.bf16.msra.mxu0 %v1093
      %1314 = vmatprep.subr.bf16.mxu0 %v1090
      %1315 = vmatpush1.bf16.msra.mxu0 %v1089
      %1316 = vmatprep.subr.bf16.mxu0 %v1086
      %1317 = vmatpush1.bf16.msra.mxu0 %v1085
      %1318 = vmatprep.subr.bf16.mxu0 %v1082
      %1319 = vmatpush1.bf16.msra.mxu0 %v1081
      %1320 = vmatprep.subr.bf16.mxu0 %v1078
      %1321 = vmatpush1.bf16.msra.mxu0 %v1077
      %1322 = vmatprep.subr.bf16.mxu0 %v1074
      %1323 = vmatpush1.bf16.msra.mxu0 %v1073
      %1324 = vmatprep.subr.bf16.mxu0 %v1134
      %1325 = vmatpush2.bf16.msra.mxu0 %v1133
      %1326 = vmatprep.subr.bf16.mxu0 %v1130
      %1327 = vmatpush2.bf16.msra.mxu0 %v1129
      %1328 = vmatprep.subr.bf16.mxu0 %v1126
      %1329 = vmatpush2.bf16.msra.mxu0 %v1125
      %1330 = vmatprep.subr.bf16.mxu0 %v1122
      %1331 = vmatpush2.bf16.msra.mxu0 %v1121
      %1332 = vmatprep.subr.bf16.mxu0 %v1118
      %1333 = vmatpush2.bf16.msra.mxu0 %v1117
      %1334 = vmatprep.subr.bf16.mxu0 %v1114
      %1335 = vmatpush2.bf16.msra.mxu0 %v1113
      %1336 = vmatprep.subr.bf16.mxu0 %v1110
      %1337 = vmatpush2.bf16.msra.mxu0 %v1109
      %1338 = vmatprep.subr.bf16.mxu0 %v1106
      %1339 = vmatpush2.bf16.msra.mxu0 %v1105
      %1340 = vmatprep.mubr.bf16.mxu0 %v620
      %1341 = vmatmul.mubr.bf16.gmra.mxu0 %v608
      %v1342 = vpop.f32.mrf.mxu0
      %v1343 = vadd.f32 %v1300, %v1342
      %v1344 = vpop.f32.mrf.mxu0
      %v1345 = vadd.f32 %v1302, %v1344
      %v1346 = vpop.f32.mrf.mxu0
      %v1347 = vadd.f32 %v1304, %v1346
      %v1348 = vpop.f32.mrf.mxu0
      %v1349 = vadd.f32 %v1306, %v1348
      %1350 = vdwg.mxu0
      %1351 = vmatprep.subr.bf16.mxu0 %v1040
      %1352 = vmatpush1.bf16.msra.mxu0 %v1039
      %1353 = vmatprep.subr.bf16.mxu0 %v1036
      %1354 = vmatpush1.bf16.msra.mxu0 %v1035
      %1355 = vmatprep.subr.bf16.mxu0 %v1032
      %1356 = vmatpush1.bf16.msra.mxu0 %v1031
      %1357 = vmatprep.subr.bf16.mxu0 %v1028
      %1358 = vmatpush1.bf16.msra.mxu0 %v1027
      %1359 = vmatprep.subr.bf16.mxu0 %v1024
      %1360 = vmatpush1.bf16.msra.mxu0 %v1023
      %1361 = vmatprep.subr.bf16.mxu0 %v1020
      %1362 = vmatpush1.bf16.msra.mxu0 %v1019
      %1363 = vmatprep.subr.bf16.mxu0 %v1016
      %1364 = vmatpush1.bf16.msra.mxu0 %v1015
      %1365 = vmatprep.subr.bf16.mxu0 %v1012
      %1366 = vmatpush1.bf16.msra.mxu0 %v1011
      %1367 = vmatprep.subr.bf16.mxu0 %v1072
      %1368 = vmatpush2.bf16.msra.mxu0 %v1071
      %1369 = vmatprep.subr.bf16.mxu0 %v1068
      %1370 = vmatpush2.bf16.msra.mxu0 %v1067
      %1371 = vmatprep.subr.bf16.mxu0 %v1064
      %1372 = vmatpush2.bf16.msra.mxu0 %v1063
      %1373 = vmatprep.subr.bf16.mxu0 %v1060
      %1374 = vmatpush2.bf16.msra.mxu0 %v1059
      %1375 = vmatprep.subr.bf16.mxu0 %v1056
      %1376 = vmatpush2.bf16.msra.mxu0 %v1055
      %1377 = vmatprep.subr.bf16.mxu0 %v1052
      %1378 = vmatpush2.bf16.msra.mxu0 %v1051
      %1379 = vmatprep.subr.bf16.mxu0 %v1048
      %1380 = vmatpush2.bf16.msra.mxu0 %v1047
      %1381 = vmatprep.subr.bf16.mxu0 %v1044
      %1382 = vmatpush2.bf16.msra.mxu0 %v1043
      %1383 = vmatprep.mubr.bf16.mxu0 %v596
      %1384 = vmatmul.mubr.bf16.gmra.mxu0 %v584
      %v1385 = vpop.f32.mrf.mxu0
      %v1386 = vadd.f32 0.0, %v1385
      %v1387 = vpop.f32.mrf.mxu0
      %v1388 = vadd.f32 0.0, %v1387
      %v1389 = vpop.f32.mrf.mxu0
      %v1390 = vadd.f32 0.0, %v1389
      %v1391 = vpop.f32.mrf.mxu0
      %v1392 = vadd.f32 0.0, %v1391
      %1393 = vdwg.mxu0
      %1394 = vmatprep.subr.bf16.mxu0 %v1104
      %1395 = vmatpush1.bf16.msra.mxu0 %v1103
      %1396 = vmatprep.subr.bf16.mxu0 %v1100
      %1397 = vmatpush1.bf16.msra.mxu0 %v1099
      %1398 = vmatprep.subr.bf16.mxu0 %v1096
      %1399 = vmatpush1.bf16.msra.mxu0 %v1095
      %1400 = vmatprep.subr.bf16.mxu0 %v1092
      %1401 = vmatpush1.bf16.msra.mxu0 %v1091
      %1402 = vmatprep.subr.bf16.mxu0 %v1088
      %1403 = vmatpush1.bf16.msra.mxu0 %v1087
      %1404 = vmatprep.subr.bf16.mxu0 %v1084
      %1405 = vmatpush1.bf16.msra.mxu0 %v1083
      %1406 = vmatprep.subr.bf16.mxu0 %v1080
      %1407 = vmatpush1.bf16.msra.mxu0 %v1079
      %1408 = vmatprep.subr.bf16.mxu0 %v1076
      %1409 = vmatpush1.bf16.msra.mxu0 %v1075
      %1410 = vmatprep.subr.bf16.mxu0 %v1136
      %1411 = vmatpush2.bf16.msra.mxu0 %v1135
      %1412 = vmatprep.subr.bf16.mxu0 %v1132
      %1413 = vmatpush2.bf16.msra.mxu0 %v1131
      %1414 = vmatprep.subr.bf16.mxu0 %v1128
      %1415 = vmatpush2.bf16.msra.mxu0 %v1127
      %1416 = vmatprep.subr.bf16.mxu0 %v1124
      %1417 = vmatpush2.bf16.msra.mxu0 %v1123
      %1418 = vmatprep.subr.bf16.mxu0 %v1120
      %1419 = vmatpush2.bf16.msra.mxu0 %v1119
      %1420 = vmatprep.subr.bf16.mxu0 %v1116
      %1421 = vmatpush2.bf16.msra.mxu0 %v1115
      %1422 = vmatprep.subr.bf16.mxu0 %v1112
      %1423 = vmatpush2.bf16.msra.mxu0 %v1111
      %1424 = vmatprep.subr.bf16.mxu0 %v1108
      %1425 = vmatpush2.bf16.msra.mxu0 %v1107
      %1426 = vmatprep.mubr.bf16.mxu0 %v620
      %1427 = vmatmul.mubr.bf16.gmra.mxu0 %v608
      %v1428 = vpop.f32.mrf.mxu0
      %v1429 = vadd.f32 %v1386, %v1428
      %v1430 = vpop.f32.mrf.mxu0
      %v1431 = vadd.f32 %v1388, %v1430
      %v1432 = vpop.f32.mrf.mxu0
      %v1433 = vadd.f32 %v1390, %v1432
      %v1434 = vpop.f32.mrf.mxu0
      %v1435 = vadd.f32 %v1392, %v1434
      %1436 = vdwg.mxu0
      %v1565 = vunpack.c.l.b16 %v299
      %v1566 = vunpack.c.h.b16 %v299
      %v1567 = vunpack.c.l.b16 %v300
      %v1568 = vunpack.c.h.b16 %v300
      %v1569 = vunpack.c.l.b16 %v301
      %v1570 = vunpack.c.h.b16 %v301
      %v1571 = vunpack.c.l.b16 %v302
      %v1572 = vunpack.c.h.b16 %v302
      %v1573 = vunpack.c.l.b16 %v303
      %v1574 = vunpack.c.h.b16 %v303
      %v1575 = vunpack.c.l.b16 %v304
      %v1576 = vunpack.c.h.b16 %v304
      %v1577 = vunpack.c.l.b16 %v305
      %v1578 = vunpack.c.h.b16 %v305
      %v1579 = vunpack.c.l.b16 %v306
      %v1580 = vunpack.c.h.b16 %v306
      %v1581 = vunpack.c.l.b16 %v307
      %v1582 = vunpack.c.h.b16 %v307
      %v1583 = vunpack.c.l.b16 %v308
      %v1584 = vunpack.c.h.b16 %v308
      %v1585 = vunpack.c.l.b16 %v309
      %v1586 = vunpack.c.h.b16 %v309
      %v1587 = vunpack.c.l.b16 %v310
      %v1588 = vunpack.c.h.b16 %v310
      %v1589 = vunpack.c.l.b16 %v311
      %v1590 = vunpack.c.h.b16 %v311
      %v1591 = vunpack.c.l.b16 %v312
      %v1592 = vunpack.c.h.b16 %v312
      %v1593 = vunpack.c.l.b16 %v313
      %v1594 = vunpack.c.h.b16 %v313
      %v1595 = vunpack.c.l.b16 %v314
      %v1596 = vunpack.c.h.b16 %v314
      %v1597 = vunpack.c.l.b16 %v315
      %v1598 = vunpack.c.h.b16 %v315
      %v1599 = vunpack.c.l.b16 %v316
      %v1600 = vunpack.c.h.b16 %v316
      %v1601 = vunpack.c.l.b16 %v317
      %v1602 = vunpack.c.h.b16 %v317
      %v1603 = vunpack.c.l.b16 %v318
      %v1604 = vunpack.c.h.b16 %v318
      %v1605 = vunpack.c.l.b16 %v319
      %v1606 = vunpack.c.h.b16 %v319
      %v1607 = vunpack.c.l.b16 %v320
      %v1608 = vunpack.c.h.b16 %v320
      %v1609 = vunpack.c.l.b16 %v321
      %v1610 = vunpack.c.h.b16 %v321
      %v1611 = vunpack.c.l.b16 %v322
      %v1612 = vunpack.c.h.b16 %v322
      %v1613 = vunpack.c.l.b16 %v323
      %v1614 = vunpack.c.h.b16 %v323
      %v1615 = vunpack.c.l.b16 %v324
      %v1616 = vunpack.c.h.b16 %v324
      %v1617 = vunpack.c.l.b16 %v325
      %v1618 = vunpack.c.h.b16 %v325
      %v1619 = vunpack.c.l.b16 %v326
      %v1620 = vunpack.c.h.b16 %v326
      %v1621 = vunpack.c.l.b16 %v327
      %v1622 = vunpack.c.h.b16 %v327
      %v1623 = vunpack.c.l.b16 %v328
      %v1624 = vunpack.c.h.b16 %v328
      %v1625 = vunpack.c.l.b16 %v329
      %v1626 = vunpack.c.h.b16 %v329
      %v1627 = vunpack.c.l.b16 %v330
      %v1628 = vunpack.c.h.b16 %v330
      %v1629 = vunpack.c.l.b16 %v331
      %v1630 = vunpack.c.h.b16 %v331
      %v1631 = vunpack.c.l.b16 %v332
      %v1632 = vunpack.c.h.b16 %v332
      %v1633 = vunpack.c.l.b16 %v333
      %v1634 = vunpack.c.h.b16 %v333
      %v1635 = vunpack.c.l.b16 %v334
      %v1636 = vunpack.c.h.b16 %v334
      %v1637 = vunpack.c.l.b16 %v335
      %v1638 = vunpack.c.h.b16 %v335
      %v1639 = vunpack.c.l.b16 %v336
      %v1640 = vunpack.c.h.b16 %v336
      %v1641 = vunpack.c.l.b16 %v337
      %v1642 = vunpack.c.h.b16 %v337
      %v1643 = vunpack.c.l.b16 %v338
      %v1644 = vunpack.c.h.b16 %v338
      %v1645 = vunpack.c.l.b16 %v339
      %v1646 = vunpack.c.h.b16 %v339
      %v1647 = vunpack.c.l.b16 %v340
      %v1648 = vunpack.c.h.b16 %v340
      %v1649 = vunpack.c.l.b16 %v341
      %v1650 = vunpack.c.h.b16 %v341
      %v1651 = vunpack.c.l.b16 %v342
      %v1652 = vunpack.c.h.b16 %v342
      %v1653 = vunpack.c.l.b16 %v343
      %v1654 = vunpack.c.h.b16 %v343
      %v1655 = vunpack.c.l.b16 %v344
      %v1656 = vunpack.c.h.b16 %v344
      %v1657 = vunpack.c.l.b16 %v345
      %v1658 = vunpack.c.h.b16 %v345
      %v1659 = vunpack.c.l.b16 %v346
      %v1660 = vunpack.c.h.b16 %v346
      %v1661 = vunpack.c.l.b16 %v347
      %v1662 = vunpack.c.h.b16 %v347
      %v1663 = vunpack.c.l.b16 %v348
      %v1664 = vunpack.c.h.b16 %v348
      %v1665 = vunpack.c.l.b16 %v349
      %v1666 = vunpack.c.h.b16 %v349
      %v1667 = vunpack.c.l.b16 %v350
      %v1668 = vunpack.c.h.b16 %v350
      %v1669 = vunpack.c.l.b16 %v351
      %v1670 = vunpack.c.h.b16 %v351
      %v1671 = vunpack.c.l.b16 %v352
      %v1672 = vunpack.c.h.b16 %v352
      %v1673 = vunpack.c.l.b16 %v353
      %v1674 = vunpack.c.h.b16 %v353
      %v1675 = vunpack.c.l.b16 %v354
      %v1676 = vunpack.c.h.b16 %v354
      %v1677 = vunpack.c.l.b16 %v355
      %v1678 = vunpack.c.h.b16 %v355
      %v1679 = vunpack.c.l.b16 %v356
      %v1680 = vunpack.c.h.b16 %v356
      %v1681 = vunpack.c.l.b16 %v357
      %v1682 = vunpack.c.h.b16 %v357
      %v1683 = vunpack.c.l.b16 %v358
      %v1684 = vunpack.c.h.b16 %v358
      %v1685 = vunpack.c.l.b16 %v359
      %v1686 = vunpack.c.h.b16 %v359
      %v1687 = vunpack.c.l.b16 %v360
      %v1688 = vunpack.c.h.b16 %v360
      %v1689 = vunpack.c.l.b16 %v361
      %v1690 = vunpack.c.h.b16 %v361
      %v1691 = vunpack.c.l.b16 %v362
      %v1692 = vunpack.c.h.b16 %v362
      %v1693 = vunpack.c.l.b16 %v363
      %v1694 = vunpack.c.h.b16 %v363
      %v1695 = vunpack.c.l.b16 %v364
      %v1696 = vunpack.c.h.b16 %v364
      %v1697 = vunpack.c.l.b16 %v365
      %v1698 = vunpack.c.h.b16 %v365
      %v1699 = vunpack.c.l.b16 %v366
      %v1700 = vunpack.c.h.b16 %v366
      %v1701 = vunpack.c.l.b16 %v367
      %v1702 = vunpack.c.h.b16 %v367
      %v1703 = vunpack.c.l.b16 %v368
      %v1704 = vunpack.c.h.b16 %v368
      %v1705 = vunpack.c.l.b16 %v369
      %v1706 = vunpack.c.h.b16 %v369
      %v1707 = vunpack.c.l.b16 %v370
      %v1708 = vunpack.c.h.b16 %v370
      %v1709 = vunpack.c.l.b16 %v371
      %v1710 = vunpack.c.h.b16 %v371
      %v1711 = vunpack.c.l.b16 %v372
      %v1712 = vunpack.c.h.b16 %v372
      %v1713 = vunpack.c.l.b16 %v373
      %v1714 = vunpack.c.h.b16 %v373
      %v1715 = vunpack.c.l.b16 %v374
      %v1716 = vunpack.c.h.b16 %v374
      %v1717 = vunpack.c.l.b16 %v375
      %v1718 = vunpack.c.h.b16 %v375
      %v1719 = vunpack.c.l.b16 %v376
      %v1720 = vunpack.c.h.b16 %v376
      %v1721 = vunpack.c.l.b16 %v377
      %v1722 = vunpack.c.h.b16 %v377
      %v1723 = vunpack.c.l.b16 %v378
      %v1724 = vunpack.c.h.b16 %v378
      %v1725 = vunpack.c.l.b16 %v379
      %v1726 = vunpack.c.h.b16 %v379
      %v1727 = vunpack.c.l.b16 %v380
      %v1728 = vunpack.c.h.b16 %v380
      %v1729 = vunpack.c.l.b16 %v381
      %v1730 = vunpack.c.h.b16 %v381
      %v1731 = vunpack.c.l.b16 %v382
      %v1732 = vunpack.c.h.b16 %v382
      %v1733 = vunpack.c.l.b16 %v383
      %v1734 = vunpack.c.h.b16 %v383
      %v1735 = vunpack.c.l.b16 %v384
      %v1736 = vunpack.c.h.b16 %v384
      %v1737 = vunpack.c.l.b16 %v385
      %v1738 = vunpack.c.h.b16 %v385
      %v1739 = vunpack.c.l.b16 %v386
      %v1740 = vunpack.c.h.b16 %v386
      %v1741 = vunpack.c.l.b16 %v387
      %v1742 = vunpack.c.h.b16 %v387
      %v1743 = vunpack.c.l.b16 %v388
      %v1744 = vunpack.c.h.b16 %v388
      %v1745 = vunpack.c.l.b16 %v389
      %v1746 = vunpack.c.h.b16 %v389
      %v1747 = vunpack.c.l.b16 %v390
      %v1748 = vunpack.c.h.b16 %v390
      %v1749 = vunpack.c.l.b16 %v391
      %v1750 = vunpack.c.h.b16 %v391
      %v1751 = vunpack.c.l.b16 %v392
      %v1752 = vunpack.c.h.b16 %v392
      %v1753 = vunpack.c.l.b16 %v393
      %v1754 = vunpack.c.h.b16 %v393
      %v1755 = vunpack.c.l.b16 %v394
      %v1756 = vunpack.c.h.b16 %v394
      %v1757 = vunpack.c.l.b16 %v395
      %v1758 = vunpack.c.h.b16 %v395
      %v1759 = vunpack.c.l.b16 %v396
      %v1760 = vunpack.c.h.b16 %v396
      %v1761 = vunpack.c.l.b16 %v397
      %v1762 = vunpack.c.h.b16 %v397
      %v1763 = vunpack.c.l.b16 %v398
      %v1764 = vunpack.c.h.b16 %v398
      %v1765 = vunpack.c.l.b16 %v399
      %v1766 = vunpack.c.h.b16 %v399
      %v1767 = vunpack.c.l.b16 %v400
      %v1768 = vunpack.c.h.b16 %v400
      %v1769 = vunpack.c.l.b16 %v401
      %v1770 = vunpack.c.h.b16 %v401
      %v1771 = vunpack.c.l.b16 %v402
      %v1772 = vunpack.c.h.b16 %v402
      %v1773 = vunpack.c.l.b16 %v403
      %v1774 = vunpack.c.h.b16 %v403
      %v1775 = vunpack.c.l.b16 %v404
      %v1776 = vunpack.c.h.b16 %v404
      %v1777 = vunpack.c.l.b16 %v405
      %v1778 = vunpack.c.h.b16 %v405
      %v1779 = vunpack.c.l.b16 %v406
      %v1780 = vunpack.c.h.b16 %v406
      %v1781 = vunpack.c.l.b16 %v407
      %v1782 = vunpack.c.h.b16 %v407
      %v1783 = vunpack.c.l.b16 %v408
      %v1784 = vunpack.c.h.b16 %v408
      %v1785 = vunpack.c.l.b16 %v409
      %v1786 = vunpack.c.h.b16 %v409
      %v1787 = vunpack.c.l.b16 %v410
      %v1788 = vunpack.c.h.b16 %v410
      %v1789 = vunpack.c.l.b16 %v411
      %v1790 = vunpack.c.h.b16 %v411
      %v1791 = vunpack.c.l.b16 %v412
      %v1792 = vunpack.c.h.b16 %v412
      %v1793 = vunpack.c.l.b16 %v413
      %v1794 = vunpack.c.h.b16 %v413
      %v1795 = vunpack.c.l.b16 %v414
      %v1796 = vunpack.c.h.b16 %v414
      %v1797 = vunpack.c.l.b16 %v415
      %v1798 = vunpack.c.h.b16 %v415
      %v1799 = vunpack.c.l.b16 %v416
      %v1800 = vunpack.c.h.b16 %v416
      %v1801 = vunpack.c.l.b16 %v417
      %v1802 = vunpack.c.h.b16 %v417
      %v1803 = vunpack.c.l.b16 %v418
      %v1804 = vunpack.c.h.b16 %v418
      %v1805 = vunpack.c.l.b16 %v419
      %v1806 = vunpack.c.h.b16 %v419
      %v1807 = vunpack.c.l.b16 %v420
      %v1808 = vunpack.c.h.b16 %v420
      %v1809 = vunpack.c.l.b16 %v421
      %v1810 = vunpack.c.h.b16 %v421
      %v1811 = vunpack.c.l.b16 %v422
      %v1812 = vunpack.c.h.b16 %v422
      %v1813 = vunpack.c.l.b16 %v423
      %v1814 = vunpack.c.h.b16 %v423
      %v1815 = vunpack.c.l.b16 %v424
      %v1816 = vunpack.c.h.b16 %v424
      %v1817 = vunpack.c.l.b16 %v425
      %v1818 = vunpack.c.h.b16 %v425
      %v1819 = vunpack.c.l.b16 %v426
      %v1820 = vunpack.c.h.b16 %v426
      %v1821 = vpack.c.b16 %v1569, %v1565
      %v1822 = vpack.c.b16 %v1570, %v1566
      %v1823 = vpack.c.b16 %v1571, %v1567
      %v1824 = vpack.c.b16 %v1572, %v1568
      %v1825 = vpack.c.b16 %v1577, %v1573
      %v1826 = vpack.c.b16 %v1578, %v1574
      %v1827 = vpack.c.b16 %v1579, %v1575
      %v1828 = vpack.c.b16 %v1580, %v1576
      %v1829 = vpack.c.b16 %v1585, %v1581
      %v1830 = vpack.c.b16 %v1586, %v1582
      %v1831 = vpack.c.b16 %v1587, %v1583
      %v1832 = vpack.c.b16 %v1588, %v1584
      %v1833 = vpack.c.b16 %v1593, %v1589
      %v1834 = vpack.c.b16 %v1594, %v1590
      %v1835 = vpack.c.b16 %v1595, %v1591
      %v1836 = vpack.c.b16 %v1596, %v1592
      %v1837 = vpack.c.b16 %v1601, %v1597
      %v1838 = vpack.c.b16 %v1602, %v1598
      %v1839 = vpack.c.b16 %v1603, %v1599
      %v1840 = vpack.c.b16 %v1604, %v1600
      %v1841 = vpack.c.b16 %v1609, %v1605
      %v1842 = vpack.c.b16 %v1610, %v1606
      %v1843 = vpack.c.b16 %v1611, %v1607
      %v1844 = vpack.c.b16 %v1612, %v1608
      %v1845 = vpack.c.b16 %v1617, %v1613
      %v1846 = vpack.c.b16 %v1618, %v1614
      %v1847 = vpack.c.b16 %v1619, %v1615
      %v1848 = vpack.c.b16 %v1620, %v1616
      %v1849 = vpack.c.b16 %v1625, %v1621
      %v1850 = vpack.c.b16 %v1626, %v1622
      %v1851 = vpack.c.b16 %v1627, %v1623
      %v1852 = vpack.c.b16 %v1628, %v1624
      %v1853 = vpack.c.b16 %v1633, %v1629
      %v1854 = vpack.c.b16 %v1634, %v1630
      %v1855 = vpack.c.b16 %v1635, %v1631
      %v1856 = vpack.c.b16 %v1636, %v1632
      %v1857 = vpack.c.b16 %v1641, %v1637
      %v1858 = vpack.c.b16 %v1642, %v1638
      %v1859 = vpack.c.b16 %v1643, %v1639
      %v1860 = vpack.c.b16 %v1644, %v1640
      %v1861 = vpack.c.b16 %v1649, %v1645
      %v1862 = vpack.c.b16 %v1650, %v1646
      %v1863 = vpack.c.b16 %v1651, %v1647
      %v1864 = vpack.c.b16 %v1652, %v1648
      %v1865 = vpack.c.b16 %v1657, %v1653
      %v1866 = vpack.c.b16 %v1658, %v1654
      %v1867 = vpack.c.b16 %v1659, %v1655
      %v1868 = vpack.c.b16 %v1660, %v1656
      %v1869 = vpack.c.b16 %v1665, %v1661
      %v1870 = vpack.c.b16 %v1666, %v1662
      %v1871 = vpack.c.b16 %v1667, %v1663
      %v1872 = vpack.c.b16 %v1668, %v1664
      %v1873 = vpack.c.b16 %v1673, %v1669
      %v1874 = vpack.c.b16 %v1674, %v1670
      %v1875 = vpack.c.b16 %v1675, %v1671
      %v1876 = vpack.c.b16 %v1676, %v1672
      %v1877 = vpack.c.b16 %v1681, %v1677
      %v1878 = vpack.c.b16 %v1682, %v1678
      %v1879 = vpack.c.b16 %v1683, %v1679
      %v1880 = vpack.c.b16 %v1684, %v1680
      %v1881 = vpack.c.b16 %v1689, %v1685
      %v1882 = vpack.c.b16 %v1690, %v1686
      %v1883 = vpack.c.b16 %v1691, %v1687
      %v1884 = vpack.c.b16 %v1692, %v1688
      %v1885 = vpack.c.b16 %v1697, %v1693
      %v1886 = vpack.c.b16 %v1698, %v1694
      %v1887 = vpack.c.b16 %v1699, %v1695
      %v1888 = vpack.c.b16 %v1700, %v1696
      %v1889 = vpack.c.b16 %v1705, %v1701
      %v1890 = vpack.c.b16 %v1706, %v1702
      %v1891 = vpack.c.b16 %v1707, %v1703
      %v1892 = vpack.c.b16 %v1708, %v1704
      %v1893 = vpack.c.b16 %v1713, %v1709
      %v1894 = vpack.c.b16 %v1714, %v1710
      %v1895 = vpack.c.b16 %v1715, %v1711
      %v1896 = vpack.c.b16 %v1716, %v1712
      %v1897 = vpack.c.b16 %v1721, %v1717
      %v1898 = vpack.c.b16 %v1722, %v1718
      %v1899 = vpack.c.b16 %v1723, %v1719
      %v1900 = vpack.c.b16 %v1724, %v1720
      %v1901 = vpack.c.b16 %v1729, %v1725
      %v1902 = vpack.c.b16 %v1730, %v1726
      %v1903 = vpack.c.b16 %v1731, %v1727
      %v1904 = vpack.c.b16 %v1732, %v1728
      %v1905 = vpack.c.b16 %v1737, %v1733
      %v1906 = vpack.c.b16 %v1738, %v1734
      %v1907 = vpack.c.b16 %v1739, %v1735
      %v1908 = vpack.c.b16 %v1740, %v1736
      %v1909 = vpack.c.b16 %v1745, %v1741
      %v1910 = vpack.c.b16 %v1746, %v1742
      %v1911 = vpack.c.b16 %v1747, %v1743
      %v1912 = vpack.c.b16 %v1748, %v1744
      %v1913 = vpack.c.b16 %v1753, %v1749
      %v1914 = vpack.c.b16 %v1754, %v1750
      %v1915 = vpack.c.b16 %v1755, %v1751
      %v1916 = vpack.c.b16 %v1756, %v1752
      %v1917 = vpack.c.b16 %v1761, %v1757
      %v1918 = vpack.c.b16 %v1762, %v1758
      %v1919 = vpack.c.b16 %v1763, %v1759
      %v1920 = vpack.c.b16 %v1764, %v1760
      %v1921 = vpack.c.b16 %v1769, %v1765
      %v1922 = vpack.c.b16 %v1770, %v1766
      %v1923 = vpack.c.b16 %v1771, %v1767
      %v1924 = vpack.c.b16 %v1772, %v1768
      %v1925 = vpack.c.b16 %v1777, %v1773
      %v1926 = vpack.c.b16 %v1778, %v1774
      %v1927 = vpack.c.b16 %v1779, %v1775
      %v1928 = vpack.c.b16 %v1780, %v1776
      %v1929 = vpack.c.b16 %v1785, %v1781
      %v1930 = vpack.c.b16 %v1786, %v1782
      %v1931 = vpack.c.b16 %v1787, %v1783
      %v1932 = vpack.c.b16 %v1788, %v1784
      %v1933 = vpack.c.b16 %v1793, %v1789
      %v1934 = vpack.c.b16 %v1794, %v1790
      %v1935 = vpack.c.b16 %v1795, %v1791
      %v1936 = vpack.c.b16 %v1796, %v1792
      %v1937 = vpack.c.b16 %v1801, %v1797
      %v1938 = vpack.c.b16 %v1802, %v1798
      %v1939 = vpack.c.b16 %v1803, %v1799
      %v1940 = vpack.c.b16 %v1804, %v1800
      %v1941 = vpack.c.b16 %v1809, %v1805
      %v1942 = vpack.c.b16 %v1810, %v1806
      %v1943 = vpack.c.b16 %v1811, %v1807
      %v1944 = vpack.c.b16 %v1812, %v1808
      %v1945 = vpack.c.b16 %v1817, %v1813
      %v1946 = vpack.c.b16 %v1818, %v1814
      %v1947 = vpack.c.b16 %v1819, %v1815
      %v1948 = vpack.c.b16 %v1820, %v1816
      %2077 = vmatprep.subr.bf16.mxu0 %v1850
      %2078 = vmatpush1.bf16.msra.mxu0 %v1849
      %2079 = vmatprep.subr.bf16.mxu0 %v1846
      %2080 = vmatpush1.bf16.msra.mxu0 %v1845
      %2081 = vmatprep.subr.bf16.mxu0 %v1842
      %2082 = vmatpush1.bf16.msra.mxu0 %v1841
      %2083 = vmatprep.subr.bf16.mxu0 %v1838
      %2084 = vmatpush1.bf16.msra.mxu0 %v1837
      %2085 = vmatprep.subr.bf16.mxu0 %v1834
      %2086 = vmatpush1.bf16.msra.mxu0 %v1833
      %2087 = vmatprep.subr.bf16.mxu0 %v1830
      %2088 = vmatpush1.bf16.msra.mxu0 %v1829
      %2089 = vmatprep.subr.bf16.mxu0 %v1826
      %2090 = vmatpush1.bf16.msra.mxu0 %v1825
      %2091 = vmatprep.subr.bf16.mxu0 %v1822
      %2092 = vmatpush1.bf16.msra.mxu0 %v1821
      %2093 = vmatprep.subr.bf16.mxu0 %v1882
      %2094 = vmatpush2.bf16.msra.mxu0 %v1881
      %2095 = vmatprep.subr.bf16.mxu0 %v1878
      %2096 = vmatpush2.bf16.msra.mxu0 %v1877
      %2097 = vmatprep.subr.bf16.mxu0 %v1874
      %2098 = vmatpush2.bf16.msra.mxu0 %v1873
      %2099 = vmatprep.subr.bf16.mxu0 %v1870
      %2100 = vmatpush2.bf16.msra.mxu0 %v1869
      %2101 = vmatprep.subr.bf16.mxu0 %v1866
      %2102 = vmatpush2.bf16.msra.mxu0 %v1865
      %2103 = vmatprep.subr.bf16.mxu0 %v1862
      %2104 = vmatpush2.bf16.msra.mxu0 %v1861
      %2105 = vmatprep.subr.bf16.mxu0 %v1858
      %2106 = vmatpush2.bf16.msra.mxu0 %v1857
      %2107 = vmatprep.subr.bf16.mxu0 %v1854
      %2108 = vmatpush2.bf16.msra.mxu0 %v1853
      %2109 = vmatprep.mubr.bf16.mxu0 %v296
      %2110 = vmatmul.mubr.bf16.gmra.mxu0 %v295
      %v2111 = vpop.f32.mrf.mxu0
      %v2112 = vadd.f32 %v1343, %v2111
      %v2113 = vpop.f32.mrf.mxu0
      %v2114 = vadd.f32 %v1345, %v2113
      %v2115 = vpop.f32.mrf.mxu0
      %v2116 = vadd.f32 %v1347, %v2115
      %v2117 = vpop.f32.mrf.mxu0
      %v2118 = vadd.f32 %v1349, %v2117
      %2119 = vdwg.mxu0
      %2120 = vmatprep.subr.bf16.mxu0 %v1914
      %2121 = vmatpush1.bf16.msra.mxu0 %v1913
      %2122 = vmatprep.subr.bf16.mxu0 %v1910
      %2123 = vmatpush1.bf16.msra.mxu0 %v1909
      %2124 = vmatprep.subr.bf16.mxu0 %v1906
      %2125 = vmatpush1.bf16.msra.mxu0 %v1905
      %2126 = vmatprep.subr.bf16.mxu0 %v1902
      %2127 = vmatpush1.bf16.msra.mxu0 %v1901
      %2128 = vmatprep.subr.bf16.mxu0 %v1898
      %2129 = vmatpush1.bf16.msra.mxu0 %v1897
      %2130 = vmatprep.subr.bf16.mxu0 %v1894
      %2131 = vmatpush1.bf16.msra.mxu0 %v1893
      %2132 = vmatprep.subr.bf16.mxu0 %v1890
      %2133 = vmatpush1.bf16.msra.mxu0 %v1889
      %2134 = vmatprep.subr.bf16.mxu0 %v1886
      %2135 = vmatpush1.bf16.msra.mxu0 %v1885
      %2136 = vmatprep.subr.bf16.mxu0 %v1946
      %2137 = vmatpush2.bf16.msra.mxu0 %v1945
      %2138 = vmatprep.subr.bf16.mxu0 %v1942
      %2139 = vmatpush2.bf16.msra.mxu0 %v1941
      %2140 = vmatprep.subr.bf16.mxu0 %v1938
      %2141 = vmatpush2.bf16.msra.mxu0 %v1937
      %2142 = vmatprep.subr.bf16.mxu0 %v1934
      %2143 = vmatpush2.bf16.msra.mxu0 %v1933
      %2144 = vmatprep.subr.bf16.mxu0 %v1930
      %2145 = vmatpush2.bf16.msra.mxu0 %v1929
      %2146 = vmatprep.subr.bf16.mxu0 %v1926
      %2147 = vmatpush2.bf16.msra.mxu0 %v1925
      %2148 = vmatprep.subr.bf16.mxu0 %v1922
      %2149 = vmatpush2.bf16.msra.mxu0 %v1921
      %2150 = vmatprep.subr.bf16.mxu0 %v1918
      %2151 = vmatpush2.bf16.msra.mxu0 %v1917
      %2152 = vmatprep.mubr.bf16.mxu0 %v298
      %2153 = vmatmul.mubr.bf16.gmra.mxu0 %v297
      %v2154 = vpop.f32.mrf.mxu0
      %v2155 = vadd.f32 %v2112, %v2154
      %v2156 = vpop.f32.mrf.mxu0
      %v2157 = vadd.f32 %v2114, %v2156
      %v2158 = vpop.f32.mrf.mxu0
      %v2159 = vadd.f32 %v2116, %v2158
      %v2160 = vpop.f32.mrf.mxu0
      %v2161 = vadd.f32 %v2118, %v2160
      %2162 = vdwg.mxu0
      %2163 = vmatprep.subr.bf16.mxu0 %v1852
      %2164 = vmatpush1.bf16.msra.mxu0 %v1851
      %2165 = vmatprep.subr.bf16.mxu0 %v1848
      %2166 = vmatpush1.bf16.msra.mxu0 %v1847
      %2167 = vmatprep.subr.bf16.mxu0 %v1844
      %2168 = vmatpush1.bf16.msra.mxu0 %v1843
      %2169 = vmatprep.subr.bf16.mxu0 %v1840
      %2170 = vmatpush1.bf16.msra.mxu0 %v1839
      %2171 = vmatprep.subr.bf16.mxu0 %v1836
      %2172 = vmatpush1.bf16.msra.mxu0 %v1835
      %2173 = vmatprep.subr.bf16.mxu0 %v1832
      %2174 = vmatpush1.bf16.msra.mxu0 %v1831
      %2175 = vmatprep.subr.bf16.mxu0 %v1828
      %2176 = vmatpush1.bf16.msra.mxu0 %v1827
      %2177 = vmatprep.subr.bf16.mxu0 %v1824
      %2178 = vmatpush1.bf16.msra.mxu0 %v1823
      %2179 = vmatprep.subr.bf16.mxu0 %v1884
      %2180 = vmatpush2.bf16.msra.mxu0 %v1883
      %2181 = vmatprep.subr.bf16.mxu0 %v1880
      %2182 = vmatpush2.bf16.msra.mxu0 %v1879
      %2183 = vmatprep.subr.bf16.mxu0 %v1876
      %2184 = vmatpush2.bf16.msra.mxu0 %v1875
      %2185 = vmatprep.subr.bf16.mxu0 %v1872
      %2186 = vmatpush2.bf16.msra.mxu0 %v1871
      %2187 = vmatprep.subr.bf16.mxu0 %v1868
      %2188 = vmatpush2.bf16.msra.mxu0 %v1867
      %2189 = vmatprep.subr.bf16.mxu0 %v1864
      %2190 = vmatpush2.bf16.msra.mxu0 %v1863
      %2191 = vmatprep.subr.bf16.mxu0 %v1860
      %2192 = vmatpush2.bf16.msra.mxu0 %v1859
      %2193 = vmatprep.subr.bf16.mxu0 %v1856
      %2194 = vmatpush2.bf16.msra.mxu0 %v1855
      %2195 = vmatprep.mubr.bf16.mxu0 %v296
      %2196 = vmatmul.mubr.bf16.gmra.mxu0 %v295
      %v2197 = vpop.f32.mrf.mxu0
      %v2198 = vadd.f32 %v1429, %v2197
      %v2199 = vpop.f32.mrf.mxu0
      %v2200 = vadd.f32 %v1431, %v2199
      %v2201 = vpop.f32.mrf.mxu0
      %v2202 = vadd.f32 %v1433, %v2201
      %v2203 = vpop.f32.mrf.mxu0
      %v2204 = vadd.f32 %v1435, %v2203
      %2205 = vdwg.mxu0
      %2206 = vmatprep.subr.bf16.mxu0 %v1916
      %2207 = vmatpush1.bf16.msra.mxu0 %v1915
      %2208 = vmatprep.subr.bf16.mxu0 %v1912
      %2209 = vmatpush1.bf16.msra.mxu0 %v1911
      %2210 = vmatprep.subr.bf16.mxu0 %v1908
      %2211 = vmatpush1.bf16.msra.mxu0 %v1907
      %2212 = vmatprep.subr.bf16.mxu0 %v1904
      %2213 = vmatpush1.bf16.msra.mxu0 %v1903
      %2214 = vmatprep.subr.bf16.mxu0 %v1900
      %2215 = vmatpush1.bf16.msra.mxu0 %v1899
      %2216 = vmatprep.subr.bf16.mxu0 %v1896
      %2217 = vmatpush1.bf16.msra.mxu0 %v1895
      %2218 = vmatprep.subr.bf16.mxu0 %v1892
      %2219 = vmatpush1.bf16.msra.mxu0 %v1891
      %2220 = vmatprep.subr.bf16.mxu0 %v1888
      %2221 = vmatpush1.bf16.msra.mxu0 %v1887
      %2222 = vmatprep.subr.bf16.mxu0 %v1948
      %2223 = vmatpush2.bf16.msra.mxu0 %v1947
      %2224 = vmatprep.subr.bf16.mxu0 %v1944
      %2225 = vmatpush2.bf16.msra.mxu0 %v1943
      %2226 = vmatprep.subr.bf16.mxu0 %v1940
      %2227 = vmatpush2.bf16.msra.mxu0 %v1939
      %2228 = vmatprep.subr.bf16.mxu0 %v1936
      %2229 = vmatpush2.bf16.msra.mxu0 %v1935
      %2230 = vmatprep.subr.bf16.mxu0 %v1932
      %2231 = vmatpush2.bf16.msra.mxu0 %v1931
      %2232 = vmatprep.subr.bf16.mxu0 %v1928
      %2233 = vmatpush2.bf16.msra.mxu0 %v1927
      %2234 = vmatprep.subr.bf16.mxu0 %v1924
      %2235 = vmatpush2.bf16.msra.mxu0 %v1923
      %2236 = vmatprep.subr.bf16.mxu0 %v1920
      %2237 = vmatpush2.bf16.msra.mxu0 %v1919
      %2238 = vmatprep.mubr.bf16.mxu0 %v298
      %2239 = vmatmul.mubr.bf16.gmra.mxu0 %v297
      %v2240 = vpop.f32.mrf.mxu0
      %v2241 = vadd.f32 %v2198, %v2240
      %v2242 = vpop.f32.mrf.mxu0
      %v2243 = vadd.f32 %v2200, %v2242
      %v2244 = vpop.f32.mrf.mxu0
      %v2245 = vadd.f32 %v2202, %v2244
      %v2246 = vpop.f32.mrf.mxu0
      %v2247 = vadd.f32 %v2204, %v2246
      %2248 = vdwg.mxu0
      %v2249 = vld [vmem:[#allocation2] sm:$0xfc]
      %v2250 = vld [vmem:[#allocation2 + $0x8] sm:$0xfc]
      %v2251 = vld [vmem:[#allocation2 + $0x10] sm:$0xfc]
      %v2252 = vld [vmem:[#allocation2 + $0x18] sm:$0xfc]
      %v2253 = vld [vmem:[#allocation2 + $0x40] sm:$0x3]
      %v2254 = vld [vmem:[#allocation2 + $0x48] sm:$0x3]
      %v2255 = vld [vmem:[#allocation2 + $0x50] sm:$0x3]
      %v2256 = vld [vmem:[#allocation2 + $0x58] sm:$0x3]
      %v2257 = vpack.c.bf16 %v291, %v2249
      %v2258 = vpack.c.bf16 %v292, %v2250
      %v2259 = vpack.c.bf16 %v293, %v2251
      %v2260 = vpack.c.bf16 %v294, %v2252
      %v2261 = vpack.c.bf16 %v2253, %v2253
      %v2262 = vpack.c.bf16 %v2254, %v2254
      %v2263 = vpack.c.bf16 %v2255, %v2255
      %v2264 = vpack.c.bf16 %v2256, %v2256
      %s2265 = scalar_lea.vmem %s1, 2048
      %v2266 = vld [vmem:[%s2265] sm:$0xff]
      %v2267 = vld [vmem:[%s2265 + $0x8] sm:$0xff]
      %v2268 = vld [vmem:[%s2265 + $0x10] sm:$0xff]
      %v2269 = vld [vmem:[%s2265 + $0x18] sm:$0xff]
      %v2270 = vld [vmem:[%s2265 + $0x20] sm:$0xff]
      %v2271 = vld [vmem:[%s2265 + $0x28] sm:$0xff]
      %v2272 = vld [vmem:[%s2265 + $0x30] sm:$0xff]
      %v2273 = vld [vmem:[%s2265 + $0x38] sm:$0xff]
      %v2274 = vld [vmem:[%s2265 + $0x40] sm:$0xff]
      %v2275 = vld [vmem:[%s2265 + $0x48] sm:$0xff]
      %v2276 = vld [vmem:[%s2265 + $0x50] sm:$0xff]
      %v2277 = vld [vmem:[%s2265 + $0x58] sm:$0xff]
      %v2278 = vld [vmem:[%s2265 + $0x60] sm:$0xff]
      %v2279 = vld [vmem:[%s2265 + $0x68] sm:$0xff]
      %v2280 = vld [vmem:[%s2265 + $0x70] sm:$0xff]
      %v2281 = vld [vmem:[%s2265 + $0x78] sm:$0xff]
      %v2282 = vld [vmem:[%s2265 + $0x80] sm:$0xff]
      %v2283 = vld [vmem:[%s2265 + $0x88] sm:$0xff]
      %v2284 = vld [vmem:[%s2265 + $0x90] sm:$0xff]
      %v2285 = vld [vmem:[%s2265 + $0x98] sm:$0xff]
      %v2286 = vld [vmem:[%s2265 + $0xa0] sm:$0xff]
      %v2287 = vld [vmem:[%s2265 + $0xa8] sm:$0xff]
      %v2288 = vld [vmem:[%s2265 + $0xb0] sm:$0xff]
      %v2289 = vld [vmem:[%s2265 + $0xb8] sm:$0xff]
      %v2290 = vld [vmem:[%s2265 + $0xc0] sm:$0xff]
      %v2291 = vld [vmem:[%s2265 + $0xc8] sm:$0xff]
      %v2292 = vld [vmem:[%s2265 + $0xd0] sm:$0xff]
      %v2293 = vld [vmem:[%s2265 + $0xd8] sm:$0xff]
      %v2294 = vld [vmem:[%s2265 + $0xe0] sm:$0xff]
      %v2295 = vld [vmem:[%s2265 + $0xe8] sm:$0xff]
      %v2296 = vld [vmem:[%s2265 + $0xf0] sm:$0xff]
      %v2297 = vld [vmem:[%s2265 + $0xf8] sm:$0xff]
      %v2298 = vld [vmem:[%s2265 + $0x100] sm:$0xff]
      %v2299 = vld [vmem:[%s2265 + $0x108] sm:$0xff]
      %v2300 = vld [vmem:[%s2265 + $0x110] sm:$0xff]
      %v2301 = vld [vmem:[%s2265 + $0x118] sm:$0xff]
      %v2302 = vld [vmem:[%s2265 + $0x120] sm:$0xff]
      %v2303 = vld [vmem:[%s2265 + $0x128] sm:$0xff]
      %v2304 = vld [vmem:[%s2265 + $0x130] sm:$0xff]
      %v2305 = vld [vmem:[%s2265 + $0x138] sm:$0xff]
      %v2306 = vld [vmem:[%s2265 + $0x140] sm:$0xff]
      %v2307 = vld [vmem:[%s2265 + $0x148] sm:$0xff]
      %v2308 = vld [vmem:[%s2265 + $0x150] sm:$0xff]
      %v2309 = vld [vmem:[%s2265 + $0x158] sm:$0xff]
      %v2310 = vld [vmem:[%s2265 + $0x160] sm:$0xff]
      %v2311 = vld [vmem:[%s2265 + $0x168] sm:$0xff]
      %v2312 = vld [vmem:[%s2265 + $0x170] sm:$0xff]
      %v2313 = vld [vmem:[%s2265 + $0x178] sm:$0xff]
      %v2314 = vld [vmem:[%s2265 + $0x180] sm:$0xff]
      %v2315 = vld [vmem:[%s2265 + $0x188] sm:$0xff]
      %v2316 = vld [vmem:[%s2265 + $0x190] sm:$0xff]
      %v2317 = vld [vmem:[%s2265 + $0x198] sm:$0xff]
      %v2318 = vld [vmem:[%s2265 + $0x1a0] sm:$0xff]
      %v2319 = vld [vmem:[%s2265 + $0x1a8] sm:$0xff]
      %v2320 = vld [vmem:[%s2265 + $0x1b0] sm:$0xff]
      %v2321 = vld [vmem:[%s2265 + $0x1b8] sm:$0xff]
      %v2322 = vld [vmem:[%s2265 + $0x1c0] sm:$0xff]
      %v2323 = vld [vmem:[%s2265 + $0x1c8] sm:$0xff]
      %v2324 = vld [vmem:[%s2265 + $0x1d0] sm:$0xff]
      %v2325 = vld [vmem:[%s2265 + $0x1d8] sm:$0xff]
      %v2326 = vld [vmem:[%s2265 + $0x1e0] sm:$0xff]
      %v2327 = vld [vmem:[%s2265 + $0x1e8] sm:$0xff]
      %v2328 = vld [vmem:[%s2265 + $0x1f0] sm:$0xff]
      %v2329 = vld [vmem:[%s2265 + $0x1f8] sm:$0xff]
      %v2330 = vld [vmem:[%s2265 + $0x200] sm:$0xff]
      %v2331 = vld [vmem:[%s2265 + $0x208] sm:$0xff]
      %v2332 = vld [vmem:[%s2265 + $0x210] sm:$0xff]
      %v2333 = vld [vmem:[%s2265 + $0x218] sm:$0xff]
      %v2334 = vld [vmem:[%s2265 + $0x220] sm:$0xff]
      %v2335 = vld [vmem:[%s2265 + $0x228] sm:$0xff]
      %v2336 = vld [vmem:[%s2265 + $0x230] sm:$0xff]
      %v2337 = vld [vmem:[%s2265 + $0x238] sm:$0xff]
      %v2338 = vld [vmem:[%s2265 + $0x240] sm:$0xff]
      %v2339 = vld [vmem:[%s2265 + $0x248] sm:$0xff]
      %v2340 = vld [vmem:[%s2265 + $0x250] sm:$0xff]
      %v2341 = vld [vmem:[%s2265 + $0x258] sm:$0xff]
      %v2342 = vld [vmem:[%s2265 + $0x260] sm:$0xff]
      %v2343 = vld [vmem:[%s2265 + $0x268] sm:$0xff]
      %v2344 = vld [vmem:[%s2265 + $0x270] sm:$0xff]
      %v2345 = vld [vmem:[%s2265 + $0x278] sm:$0xff]
      %v2346 = vld [vmem:[%s2265 + $0x280] sm:$0xff]
      %v2347 = vld [vmem:[%s2265 + $0x288] sm:$0xff]
      %v2348 = vld [vmem:[%s2265 + $0x290] sm:$0xff]
      %v2349 = vld [vmem:[%s2265 + $0x298] sm:$0xff]
      %v2350 = vld [vmem:[%s2265 + $0x2a0] sm:$0xff]
      %v2351 = vld [vmem:[%s2265 + $0x2a8] sm:$0xff]
      %v2352 = vld [vmem:[%s2265 + $0x2b0] sm:$0xff]
      %v2353 = vld [vmem:[%s2265 + $0x2b8] sm:$0xff]
      %v2354 = vld [vmem:[%s2265 + $0x2c0] sm:$0xff]
      %v2355 = vld [vmem:[%s2265 + $0x2c8] sm:$0xff]
      %v2356 = vld [vmem:[%s2265 + $0x2d0] sm:$0xff]
      %v2357 = vld [vmem:[%s2265 + $0x2d8] sm:$0xff]
      %v2358 = vld [vmem:[%s2265 + $0x2e0] sm:$0xff]
      %v2359 = vld [vmem:[%s2265 + $0x2e8] sm:$0xff]
      %v2360 = vld [vmem:[%s2265 + $0x2f0] sm:$0xff]
      %v2361 = vld [vmem:[%s2265 + $0x2f8] sm:$0xff]
      %v2362 = vld [vmem:[%s2265 + $0x300] sm:$0xff]
      %v2363 = vld [vmem:[%s2265 + $0x308] sm:$0xff]
      %v2364 = vld [vmem:[%s2265 + $0x310] sm:$0xff]
      %v2365 = vld [vmem:[%s2265 + $0x318] sm:$0xff]
      %v2366 = vld [vmem:[%s2265 + $0x320] sm:$0xff]
      %v2367 = vld [vmem:[%s2265 + $0x328] sm:$0xff]
      %v2368 = vld [vmem:[%s2265 + $0x330] sm:$0xff]
      %v2369 = vld [vmem:[%s2265 + $0x338] sm:$0xff]
      %v2370 = vld [vmem:[%s2265 + $0x340] sm:$0xff]
      %v2371 = vld [vmem:[%s2265 + $0x348] sm:$0xff]
      %v2372 = vld [vmem:[%s2265 + $0x350] sm:$0xff]
      %v2373 = vld [vmem:[%s2265 + $0x358] sm:$0xff]
      %v2374 = vld [vmem:[%s2265 + $0x360] sm:$0xff]
      %v2375 = vld [vmem:[%s2265 + $0x368] sm:$0xff]
      %v2376 = vld [vmem:[%s2265 + $0x370] sm:$0xff]
      %v2377 = vld [vmem:[%s2265 + $0x378] sm:$0xff]
      %v2378 = vld [vmem:[%s2265 + $0x380] sm:$0xff]
      %v2379 = vld [vmem:[%s2265 + $0x388] sm:$0xff]
      %v2380 = vld [vmem:[%s2265 + $0x390] sm:$0xff]
      %v2381 = vld [vmem:[%s2265 + $0x398] sm:$0xff]
      %v2382 = vld [vmem:[%s2265 + $0x3a0] sm:$0xff]
      %v2383 = vld [vmem:[%s2265 + $0x3a8] sm:$0xff]
      %v2384 = vld [vmem:[%s2265 + $0x3b0] sm:$0xff]
      %v2385 = vld [vmem:[%s2265 + $0x3b8] sm:$0xff]
      %v2386 = vld [vmem:[%s2265 + $0x3c0] sm:$0xff]
      %v2387 = vld [vmem:[%s2265 + $0x3c8] sm:$0xff]
      %v2388 = vld [vmem:[%s2265 + $0x3d0] sm:$0xff]
      %v2389 = vld [vmem:[%s2265 + $0x3d8] sm:$0xff]
      %v2390 = vld [vmem:[%s2265 + $0x3e0] sm:$0xff]
      %v2391 = vld [vmem:[%s2265 + $0x3e8] sm:$0xff]
      %v2392 = vld [vmem:[%s2265 + $0x3f0] sm:$0xff]
      %v2393 = vld [vmem:[%s2265 + $0x3f8] sm:$0xff]
      %vm2402 = vcmask 1046528
      %v2403 = vrot.slane %v2257, 1
      %v2404 = vrot.slane %v2261, 1
      %v2405 = vsel %vm2402, %v2403, %v2404
      %v2406 = vrot.slane %v2258, 1
      %v2407 = vrot.slane %v2262, 1
      %v2408 = vsel %vm2402, %v2406, %v2407
      %v2409 = vrot.slane %v2259, 1
      %v2410 = vrot.slane %v2263, 1
      %v2411 = vsel %vm2402, %v2409, %v2410
      %v2412 = vrot.slane %v2260, 1
      %v2413 = vrot.slane %v2264, 1
      %v2414 = vsel %vm2402, %v2412, %v2413
      %v2547 = vunpack.c.l.b16 %v2266
      %v2548 = vunpack.c.h.b16 %v2266
      %v2549 = vunpack.c.l.b16 %v2267
      %v2550 = vunpack.c.h.b16 %v2267
      %v2551 = vunpack.c.l.b16 %v2268
      %v2552 = vunpack.c.h.b16 %v2268
      %v2553 = vunpack.c.l.b16 %v2269
      %v2554 = vunpack.c.h.b16 %v2269
      %v2555 = vunpack.c.l.b16 %v2270
      %v2556 = vunpack.c.h.b16 %v2270
      %v2557 = vunpack.c.l.b16 %v2271
      %v2558 = vunpack.c.h.b16 %v2271
      %v2559 = vunpack.c.l.b16 %v2272
      %v2560 = vunpack.c.h.b16 %v2272
      %v2561 = vunpack.c.l.b16 %v2273
      %v2562 = vunpack.c.h.b16 %v2273
      %v2563 = vunpack.c.l.b16 %v2274
      %v2564 = vunpack.c.h.b16 %v2274
      %v2565 = vunpack.c.l.b16 %v2275
      %v2566 = vunpack.c.h.b16 %v2275
      %v2567 = vunpack.c.l.b16 %v2276
      %v2568 = vunpack.c.h.b16 %v2276
      %v2569 = vunpack.c.l.b16 %v2277
      %v2570 = vunpack.c.h.b16 %v2277
      %v2571 = vunpack.c.l.b16 %v2278
      %v2572 = vunpack.c.h.b16 %v2278
      %v2573 = vunpack.c.l.b16 %v2279
      %v2574 = vunpack.c.h.b16 %v2279
      %v2575 = vunpack.c.l.b16 %v2280
      %v2576 = vunpack.c.h.b16 %v2280
      %v2577 = vunpack.c.l.b16 %v2281
      %v2578 = vunpack.c.h.b16 %v2281
      %v2579 = vunpack.c.l.b16 %v2282
      %v2580 = vunpack.c.h.b16 %v2282
      %v2581 = vunpack.c.l.b16 %v2283
      %v2582 = vunpack.c.h.b16 %v2283
      %v2583 = vunpack.c.l.b16 %v2284
      %v2584 = vunpack.c.h.b16 %v2284
      %v2585 = vunpack.c.l.b16 %v2285
      %v2586 = vunpack.c.h.b16 %v2285
      %v2587 = vunpack.c.l.b16 %v2286
      %v2588 = vunpack.c.h.b16 %v2286
      %v2589 = vunpack.c.l.b16 %v2287
      %v2590 = vunpack.c.h.b16 %v2287
      %v2591 = vunpack.c.l.b16 %v2288
      %v2592 = vunpack.c.h.b16 %v2288
      %v2593 = vunpack.c.l.b16 %v2289
      %v2594 = vunpack.c.h.b16 %v2289
      %v2595 = vunpack.c.l.b16 %v2290
      %v2596 = vunpack.c.h.b16 %v2290
      %v2597 = vunpack.c.l.b16 %v2291
      %v2598 = vunpack.c.h.b16 %v2291
      %v2599 = vunpack.c.l.b16 %v2292
      %v2600 = vunpack.c.h.b16 %v2292
      %v2601 = vunpack.c.l.b16 %v2293
      %v2602 = vunpack.c.h.b16 %v2293
      %v2603 = vunpack.c.l.b16 %v2294
      %v2604 = vunpack.c.h.b16 %v2294
      %v2605 = vunpack.c.l.b16 %v2295
      %v2606 = vunpack.c.h.b16 %v2295
      %v2607 = vunpack.c.l.b16 %v2296
      %v2608 = vunpack.c.h.b16 %v2296
      %v2609 = vunpack.c.l.b16 %v2297
      %v2610 = vunpack.c.h.b16 %v2297
      %v2611 = vunpack.c.l.b16 %v2298
      %v2612 = vunpack.c.h.b16 %v2298
      %v2613 = vunpack.c.l.b16 %v2299
      %v2614 = vunpack.c.h.b16 %v2299
      %v2615 = vunpack.c.l.b16 %v2300
      %v2616 = vunpack.c.h.b16 %v2300
      %v2617 = vunpack.c.l.b16 %v2301
      %v2618 = vunpack.c.h.b16 %v2301
      %v2619 = vunpack.c.l.b16 %v2302
      %v2620 = vunpack.c.h.b16 %v2302
      %v2621 = vunpack.c.l.b16 %v2303
      %v2622 = vunpack.c.h.b16 %v2303
      %v2623 = vunpack.c.l.b16 %v2304
      %v2624 = vunpack.c.h.b16 %v2304
      %v2625 = vunpack.c.l.b16 %v2305
      %v2626 = vunpack.c.h.b16 %v2305
      %v2627 = vunpack.c.l.b16 %v2306
      %v2628 = vunpack.c.h.b16 %v2306
      %v2629 = vunpack.c.l.b16 %v2307
      %v2630 = vunpack.c.h.b16 %v2307
      %v2631 = vunpack.c.l.b16 %v2308
      %v2632 = vunpack.c.h.b16 %v2308
      %v2633 = vunpack.c.l.b16 %v2309
      %v2634 = vunpack.c.h.b16 %v2309
      %v2635 = vunpack.c.l.b16 %v2310
      %v2636 = vunpack.c.h.b16 %v2310
      %v2637 = vunpack.c.l.b16 %v2311
      %v2638 = vunpack.c.h.b16 %v2311
      %v2639 = vunpack.c.l.b16 %v2312
      %v2640 = vunpack.c.h.b16 %v2312
      %v2641 = vunpack.c.l.b16 %v2313
      %v2642 = vunpack.c.h.b16 %v2313
      %v2643 = vunpack.c.l.b16 %v2314
      %v2644 = vunpack.c.h.b16 %v2314
      %v2645 = vunpack.c.l.b16 %v2315
      %v2646 = vunpack.c.h.b16 %v2315
      %v2647 = vunpack.c.l.b16 %v2316
      %v2648 = vunpack.c.h.b16 %v2316
      %v2649 = vunpack.c.l.b16 %v2317
      %v2650 = vunpack.c.h.b16 %v2317
      %v2651 = vunpack.c.l.b16 %v2318
      %v2652 = vunpack.c.h.b16 %v2318
      %v2653 = vunpack.c.l.b16 %v2319
      %v2654 = vunpack.c.h.b16 %v2319
      %v2655 = vunpack.c.l.b16 %v2320
      %v2656 = vunpack.c.h.b16 %v2320
      %v2657 = vunpack.c.l.b16 %v2321
      %v2658 = vunpack.c.h.b16 %v2321
      %v2659 = vunpack.c.l.b16 %v2322
      %v2660 = vunpack.c.h.b16 %v2322
      %v2661 = vunpack.c.l.b16 %v2323
      %v2662 = vunpack.c.h.b16 %v2323
      %v2663 = vunpack.c.l.b16 %v2324
      %v2664 = vunpack.c.h.b16 %v2324
      %v2665 = vunpack.c.l.b16 %v2325
      %v2666 = vunpack.c.h.b16 %v2325
      %v2667 = vunpack.c.l.b16 %v2326
      %v2668 = vunpack.c.h.b16 %v2326
      %v2669 = vunpack.c.l.b16 %v2327
      %v2670 = vunpack.c.h.b16 %v2327
      %v2671 = vunpack.c.l.b16 %v2328
      %v2672 = vunpack.c.h.b16 %v2328
      %v2673 = vunpack.c.l.b16 %v2329
      %v2674 = vunpack.c.h.b16 %v2329
      %v2675 = vunpack.c.l.b16 %v2330
      %v2676 = vunpack.c.h.b16 %v2330
      %v2677 = vunpack.c.l.b16 %v2331
      %v2678 = vunpack.c.h.b16 %v2331
      %v2679 = vunpack.c.l.b16 %v2332
      %v2680 = vunpack.c.h.b16 %v2332
      %v2681 = vunpack.c.l.b16 %v2333
      %v2682 = vunpack.c.h.b16 %v2333
      %v2683 = vunpack.c.l.b16 %v2334
      %v2684 = vunpack.c.h.b16 %v2334
      %v2685 = vunpack.c.l.b16 %v2335
      %v2686 = vunpack.c.h.b16 %v2335
      %v2687 = vunpack.c.l.b16 %v2336
      %v2688 = vunpack.c.h.b16 %v2336
      %v2689 = vunpack.c.l.b16 %v2337
      %v2690 = vunpack.c.h.b16 %v2337
      %v2691 = vunpack.c.l.b16 %v2338
      %v2692 = vunpack.c.h.b16 %v2338
      %v2693 = vunpack.c.l.b16 %v2339
      %v2694 = vunpack.c.h.b16 %v2339
      %v2695 = vunpack.c.l.b16 %v2340
      %v2696 = vunpack.c.h.b16 %v2340
      %v2697 = vunpack.c.l.b16 %v2341
      %v2698 = vunpack.c.h.b16 %v2341
      %v2699 = vunpack.c.l.b16 %v2342
      %v2700 = vunpack.c.h.b16 %v2342
      %v2701 = vunpack.c.l.b16 %v2343
      %v2702 = vunpack.c.h.b16 %v2343
      %v2703 = vunpack.c.l.b16 %v2344
      %v2704 = vunpack.c.h.b16 %v2344
      %v2705 = vunpack.c.l.b16 %v2345
      %v2706 = vunpack.c.h.b16 %v2345
      %v2707 = vunpack.c.l.b16 %v2346
      %v2708 = vunpack.c.h.b16 %v2346
      %v2709 = vunpack.c.l.b16 %v2347
      %v2710 = vunpack.c.h.b16 %v2347
      %v2711 = vunpack.c.l.b16 %v2348
      %v2712 = vunpack.c.h.b16 %v2348
      %v2713 = vunpack.c.l.b16 %v2349
      %v2714 = vunpack.c.h.b16 %v2349
      %v2715 = vunpack.c.l.b16 %v2350
      %v2716 = vunpack.c.h.b16 %v2350
      %v2717 = vunpack.c.l.b16 %v2351
      %v2718 = vunpack.c.h.b16 %v2351
      %v2719 = vunpack.c.l.b16 %v2352
      %v2720 = vunpack.c.h.b16 %v2352
      %v2721 = vunpack.c.l.b16 %v2353
      %v2722 = vunpack.c.h.b16 %v2353
      %v2723 = vunpack.c.l.b16 %v2354
      %v2724 = vunpack.c.h.b16 %v2354
      %v2725 = vunpack.c.l.b16 %v2355
      %v2726 = vunpack.c.h.b16 %v2355
      %v2727 = vunpack.c.l.b16 %v2356
      %v2728 = vunpack.c.h.b16 %v2356
      %v2729 = vunpack.c.l.b16 %v2357
      %v2730 = vunpack.c.h.b16 %v2357
      %v2731 = vunpack.c.l.b16 %v2358
      %v2732 = vunpack.c.h.b16 %v2358
      %v2733 = vunpack.c.l.b16 %v2359
      %v2734 = vunpack.c.h.b16 %v2359
      %v2735 = vunpack.c.l.b16 %v2360
      %v2736 = vunpack.c.h.b16 %v2360
      %v2737 = vunpack.c.l.b16 %v2361
      %v2738 = vunpack.c.h.b16 %v2361
      %v2739 = vunpack.c.l.b16 %v2362
      %v2740 = vunpack.c.h.b16 %v2362
      %v2741 = vunpack.c.l.b16 %v2363
      %v2742 = vunpack.c.h.b16 %v2363
      %v2743 = vunpack.c.l.b16 %v2364
      %v2744 = vunpack.c.h.b16 %v2364
      %v2745 = vunpack.c.l.b16 %v2365
      %v2746 = vunpack.c.h.b16 %v2365
      %v2747 = vunpack.c.l.b16 %v2366
      %v2748 = vunpack.c.h.b16 %v2366
      %v2749 = vunpack.c.l.b16 %v2367
      %v2750 = vunpack.c.h.b16 %v2367
      %v2751 = vunpack.c.l.b16 %v2368
      %v2752 = vunpack.c.h.b16 %v2368
      %v2753 = vunpack.c.l.b16 %v2369
      %v2754 = vunpack.c.h.b16 %v2369
      %v2755 = vunpack.c.l.b16 %v2370
      %v2756 = vunpack.c.h.b16 %v2370
      %v2757 = vunpack.c.l.b16 %v2371
      %v2758 = vunpack.c.h.b16 %v2371
      %v2759 = vunpack.c.l.b16 %v2372
      %v2760 = vunpack.c.h.b16 %v2372
      %v2761 = vunpack.c.l.b16 %v2373
      %v2762 = vunpack.c.h.b16 %v2373
      %v2763 = vunpack.c.l.b16 %v2374
      %v2764 = vunpack.c.h.b16 %v2374
      %v2765 = vunpack.c.l.b16 %v2375
      %v2766 = vunpack.c.h.b16 %v2375
      %v2767 = vunpack.c.l.b16 %v2376
      %v2768 = vunpack.c.h.b16 %v2376
      %v2769 = vunpack.c.l.b16 %v2377
      %v2770 = vunpack.c.h.b16 %v2377
      %v2771 = vunpack.c.l.b16 %v2378
      %v2772 = vunpack.c.h.b16 %v2378
      %v2773 = vunpack.c.l.b16 %v2379
      %v2774 = vunpack.c.h.b16 %v2379
      %v2775 = vunpack.c.l.b16 %v2380
      %v2776 = vunpack.c.h.b16 %v2380
      %v2777 = vunpack.c.l.b16 %v2381
      %v2778 = vunpack.c.h.b16 %v2381
      %v2779 = vunpack.c.l.b16 %v2382
      %v2780 = vunpack.c.h.b16 %v2382
      %v2781 = vunpack.c.l.b16 %v2383
      %v2782 = vunpack.c.h.b16 %v2383
      %v2783 = vunpack.c.l.b16 %v2384
      %v2784 = vunpack.c.h.b16 %v2384
      %v2785 = vunpack.c.l.b16 %v2385
      %v2786 = vunpack.c.h.b16 %v2385
      %v2787 = vunpack.c.l.b16 %v2386
      %v2788 = vunpack.c.h.b16 %v2386
      %v2789 = vunpack.c.l.b16 %v2387
      %v2790 = vunpack.c.h.b16 %v2387
      %v2791 = vunpack.c.l.b16 %v2388
      %v2792 = vunpack.c.h.b16 %v2388
      %v2793 = vunpack.c.l.b16 %v2389
      %v2794 = vunpack.c.h.b16 %v2389
      %v2795 = vunpack.c.l.b16 %v2390
      %v2796 = vunpack.c.h.b16 %v2390
      %v2797 = vunpack.c.l.b16 %v2391
      %v2798 = vunpack.c.h.b16 %v2391
      %v2799 = vunpack.c.l.b16 %v2392
      %v2800 = vunpack.c.h.b16 %v2392
      %v2801 = vunpack.c.l.b16 %v2393
      %v2802 = vunpack.c.h.b16 %v2393
      %v2803 = vpack.c.b16 %v2551, %v2547
      %v2804 = vpack.c.b16 %v2552, %v2548
      %v2805 = vpack.c.b16 %v2553, %v2549
      %v2806 = vpack.c.b16 %v2554, %v2550
      %v2807 = vpack.c.b16 %v2559, %v2555
      %v2808 = vpack.c.b16 %v2560, %v2556
      %v2809 = vpack.c.b16 %v2561, %v2557
      %v2810 = vpack.c.b16 %v2562, %v2558
      %v2811 = vpack.c.b16 %v2567, %v2563
      %v2812 = vpack.c.b16 %v2568, %v2564
      %v2813 = vpack.c.b16 %v2569, %v2565
      %v2814 = vpack.c.b16 %v2570, %v2566
      %v2815 = vpack.c.b16 %v2575, %v2571
      %v2816 = vpack.c.b16 %v2576, %v2572
      %v2817 = vpack.c.b16 %v2577, %v2573
      %v2818 = vpack.c.b16 %v2578, %v2574
      %v2819 = vpack.c.b16 %v2583, %v2579
      %v2820 = vpack.c.b16 %v2584, %v2580
      %v2821 = vpack.c.b16 %v2585, %v2581
      %v2822 = vpack.c.b16 %v2586, %v2582
      %v2823 = vpack.c.b16 %v2591, %v2587
      %v2824 = vpack.c.b16 %v2592, %v2588
      %v2825 = vpack.c.b16 %v2593, %v2589
      %v2826 = vpack.c.b16 %v2594, %v2590
      %v2827 = vpack.c.b16 %v2599, %v2595
      %v2828 = vpack.c.b16 %v2600, %v2596
      %v2829 = vpack.c.b16 %v2601, %v2597
      %v2830 = vpack.c.b16 %v2602, %v2598
      %v2831 = vpack.c.b16 %v2607, %v2603
      %v2832 = vpack.c.b16 %v2608, %v2604
      %v2833 = vpack.c.b16 %v2609, %v2605
      %v2834 = vpack.c.b16 %v2610, %v2606
      %v2835 = vpack.c.b16 %v2615, %v2611
      %v2836 = vpack.c.b16 %v2616, %v2612
      %v2837 = vpack.c.b16 %v2617, %v2613
      %v2838 = vpack.c.b16 %v2618, %v2614
      %v2839 = vpack.c.b16 %v2623, %v2619
      %v2840 = vpack.c.b16 %v2624, %v2620
      %v2841 = vpack.c.b16 %v2625, %v2621
      %v2842 = vpack.c.b16 %v2626, %v2622
      %v2843 = vpack.c.b16 %v2631, %v2627
      %v2844 = vpack.c.b16 %v2632, %v2628
      %v2845 = vpack.c.b16 %v2633, %v2629
      %v2846 = vpack.c.b16 %v2634, %v2630
      %v2847 = vpack.c.b16 %v2639, %v2635
      %v2848 = vpack.c.b16 %v2640, %v2636
      %v2849 = vpack.c.b16 %v2641, %v2637
      %v2850 = vpack.c.b16 %v2642, %v2638
      %v2851 = vpack.c.b16 %v2647, %v2643
      %v2852 = vpack.c.b16 %v2648, %v2644
      %v2853 = vpack.c.b16 %v2649, %v2645
      %v2854 = vpack.c.b16 %v2650, %v2646
      %v2855 = vpack.c.b16 %v2655, %v2651
      %v2856 = vpack.c.b16 %v2656, %v2652
      %v2857 = vpack.c.b16 %v2657, %v2653
      %v2858 = vpack.c.b16 %v2658, %v2654
      %v2859 = vpack.c.b16 %v2663, %v2659
      %v2860 = vpack.c.b16 %v2664, %v2660
      %v2861 = vpack.c.b16 %v2665, %v2661
      %v2862 = vpack.c.b16 %v2666, %v2662
      %v2863 = vpack.c.b16 %v2671, %v2667
      %v2864 = vpack.c.b16 %v2672, %v2668
      %v2865 = vpack.c.b16 %v2673, %v2669
      %v2866 = vpack.c.b16 %v2674, %v2670
      %v2867 = vpack.c.b16 %v2679, %v2675
      %v2868 = vpack.c.b16 %v2680, %v2676
      %v2869 = vpack.c.b16 %v2681, %v2677
      %v2870 = vpack.c.b16 %v2682, %v2678
      %v2871 = vpack.c.b16 %v2687, %v2683
      %v2872 = vpack.c.b16 %v2688, %v2684
      %v2873 = vpack.c.b16 %v2689, %v2685
      %v2874 = vpack.c.b16 %v2690, %v2686
      %v2875 = vpack.c.b16 %v2695, %v2691
      %v2876 = vpack.c.b16 %v2696, %v2692
      %v2877 = vpack.c.b16 %v2697, %v2693
      %v2878 = vpack.c.b16 %v2698, %v2694
      %v2879 = vpack.c.b16 %v2703, %v2699
      %v2880 = vpack.c.b16 %v2704, %v2700
      %v2881 = vpack.c.b16 %v2705, %v2701
      %v2882 = vpack.c.b16 %v2706, %v2702
      %v2883 = vpack.c.b16 %v2711, %v2707
      %v2884 = vpack.c.b16 %v2712, %v2708
      %v2885 = vpack.c.b16 %v2713, %v2709
      %v2886 = vpack.c.b16 %v2714, %v2710
      %v2887 = vpack.c.b16 %v2719, %v2715
      %v2888 = vpack.c.b16 %v2720, %v2716
      %v2889 = vpack.c.b16 %v2721, %v2717
      %v2890 = vpack.c.b16 %v2722, %v2718
      %v2891 = vpack.c.b16 %v2727, %v2723
      %v2892 = vpack.c.b16 %v2728, %v2724
      %v2893 = vpack.c.b16 %v2729, %v2725
      %v2894 = vpack.c.b16 %v2730, %v2726
      %v2895 = vpack.c.b16 %v2735, %v2731
      %v2896 = vpack.c.b16 %v2736, %v2732
      %v2897 = vpack.c.b16 %v2737, %v2733
      %v2898 = vpack.c.b16 %v2738, %v2734
      %v2899 = vpack.c.b16 %v2743, %v2739
      %v2900 = vpack.c.b16 %v2744, %v2740
      %v2901 = vpack.c.b16 %v2745, %v2741
      %v2902 = vpack.c.b16 %v2746, %v2742
      %v2903 = vpack.c.b16 %v2751, %v2747
      %v2904 = vpack.c.b16 %v2752, %v2748
      %v2905 = vpack.c.b16 %v2753, %v2749
      %v2906 = vpack.c.b16 %v2754, %v2750
      %v2907 = vpack.c.b16 %v2759, %v2755
      %v2908 = vpack.c.b16 %v2760, %v2756
      %v2909 = vpack.c.b16 %v2761, %v2757
      %v2910 = vpack.c.b16 %v2762, %v2758
      %v2911 = vpack.c.b16 %v2767, %v2763
      %v2912 = vpack.c.b16 %v2768, %v2764
      %v2913 = vpack.c.b16 %v2769, %v2765
      %v2914 = vpack.c.b16 %v2770, %v2766
      %v2915 = vpack.c.b16 %v2775, %v2771
      %v2916 = vpack.c.b16 %v2776, %v2772
      %v2917 = vpack.c.b16 %v2777, %v2773
      %v2918 = vpack.c.b16 %v2778, %v2774
      %v2919 = vpack.c.b16 %v2783, %v2779
      %v2920 = vpack.c.b16 %v2784, %v2780
      %v2921 = vpack.c.b16 %v2785, %v2781
      %v2922 = vpack.c.b16 %v2786, %v2782
      %v2923 = vpack.c.b16 %v2791, %v2787
      %v2924 = vpack.c.b16 %v2792, %v2788
      %v2925 = vpack.c.b16 %v2793, %v2789
      %v2926 = vpack.c.b16 %v2794, %v2790
      %v2927 = vpack.c.b16 %v2799, %v2795
      %v2928 = vpack.c.b16 %v2800, %v2796
      %v2929 = vpack.c.b16 %v2801, %v2797
      %v2930 = vpack.c.b16 %v2802, %v2798
      %3059 = vmatprep.subr.bf16.mxu0 %v2832
      %3060 = vmatpush1.bf16.msra.mxu0 %v2831
      %3061 = vmatprep.subr.bf16.mxu0 %v2828
      %3062 = vmatpush1.bf16.msra.mxu0 %v2827
      %3063 = vmatprep.subr.bf16.mxu0 %v2824
      %3064 = vmatpush1.bf16.msra.mxu0 %v2823
      %3065 = vmatprep.subr.bf16.mxu0 %v2820
      %3066 = vmatpush1.bf16.msra.mxu0 %v2819
      %3067 = vmatprep.subr.bf16.mxu0 %v2816
      %3068 = vmatpush1.bf16.msra.mxu0 %v2815
      %3069 = vmatprep.subr.bf16.mxu0 %v2812
      %3070 = vmatpush1.bf16.msra.mxu0 %v2811
      %3071 = vmatprep.subr.bf16.mxu0 %v2808
      %3072 = vmatpush1.bf16.msra.mxu0 %v2807
      %3073 = vmatprep.subr.bf16.mxu0 %v2804
      %3074 = vmatpush1.bf16.msra.mxu0 %v2803
      %3075 = vmatprep.subr.bf16.mxu0 %v2864
      %3076 = vmatpush2.bf16.msra.mxu0 %v2863
      %3077 = vmatprep.subr.bf16.mxu0 %v2860
      %3078 = vmatpush2.bf16.msra.mxu0 %v2859
      %3079 = vmatprep.subr.bf16.mxu0 %v2856
      %3080 = vmatpush2.bf16.msra.mxu0 %v2855
      %3081 = vmatprep.subr.bf16.mxu0 %v2852
      %3082 = vmatpush2.bf16.msra.mxu0 %v2851
      %3083 = vmatprep.subr.bf16.mxu0 %v2848
      %3084 = vmatpush2.bf16.msra.mxu0 %v2847
      %3085 = vmatprep.subr.bf16.mxu0 %v2844
      %3086 = vmatpush2.bf16.msra.mxu0 %v2843
      %3087 = vmatprep.subr.bf16.mxu0 %v2840
      %3088 = vmatpush2.bf16.msra.mxu0 %v2839
      %3089 = vmatprep.subr.bf16.mxu0 %v2836
      %3090 = vmatpush2.bf16.msra.mxu0 %v2835
      %3091 = vmatprep.mubr.bf16.mxu0 %v2408
      %3092 = vmatmul.mubr.bf16.gmra.mxu0 %v2405
      %v3093 = vpop.f32.mrf.mxu0
      %v3094 = vadd.f32 0.0, %v3093
      %v3095 = vpop.f32.mrf.mxu0
      %v3096 = vadd.f32 0.0, %v3095
      %v3097 = vpop.f32.mrf.mxu0
      %v3098 = vadd.f32 0.0, %v3097
      %v3099 = vpop.f32.mrf.mxu0
      %v3100 = vadd.f32 0.0, %v3099
      %3101 = vdwg.mxu0
      %3102 = vmatprep.subr.bf16.mxu0 %v2896
      %3103 = vmatpush1.bf16.msra.mxu0 %v2895
      %3104 = vmatprep.subr.bf16.mxu0 %v2892
      %3105 = vmatpush1.bf16.msra.mxu0 %v2891
      %3106 = vmatprep.subr.bf16.mxu0 %v2888
      %3107 = vmatpush1.bf16.msra.mxu0 %v2887
      %3108 = vmatprep.subr.bf16.mxu0 %v2884
      %3109 = vmatpush1.bf16.msra.mxu0 %v2883
      %3110 = vmatprep.subr.bf16.mxu0 %v2880
      %3111 = vmatpush1.bf16.msra.mxu0 %v2879
      %3112 = vmatprep.subr.bf16.mxu0 %v2876
      %3113 = vmatpush1.bf16.msra.mxu0 %v2875
      %3114 = vmatprep.subr.bf16.mxu0 %v2872
      %3115 = vmatpush1.bf16.msra.mxu0 %v2871
      %3116 = vmatprep.subr.bf16.mxu0 %v2868
      %3117 = vmatpush1.bf16.msra.mxu0 %v2867
      %3118 = vmatprep.subr.bf16.mxu0 %v2928
      %3119 = vmatpush2.bf16.msra.mxu0 %v2927
      %3120 = vmatprep.subr.bf16.mxu0 %v2924
      %3121 = vmatpush2.bf16.msra.mxu0 %v2923
      %3122 = vmatprep.subr.bf16.mxu0 %v2920
      %3123 = vmatpush2.bf16.msra.mxu0 %v2919
      %3124 = vmatprep.subr.bf16.mxu0 %v2916
      %3125 = vmatpush2.bf16.msra.mxu0 %v2915
      %3126 = vmatprep.subr.bf16.mxu0 %v2912
      %3127 = vmatpush2.bf16.msra.mxu0 %v2911
      %3128 = vmatprep.subr.bf16.mxu0 %v2908
      %3129 = vmatpush2.bf16.msra.mxu0 %v2907
      %3130 = vmatprep.subr.bf16.mxu0 %v2904
      %3131 = vmatpush2.bf16.msra.mxu0 %v2903
      %3132 = vmatprep.subr.bf16.mxu0 %v2900
      %3133 = vmatpush2.bf16.msra.mxu0 %v2899
      %3134 = vmatprep.mubr.bf16.mxu0 %v2414
      %3135 = vmatmul.mubr.bf16.gmra.mxu0 %v2411
      %v3136 = vpop.f32.mrf.mxu0
      %v3137 = vadd.f32 %v3094, %v3136
      %v3138 = vpop.f32.mrf.mxu0
      %v3139 = vadd.f32 %v3096, %v3138
      %v3140 = vpop.f32.mrf.mxu0
      %v3141 = vadd.f32 %v3098, %v3140
      %v3142 = vpop.f32.mrf.mxu0
      %v3143 = vadd.f32 %v3100, %v3142
      %3144 = vdwg.mxu0
      %3145 = vmatprep.subr.bf16.mxu0 %v2834
      %3146 = vmatpush1.bf16.msra.mxu0 %v2833
      %3147 = vmatprep.subr.bf16.mxu0 %v2830
      %3148 = vmatpush1.bf16.msra.mxu0 %v2829
      %3149 = vmatprep.subr.bf16.mxu0 %v2826
      %3150 = vmatpush1.bf16.msra.mxu0 %v2825
      %3151 = vmatprep.subr.bf16.mxu0 %v2822
      %3152 = vmatpush1.bf16.msra.mxu0 %v2821
      %3153 = vmatprep.subr.bf16.mxu0 %v2818
      %3154 = vmatpush1.bf16.msra.mxu0 %v2817
      %3155 = vmatprep.subr.bf16.mxu0 %v2814
      %3156 = vmatpush1.bf16.msra.mxu0 %v2813
      %3157 = vmatprep.subr.bf16.mxu0 %v2810
      %3158 = vmatpush1.bf16.msra.mxu0 %v2809
      %3159 = vmatprep.subr.bf16.mxu0 %v2806
      %3160 = vmatpush1.bf16.msra.mxu0 %v2805
      %3161 = vmatprep.subr.bf16.mxu0 %v2866
      %3162 = vmatpush2.bf16.msra.mxu0 %v2865
      %3163 = vmatprep.subr.bf16.mxu0 %v2862
      %3164 = vmatpush2.bf16.msra.mxu0 %v2861
      %3165 = vmatprep.subr.bf16.mxu0 %v2858
      %3166 = vmatpush2.bf16.msra.mxu0 %v2857
      %3167 = vmatprep.subr.bf16.mxu0 %v2854
      %3168 = vmatpush2.bf16.msra.mxu0 %v2853
      %3169 = vmatprep.subr.bf16.mxu0 %v2850
      %3170 = vmatpush2.bf16.msra.mxu0 %v2849
      %3171 = vmatprep.subr.bf16.mxu0 %v2846
      %3172 = vmatpush2.bf16.msra.mxu0 %v2845
      %3173 = vmatprep.subr.bf16.mxu0 %v2842
      %3174 = vmatpush2.bf16.msra.mxu0 %v2841
      %3175 = vmatprep.subr.bf16.mxu0 %v2838
      %3176 = vmatpush2.bf16.msra.mxu0 %v2837
      %3177 = vmatprep.mubr.bf16.mxu0 %v2408
      %3178 = vmatmul.mubr.bf16.gmra.mxu0 %v2405
      %v3179 = vpop.f32.mrf.mxu0
      %v3180 = vadd.f32 0.0, %v3179
      %v3181 = vpop.f32.mrf.mxu0
      %v3182 = vadd.f32 0.0, %v3181
      %v3183 = vpop.f32.mrf.mxu0
      %v3184 = vadd.f32 0.0, %v3183
      %v3185 = vpop.f32.mrf.mxu0
      %v3186 = vadd.f32 0.0, %v3185
      %3187 = vdwg.mxu0
      %3188 = vmatprep.subr.bf16.mxu0 %v2898
      %3189 = vmatpush1.bf16.msra.mxu0 %v2897
      %3190 = vmatprep.subr.bf16.mxu0 %v2894
      %3191 = vmatpush1.bf16.msra.mxu0 %v2893
      %3192 = vmatprep.subr.bf16.mxu0 %v2890
      %3193 = vmatpush1.bf16.msra.mxu0 %v2889
      %3194 = vmatprep.subr.bf16.mxu0 %v2886
      %3195 = vmatpush1.bf16.msra.mxu0 %v2885
      %3196 = vmatprep.subr.bf16.mxu0 %v2882
      %3197 = vmatpush1.bf16.msra.mxu0 %v2881
      %3198 = vmatprep.subr.bf16.mxu0 %v2878
      %3199 = vmatpush1.bf16.msra.mxu0 %v2877
      %3200 = vmatprep.subr.bf16.mxu0 %v2874
      %3201 = vmatpush1.bf16.msra.mxu0 %v2873
      %3202 = vmatprep.subr.bf16.mxu0 %v2870
      %3203 = vmatpush1.bf16.msra.mxu0 %v2869
      %3204 = vmatprep.subr.bf16.mxu0 %v2930
      %3205 = vmatpush2.bf16.msra.mxu0 %v2929
      %3206 = vmatprep.subr.bf16.mxu0 %v2926
      %3207 = vmatpush2.bf16.msra.mxu0 %v2925
      %3208 = vmatprep.subr.bf16.mxu0 %v2922
      %3209 = vmatpush2.bf16.msra.mxu0 %v2921
      %3210 = vmatprep.subr.bf16.mxu0 %v2918
      %3211 = vmatpush2.bf16.msra.mxu0 %v2917
      %3212 = vmatprep.subr.bf16.mxu0 %v2914
      %3213 = vmatpush2.bf16.msra.mxu0 %v2913
      %3214 = vmatprep.subr.bf16.mxu0 %v2910
      %3215 = vmatpush2.bf16.msra.mxu0 %v2909
      %3216 = vmatprep.subr.bf16.mxu0 %v2906
      %3217 = vmatpush2.bf16.msra.mxu0 %v2905
      %3218 = vmatprep.subr.bf16.mxu0 %v2902
      %3219 = vmatpush2.bf16.msra.mxu0 %v2901
      %3220 = vmatprep.mubr.bf16.mxu0 %v2414
      %3221 = vmatmul.mubr.bf16.gmra.mxu0 %v2411
      %v3222 = vpop.f32.mrf.mxu0
      %v3223 = vadd.f32 %v3180, %v3222
      %v3224 = vpop.f32.mrf.mxu0
      %v3225 = vadd.f32 %v3182, %v3224
      %v3226 = vpop.f32.mrf.mxu0
      %v3227 = vadd.f32 %v3184, %v3226
      %v3228 = vpop.f32.mrf.mxu0
      %v3229 = vadd.f32 %v3186, %v3228
      %3230 = vdwg.mxu0
      %v3231 = vadd.f32 %v2155, %v3137
      %v3232 = vadd.f32 %v2157, %v3139
      %v3233 = vadd.f32 %v2241, %v3223
      %v3234 = vadd.f32 %v2243, %v3225
      %v3235 = vadd.f32 %v2159, %v3141
      %v3236 = vadd.f32 %v2161, %v3143
      %v3237 = vadd.f32 %v2245, %v3227
      %v3238 = vadd.f32 %v2247, %v3229
      %v3239 = vld [vmem:[%s2] sm:$0xf]
      %v3241 = vlaneseq
      %v3242 = vshrl.u32 %v3241, 7
      %v3243 = vsub.s32 0, %v3242
      %v3244 = vrot.slane %v3239, %v3243
      %v3245 = vlaneseq
      %v3246 = vshrl.u32 %v3245, 7
      %v3247 = vsub.s32 1, %v3246
      %v3248 = vrot.slane %v3239, %v3247
      %v3249 = vlaneseq
      %v3250 = vshrl.u32 %v3249, 7
      %v3251 = vsub.s32 2, %v3250
      %v3252 = vrot.slane %v3239, %v3251
      %v3253 = vlaneseq
      %v3254 = vshrl.u32 %v3253, 7
      %v3255 = vsub.s32 3, %v3254
      %v3256 = vrot.slane %v3239, %v3255
      %v3261 = vadd.f32 %v3231, %v3244
      %v3262 = vadd.f32 %v3232, %v3248
      %v3263 = vadd.f32 %v3233, %v3252
      %v3264 = vadd.f32 %v3234, %v3256
      %v3265 = vadd.f32 %v3235, %v3244
      %v3266 = vadd.f32 %v3236, %v3248
      %v3267 = vadd.f32 %v3237, %v3252
      %v3268 = vadd.f32 %v3238, %v3256
      %vm3269 = vcmp.gt.f32.partialorder %v3261, 0.0
      %vm3270 = vcmp.gt.f32.partialorder %v3262, 0.0
      %vm3271 = vcmp.gt.f32.partialorder %v3263, 0.0
      %vm3272 = vcmp.gt.f32.partialorder %v3264, 0.0
      %vm3273 = vcmp.gt.f32.partialorder %v3265, 0.0
      %vm3274 = vcmp.gt.f32.partialorder %v3266, 0.0
      %vm3275 = vcmp.gt.f32.partialorder %v3267, 0.0
      %vm3276 = vcmp.gt.f32.partialorder %v3268, 0.0
      %v3277 = vmul.f32 %v3261, 0.01
      %v3278 = vmul.f32 %v3262, 0.01
      %v3279 = vmul.f32 %v3263, 0.01
      %v3280 = vmul.f32 %v3264, 0.01
      %v3281 = vmul.f32 %v3265, 0.01
      %v3282 = vmul.f32 %v3266, 0.01
      %v3283 = vmul.f32 %v3267, 0.01
      %v3284 = vmul.f32 %v3268, 0.01
      %v3285 = vsel %vm3269, %v3261, %v3277
      %v3286 = vsel %vm3270, %v3262, %v3278
      %v3287 = vsel %vm3271, %v3263, %v3279
      %v3288 = vsel %vm3272, %v3264, %v3280
      %v3289 = vsel %vm3273, %v3265, %v3281
      %v3290 = vsel %vm3274, %v3266, %v3282
      %v3291 = vsel %vm3275, %v3267, %v3283
      %v3292 = vsel %vm3276, %v3268, %v3284
      %v3301 = vrot.slane %v3285, 7
      %v3302 = vrot.slane %v3286, 7
      %v3303 = vrot.slane %v3287, 7
      %v3304 = vrot.slane %v3288, 7
      %v3305 = vrot.slane %v3289, 7
      %v3306 = vsel %vm250, %v3301, %v3305
      %v3307 = vrot.slane %v3290, 7
      %v3308 = vsel %vm250, %v3302, %v3307
      %v3309 = vrot.slane %v3291, 7
      %v3310 = vsel %vm250, %v3303, %v3309
      %v3311 = vrot.slane %v3292, 7
      %v3312 = vsel %vm250, %v3304, %v3311
      %3325 = vst [vmem:[#allocation2] sm:$0xfe] %v3301
      %3326 = vst [vmem:[#allocation2 + $0x8] sm:$0xfe] %v3302
      %3327 = vst [vmem:[#allocation2 + $0x10] sm:$0xfe] %v3303
      %3328 = vst [vmem:[#allocation2 + $0x18] sm:$0xfe] %v3304
      %3329 = vst [vmem:[#allocation2 + $0x20] sm:$0xff] %v3306
      %3330 = vst [vmem:[#allocation2 + $0x28] sm:$0xff] %v3308
      %3331 = vst [vmem:[#allocation2 + $0x30] sm:$0xff] %v3310
      %3332 = vst [vmem:[#allocation2 + $0x38] sm:$0xff] %v3312
      %3333 = vst [vmem:[#allocation2 + $0x40] sm:$0x1] %v3305
      %3334 = vst [vmem:[#allocation2 + $0x48] sm:$0x1] %v3307
      %3335 = vst [vmem:[#allocation2 + $0x50] sm:$0x1] %v3309
      %3336 = vst [vmem:[#allocation2 + $0x58] sm:$0x1] %v3311
      %v3337 = vld [vmem:[#allocation2] sm:$0xff]
      %v3338 = vld [vmem:[#allocation2 + $0x8] sm:$0xff]
      %v3339 = vld [vmem:[#allocation2 + $0x10] sm:$0xff]
      %v3340 = vld [vmem:[#allocation2 + $0x18] sm:$0xff]
      %v3341 = vld [vmem:[#allocation2 + $0x20] sm:$0xff]
      %v3342 = vld [vmem:[#allocation2 + $0x28] sm:$0xff]
      %v3343 = vld [vmem:[#allocation2 + $0x30] sm:$0xff]
      %v3344 = vld [vmem:[#allocation2 + $0x38] sm:$0xff]
      %v3345 = vpack.c.bf16 %v3341, %v3337
      %v3346 = vpack.c.bf16 %v3342, %v3338
      %v3347 = vpack.c.bf16 %v3343, %v3339
      %v3348 = vpack.c.bf16 %v3344, %v3340
      %v3349 = vld [vmem:[%s3] sm:$0xff]
      %v3350 = vld [vmem:[%s3 + $0x8] sm:$0xff]
      %v3351 = vld [vmem:[%s3 + $0x10] sm:$0xff]
      %v3352 = vld [vmem:[%s3 + $0x18] sm:$0xff]
      %v3353 = vld [vmem:[%s3 + $0x20] sm:$0xff]
      %v3354 = vld [vmem:[%s3 + $0x28] sm:$0xff]
      %v3355 = vld [vmem:[%s3 + $0x30] sm:$0xff]
      %v3356 = vld [vmem:[%s3 + $0x38] sm:$0xff]
      %v3357 = vld [vmem:[%s3 + $0x40] sm:$0xff]
      %v3358 = vld [vmem:[%s3 + $0x48] sm:$0xff]
      %v3359 = vld [vmem:[%s3 + $0x50] sm:$0xff]
      %v3360 = vld [vmem:[%s3 + $0x58] sm:$0xff]
      %v3361 = vld [vmem:[%s3 + $0x60] sm:$0xff]
      %v3362 = vld [vmem:[%s3 + $0x68] sm:$0xff]
      %v3363 = vld [vmem:[%s3 + $0x70] sm:$0xff]
      %v3364 = vld [vmem:[%s3 + $0x78] sm:$0xff]
      %v3365 = vld [vmem:[%s3 + $0x80] sm:$0xff]
      %v3366 = vld [vmem:[%s3 + $0x88] sm:$0xff]
      %v3367 = vld [vmem:[%s3 + $0x90] sm:$0xff]
      %v3368 = vld [vmem:[%s3 + $0x98] sm:$0xff]
      %v3369 = vld [vmem:[%s3 + $0xa0] sm:$0xff]
      %v3370 = vld [vmem:[%s3 + $0xa8] sm:$0xff]
      %v3371 = vld [vmem:[%s3 + $0xb0] sm:$0xff]
      %v3372 = vld [vmem:[%s3 + $0xb8] sm:$0xff]
      %v3373 = vld [vmem:[%s3 + $0xc0] sm:$0xff]
      %v3374 = vld [vmem:[%s3 + $0xc8] sm:$0xff]
      %v3375 = vld [vmem:[%s3 + $0xd0] sm:$0xff]
      %v3376 = vld [vmem:[%s3 + $0xd8] sm:$0xff]
      %v3377 = vld [vmem:[%s3 + $0xe0] sm:$0xff]
      %v3378 = vld [vmem:[%s3 + $0xe8] sm:$0xff]
      %v3379 = vld [vmem:[%s3 + $0xf0] sm:$0xff]
      %v3380 = vld [vmem:[%s3 + $0xf8] sm:$0xff]
      %v3381 = vld [vmem:[%s3 + $0x100] sm:$0xff]
      %v3382 = vld [vmem:[%s3 + $0x108] sm:$0xff]
      %v3383 = vld [vmem:[%s3 + $0x110] sm:$0xff]
      %v3384 = vld [vmem:[%s3 + $0x118] sm:$0xff]
      %v3385 = vld [vmem:[%s3 + $0x120] sm:$0xff]
      %v3386 = vld [vmem:[%s3 + $0x128] sm:$0xff]
      %v3387 = vld [vmem:[%s3 + $0x130] sm:$0xff]
      %v3388 = vld [vmem:[%s3 + $0x138] sm:$0xff]
      %v3389 = vld [vmem:[%s3 + $0x140] sm:$0xff]
      %v3390 = vld [vmem:[%s3 + $0x148] sm:$0xff]
      %v3391 = vld [vmem:[%s3 + $0x150] sm:$0xff]
      %v3392 = vld [vmem:[%s3 + $0x158] sm:$0xff]
      %v3393 = vld [vmem:[%s3 + $0x160] sm:$0xff]
      %v3394 = vld [vmem:[%s3 + $0x168] sm:$0xff]
      %v3395 = vld [vmem:[%s3 + $0x170] sm:$0xff]
      %v3396 = vld [vmem:[%s3 + $0x178] sm:$0xff]
      %v3397 = vld [vmem:[%s3 + $0x180] sm:$0xff]
      %v3398 = vld [vmem:[%s3 + $0x188] sm:$0xff]
      %v3399 = vld [vmem:[%s3 + $0x190] sm:$0xff]
      %v3400 = vld [vmem:[%s3 + $0x198] sm:$0xff]
      %v3401 = vld [vmem:[%s3 + $0x1a0] sm:$0xff]
      %v3402 = vld [vmem:[%s3 + $0x1a8] sm:$0xff]
      %v3403 = vld [vmem:[%s3 + $0x1b0] sm:$0xff]
      %v3404 = vld [vmem:[%s3 + $0x1b8] sm:$0xff]
      %v3405 = vld [vmem:[%s3 + $0x1c0] sm:$0xff]
      %v3406 = vld [vmem:[%s3 + $0x1c8] sm:$0xff]
      %v3407 = vld [vmem:[%s3 + $0x1d0] sm:$0xff]
      %v3408 = vld [vmem:[%s3 + $0x1d8] sm:$0xff]
      %v3409 = vld [vmem:[%s3 + $0x1e0] sm:$0xff]
      %v3410 = vld [vmem:[%s3 + $0x1e8] sm:$0xff]
      %v3411 = vld [vmem:[%s3 + $0x1f0] sm:$0xff]
      %v3412 = vld [vmem:[%s3 + $0x1f8] sm:$0xff]
      %v3413 = vld [vmem:[%s3 + $0x200] sm:$0xff]
      %v3414 = vld [vmem:[%s3 + $0x208] sm:$0xff]
      %v3415 = vld [vmem:[%s3 + $0x210] sm:$0xff]
      %v3416 = vld [vmem:[%s3 + $0x218] sm:$0xff]
      %v3417 = vld [vmem:[%s3 + $0x220] sm:$0xff]
      %v3418 = vld [vmem:[%s3 + $0x228] sm:$0xff]
      %v3419 = vld [vmem:[%s3 + $0x230] sm:$0xff]
      %v3420 = vld [vmem:[%s3 + $0x238] sm:$0xff]
      %v3421 = vld [vmem:[%s3 + $0x240] sm:$0xff]
      %v3422 = vld [vmem:[%s3 + $0x248] sm:$0xff]
      %v3423 = vld [vmem:[%s3 + $0x250] sm:$0xff]
      %v3424 = vld [vmem:[%s3 + $0x258] sm:$0xff]
      %v3425 = vld [vmem:[%s3 + $0x260] sm:$0xff]
      %v3426 = vld [vmem:[%s3 + $0x268] sm:$0xff]
      %v3427 = vld [vmem:[%s3 + $0x270] sm:$0xff]
      %v3428 = vld [vmem:[%s3 + $0x278] sm:$0xff]
      %v3429 = vld [vmem:[%s3 + $0x280] sm:$0xff]
      %v3430 = vld [vmem:[%s3 + $0x288] sm:$0xff]
      %v3431 = vld [vmem:[%s3 + $0x290] sm:$0xff]
      %v3432 = vld [vmem:[%s3 + $0x298] sm:$0xff]
      %v3433 = vld [vmem:[%s3 + $0x2a0] sm:$0xff]
      %v3434 = vld [vmem:[%s3 + $0x2a8] sm:$0xff]
      %v3435 = vld [vmem:[%s3 + $0x2b0] sm:$0xff]
      %v3436 = vld [vmem:[%s3 + $0x2b8] sm:$0xff]
      %v3437 = vld [vmem:[%s3 + $0x2c0] sm:$0xff]
      %v3438 = vld [vmem:[%s3 + $0x2c8] sm:$0xff]
      %v3439 = vld [vmem:[%s3 + $0x2d0] sm:$0xff]
      %v3440 = vld [vmem:[%s3 + $0x2d8] sm:$0xff]
      %v3441 = vld [vmem:[%s3 + $0x2e0] sm:$0xff]
      %v3442 = vld [vmem:[%s3 + $0x2e8] sm:$0xff]
      %v3443 = vld [vmem:[%s3 + $0x2f0] sm:$0xff]
      %v3444 = vld [vmem:[%s3 + $0x2f8] sm:$0xff]
      %v3445 = vld [vmem:[%s3 + $0x300] sm:$0xff]
      %v3446 = vld [vmem:[%s3 + $0x308] sm:$0xff]
      %v3447 = vld [vmem:[%s3 + $0x310] sm:$0xff]
      %v3448 = vld [vmem:[%s3 + $0x318] sm:$0xff]
      %v3449 = vld [vmem:[%s3 + $0x320] sm:$0xff]
      %v3450 = vld [vmem:[%s3 + $0x328] sm:$0xff]
      %v3451 = vld [vmem:[%s3 + $0x330] sm:$0xff]
      %v3452 = vld [vmem:[%s3 + $0x338] sm:$0xff]
      %v3453 = vld [vmem:[%s3 + $0x340] sm:$0xff]
      %v3454 = vld [vmem:[%s3 + $0x348] sm:$0xff]
      %v3455 = vld [vmem:[%s3 + $0x350] sm:$0xff]
      %v3456 = vld [vmem:[%s3 + $0x358] sm:$0xff]
      %v3457 = vld [vmem:[%s3 + $0x360] sm:$0xff]
      %v3458 = vld [vmem:[%s3 + $0x368] sm:$0xff]
      %v3459 = vld [vmem:[%s3 + $0x370] sm:$0xff]
      %v3460 = vld [vmem:[%s3 + $0x378] sm:$0xff]
      %v3461 = vld [vmem:[%s3 + $0x380] sm:$0xff]
      %v3462 = vld [vmem:[%s3 + $0x388] sm:$0xff]
      %v3463 = vld [vmem:[%s3 + $0x390] sm:$0xff]
      %v3464 = vld [vmem:[%s3 + $0x398] sm:$0xff]
      %v3465 = vld [vmem:[%s3 + $0x3a0] sm:$0xff]
      %v3466 = vld [vmem:[%s3 + $0x3a8] sm:$0xff]
      %v3467 = vld [vmem:[%s3 + $0x3b0] sm:$0xff]
      %v3468 = vld [vmem:[%s3 + $0x3b8] sm:$0xff]
      %v3469 = vld [vmem:[%s3 + $0x3c0] sm:$0xff]
      %v3470 = vld [vmem:[%s3 + $0x3c8] sm:$0xff]
      %v3471 = vld [vmem:[%s3 + $0x3d0] sm:$0xff]
      %v3472 = vld [vmem:[%s3 + $0x3d8] sm:$0xff]
      %v3473 = vld [vmem:[%s3 + $0x3e0] sm:$0xff]
      %v3474 = vld [vmem:[%s3 + $0x3e8] sm:$0xff]
      %v3475 = vld [vmem:[%s3 + $0x3f0] sm:$0xff]
      %v3476 = vld [vmem:[%s3 + $0x3f8] sm:$0xff]
      %v3477 = vld [vmem:[#allocation2] sm:$0xfe]
      %v3478 = vld [vmem:[#allocation2 + $0x8] sm:$0xfe]
      %v3479 = vld [vmem:[#allocation2 + $0x10] sm:$0xfe]
      %v3480 = vld [vmem:[#allocation2 + $0x18] sm:$0xfe]
      %v3481 = vld [vmem:[#allocation2 + $0x40] sm:$0x1]
      %v3482 = vld [vmem:[#allocation2 + $0x48] sm:$0x1]
      %v3483 = vld [vmem:[#allocation2 + $0x50] sm:$0x1]
      %v3484 = vld [vmem:[#allocation2 + $0x58] sm:$0x1]
      %v3485 = vpack.c.bf16 %v3341, %v3477
      %v3486 = vpack.c.bf16 %v3342, %v3478
      %v3487 = vpack.c.bf16 %v3343, %v3479
      %v3488 = vpack.c.bf16 %v3344, %v3480
      %v3489 = vpack.c.bf16 %v3481, %v3481
      %v3490 = vpack.c.bf16 %v3482, %v3482
      %v3491 = vpack.c.bf16 %v3483, %v3483
      %v3492 = vpack.c.bf16 %v3484, %v3484
      %s3493 = scalar_lea.vmem %s3, 1024
      %v3494 = vld [vmem:[%s3493] sm:$0xff]
      %v3495 = vld [vmem:[%s3493 + $0x8] sm:$0xff]
      %v3496 = vld [vmem:[%s3493 + $0x10] sm:$0xff]
      %v3497 = vld [vmem:[%s3493 + $0x18] sm:$0xff]
      %v3498 = vld [vmem:[%s3493 + $0x20] sm:$0xff]
      %v3499 = vld [vmem:[%s3493 + $0x28] sm:$0xff]
      %v3500 = vld [vmem:[%s3493 + $0x30] sm:$0xff]
      %v3501 = vld [vmem:[%s3493 + $0x38] sm:$0xff]
      %v3502 = vld [vmem:[%s3493 + $0x40] sm:$0xff]
      %v3503 = vld [vmem:[%s3493 + $0x48] sm:$0xff]
      %v3504 = vld [vmem:[%s3493 + $0x50] sm:$0xff]
      %v3505 = vld [vmem:[%s3493 + $0x58] sm:$0xff]
      %v3506 = vld [vmem:[%s3493 + $0x60] sm:$0xff]
      %v3507 = vld [vmem:[%s3493 + $0x68] sm:$0xff]
      %v3508 = vld [vmem:[%s3493 + $0x70] sm:$0xff]
      %v3509 = vld [vmem:[%s3493 + $0x78] sm:$0xff]
      %v3510 = vld [vmem:[%s3493 + $0x80] sm:$0xff]
      %v3511 = vld [vmem:[%s3493 + $0x88] sm:$0xff]
      %v3512 = vld [vmem:[%s3493 + $0x90] sm:$0xff]
      %v3513 = vld [vmem:[%s3493 + $0x98] sm:$0xff]
      %v3514 = vld [vmem:[%s3493 + $0xa0] sm:$0xff]
      %v3515 = vld [vmem:[%s3493 + $0xa8] sm:$0xff]
      %v3516 = vld [vmem:[%s3493 + $0xb0] sm:$0xff]
      %v3517 = vld [vmem:[%s3493 + $0xb8] sm:$0xff]
      %v3518 = vld [vmem:[%s3493 + $0xc0] sm:$0xff]
      %v3519 = vld [vmem:[%s3493 + $0xc8] sm:$0xff]
      %v3520 = vld [vmem:[%s3493 + $0xd0] sm:$0xff]
      %v3521 = vld [vmem:[%s3493 + $0xd8] sm:$0xff]
      %v3522 = vld [vmem:[%s3493 + $0xe0] sm:$0xff]
      %v3523 = vld [vmem:[%s3493 + $0xe8] sm:$0xff]
      %v3524 = vld [vmem:[%s3493 + $0xf0] sm:$0xff]
      %v3525 = vld [vmem:[%s3493 + $0xf8] sm:$0xff]
      %v3526 = vld [vmem:[%s3493 + $0x100] sm:$0xff]
      %v3527 = vld [vmem:[%s3493 + $0x108] sm:$0xff]
      %v3528 = vld [vmem:[%s3493 + $0x110] sm:$0xff]
      %v3529 = vld [vmem:[%s3493 + $0x118] sm:$0xff]
      %v3530 = vld [vmem:[%s3493 + $0x120] sm:$0xff]
      %v3531 = vld [vmem:[%s3493 + $0x128] sm:$0xff]
      %v3532 = vld [vmem:[%s3493 + $0x130] sm:$0xff]
      %v3533 = vld [vmem:[%s3493 + $0x138] sm:$0xff]
      %v3534 = vld [vmem:[%s3493 + $0x140] sm:$0xff]
      %v3535 = vld [vmem:[%s3493 + $0x148] sm:$0xff]
      %v3536 = vld [vmem:[%s3493 + $0x150] sm:$0xff]
      %v3537 = vld [vmem:[%s3493 + $0x158] sm:$0xff]
      %v3538 = vld [vmem:[%s3493 + $0x160] sm:$0xff]
      %v3539 = vld [vmem:[%s3493 + $0x168] sm:$0xff]
      %v3540 = vld [vmem:[%s3493 + $0x170] sm:$0xff]
      %v3541 = vld [vmem:[%s3493 + $0x178] sm:$0xff]
      %v3542 = vld [vmem:[%s3493 + $0x180] sm:$0xff]
      %v3543 = vld [vmem:[%s3493 + $0x188] sm:$0xff]
      %v3544 = vld [vmem:[%s3493 + $0x190] sm:$0xff]
      %v3545 = vld [vmem:[%s3493 + $0x198] sm:$0xff]
      %v3546 = vld [vmem:[%s3493 + $0x1a0] sm:$0xff]
      %v3547 = vld [vmem:[%s3493 + $0x1a8] sm:$0xff]
      %v3548 = vld [vmem:[%s3493 + $0x1b0] sm:$0xff]
      %v3549 = vld [vmem:[%s3493 + $0x1b8] sm:$0xff]
      %v3550 = vld [vmem:[%s3493 + $0x1c0] sm:$0xff]
      %v3551 = vld [vmem:[%s3493 + $0x1c8] sm:$0xff]
      %v3552 = vld [vmem:[%s3493 + $0x1d0] sm:$0xff]
      %v3553 = vld [vmem:[%s3493 + $0x1d8] sm:$0xff]
      %v3554 = vld [vmem:[%s3493 + $0x1e0] sm:$0xff]
      %v3555 = vld [vmem:[%s3493 + $0x1e8] sm:$0xff]
      %v3556 = vld [vmem:[%s3493 + $0x1f0] sm:$0xff]
      %v3557 = vld [vmem:[%s3493 + $0x1f8] sm:$0xff]
      %v3558 = vld [vmem:[%s3493 + $0x200] sm:$0xff]
      %v3559 = vld [vmem:[%s3493 + $0x208] sm:$0xff]
      %v3560 = vld [vmem:[%s3493 + $0x210] sm:$0xff]
      %v3561 = vld [vmem:[%s3493 + $0x218] sm:$0xff]
      %v3562 = vld [vmem:[%s3493 + $0x220] sm:$0xff]
      %v3563 = vld [vmem:[%s3493 + $0x228] sm:$0xff]
      %v3564 = vld [vmem:[%s3493 + $0x230] sm:$0xff]
      %v3565 = vld [vmem:[%s3493 + $0x238] sm:$0xff]
      %v3566 = vld [vmem:[%s3493 + $0x240] sm:$0xff]
      %v3567 = vld [vmem:[%s3493 + $0x248] sm:$0xff]
      %v3568 = vld [vmem:[%s3493 + $0x250] sm:$0xff]
      %v3569 = vld [vmem:[%s3493 + $0x258] sm:$0xff]
      %v3570 = vld [vmem:[%s3493 + $0x260] sm:$0xff]
      %v3571 = vld [vmem:[%s3493 + $0x268] sm:$0xff]
      %v3572 = vld [vmem:[%s3493 + $0x270] sm:$0xff]
      %v3573 = vld [vmem:[%s3493 + $0x278] sm:$0xff]
      %v3574 = vld [vmem:[%s3493 + $0x280] sm:$0xff]
      %v3575 = vld [vmem:[%s3493 + $0x288] sm:$0xff]
      %v3576 = vld [vmem:[%s3493 + $0x290] sm:$0xff]
      %v3577 = vld [vmem:[%s3493 + $0x298] sm:$0xff]
      %v3578 = vld [vmem:[%s3493 + $0x2a0] sm:$0xff]
      %v3579 = vld [vmem:[%s3493 + $0x2a8] sm:$0xff]
      %v3580 = vld [vmem:[%s3493 + $0x2b0] sm:$0xff]
      %v3581 = vld [vmem:[%s3493 + $0x2b8] sm:$0xff]
      %v3582 = vld [vmem:[%s3493 + $0x2c0] sm:$0xff]
      %v3583 = vld [vmem:[%s3493 + $0x2c8] sm:$0xff]
      %v3584 = vld [vmem:[%s3493 + $0x2d0] sm:$0xff]
      %v3585 = vld [vmem:[%s3493 + $0x2d8] sm:$0xff]
      %v3586 = vld [vmem:[%s3493 + $0x2e0] sm:$0xff]
      %v3587 = vld [vmem:[%s3493 + $0x2e8] sm:$0xff]
      %v3588 = vld [vmem:[%s3493 + $0x2f0] sm:$0xff]
      %v3589 = vld [vmem:[%s3493 + $0x2f8] sm:$0xff]
      %v3590 = vld [vmem:[%s3493 + $0x300] sm:$0xff]
      %v3591 = vld [vmem:[%s3493 + $0x308] sm:$0xff]
      %v3592 = vld [vmem:[%s3493 + $0x310] sm:$0xff]
      %v3593 = vld [vmem:[%s3493 + $0x318] sm:$0xff]
      %v3594 = vld [vmem:[%s3493 + $0x320] sm:$0xff]
      %v3595 = vld [vmem:[%s3493 + $0x328] sm:$0xff]
      %v3596 = vld [vmem:[%s3493 + $0x330] sm:$0xff]
      %v3597 = vld [vmem:[%s3493 + $0x338] sm:$0xff]
      %v3598 = vld [vmem:[%s3493 + $0x340] sm:$0xff]
      %v3599 = vld [vmem:[%s3493 + $0x348] sm:$0xff]
      %v3600 = vld [vmem:[%s3493 + $0x350] sm:$0xff]
      %v3601 = vld [vmem:[%s3493 + $0x358] sm:$0xff]
      %v3602 = vld [vmem:[%s3493 + $0x360] sm:$0xff]
      %v3603 = vld [vmem:[%s3493 + $0x368] sm:$0xff]
      %v3604 = vld [vmem:[%s3493 + $0x370] sm:$0xff]
      %v3605 = vld [vmem:[%s3493 + $0x378] sm:$0xff]
      %v3606 = vld [vmem:[%s3493 + $0x380] sm:$0xff]
      %v3607 = vld [vmem:[%s3493 + $0x388] sm:$0xff]
      %v3608 = vld [vmem:[%s3493 + $0x390] sm:$0xff]
      %v3609 = vld [vmem:[%s3493 + $0x398] sm:$0xff]
      %v3610 = vld [vmem:[%s3493 + $0x3a0] sm:$0xff]
      %v3611 = vld [vmem:[%s3493 + $0x3a8] sm:$0xff]
      %v3612 = vld [vmem:[%s3493 + $0x3b0] sm:$0xff]
      %v3613 = vld [vmem:[%s3493 + $0x3b8] sm:$0xff]
      %v3614 = vld [vmem:[%s3493 + $0x3c0] sm:$0xff]
      %v3615 = vld [vmem:[%s3493 + $0x3c8] sm:$0xff]
      %v3616 = vld [vmem:[%s3493 + $0x3d0] sm:$0xff]
      %v3617 = vld [vmem:[%s3493 + $0x3d8] sm:$0xff]
      %v3618 = vld [vmem:[%s3493 + $0x3e0] sm:$0xff]
      %v3619 = vld [vmem:[%s3493 + $0x3e8] sm:$0xff]
      %v3620 = vld [vmem:[%s3493 + $0x3f0] sm:$0xff]
      %v3621 = vld [vmem:[%s3493 + $0x3f8] sm:$0xff]
      %v3623 = vshrl.u32 %v3485, 16
      %v3625 = vshll.u32 %v3485, 16
      %v3627 = vrot.slane %v3625, 1
      %v3628 = vor.u32 %v3623, %v3627
      %v3630 = vshll.u32 %v3489, 16
      %v3632 = vrot.slane %v3630, 1
      %v3633 = vsel %vm572, %v3628, %v3632
      %v3635 = vshrl.u32 %v3486, 16
      %v3637 = vshll.u32 %v3486, 16
      %v3639 = vrot.slane %v3637, 1
      %v3640 = vor.u32 %v3635, %v3639
      %v3642 = vshll.u32 %v3490, 16
      %v3644 = vrot.slane %v3642, 1
      %v3645 = vsel %vm572, %v3640, %v3644
      %v3647 = vshrl.u32 %v3487, 16
      %v3649 = vshll.u32 %v3487, 16
      %v3651 = vrot.slane %v3649, 1
      %v3652 = vor.u32 %v3647, %v3651
      %v3654 = vshll.u32 %v3491, 16
      %v3656 = vrot.slane %v3654, 1
      %v3657 = vsel %vm572, %v3652, %v3656
      %v3659 = vshrl.u32 %v3488, 16
      %v3661 = vshll.u32 %v3488, 16
      %v3663 = vrot.slane %v3661, 1
      %v3664 = vor.u32 %v3659, %v3663
      %v3666 = vshll.u32 %v3492, 16
      %v3668 = vrot.slane %v3666, 1
      %v3669 = vsel %vm572, %v3664, %v3668
      %v3802 = vunpack.c.l.b16 %v3494
      %v3803 = vunpack.c.h.b16 %v3494
      %v3804 = vunpack.c.l.b16 %v3495
      %v3805 = vunpack.c.h.b16 %v3495
      %v3806 = vunpack.c.l.b16 %v3496
      %v3807 = vunpack.c.h.b16 %v3496
      %v3808 = vunpack.c.l.b16 %v3497
      %v3809 = vunpack.c.h.b16 %v3497
      %v3810 = vunpack.c.l.b16 %v3498
      %v3811 = vunpack.c.h.b16 %v3498
      %v3812 = vunpack.c.l.b16 %v3499
      %v3813 = vunpack.c.h.b16 %v3499
      %v3814 = vunpack.c.l.b16 %v3500
      %v3815 = vunpack.c.h.b16 %v3500
      %v3816 = vunpack.c.l.b16 %v3501
      %v3817 = vunpack.c.h.b16 %v3501
      %v3818 = vunpack.c.l.b16 %v3502
      %v3819 = vunpack.c.h.b16 %v3502
      %v3820 = vunpack.c.l.b16 %v3503
      %v3821 = vunpack.c.h.b16 %v3503
      %v3822 = vunpack.c.l.b16 %v3504
      %v3823 = vunpack.c.h.b16 %v3504
      %v3824 = vunpack.c.l.b16 %v3505
      %v3825 = vunpack.c.h.b16 %v3505
      %v3826 = vunpack.c.l.b16 %v3506
      %v3827 = vunpack.c.h.b16 %v3506
      %v3828 = vunpack.c.l.b16 %v3507
      %v3829 = vunpack.c.h.b16 %v3507
      %v3830 = vunpack.c.l.b16 %v3508
      %v3831 = vunpack.c.h.b16 %v3508
      %v3832 = vunpack.c.l.b16 %v3509
      %v3833 = vunpack.c.h.b16 %v3509
      %v3834 = vunpack.c.l.b16 %v3510
      %v3835 = vunpack.c.h.b16 %v3510
      %v3836 = vunpack.c.l.b16 %v3511
      %v3837 = vunpack.c.h.b16 %v3511
      %v3838 = vunpack.c.l.b16 %v3512
      %v3839 = vunpack.c.h.b16 %v3512
      %v3840 = vunpack.c.l.b16 %v3513
      %v3841 = vunpack.c.h.b16 %v3513
      %v3842 = vunpack.c.l.b16 %v3514
      %v3843 = vunpack.c.h.b16 %v3514
      %v3844 = vunpack.c.l.b16 %v3515
      %v3845 = vunpack.c.h.b16 %v3515
      %v3846 = vunpack.c.l.b16 %v3516
      %v3847 = vunpack.c.h.b16 %v3516
      %v3848 = vunpack.c.l.b16 %v3517
      %v3849 = vunpack.c.h.b16 %v3517
      %v3850 = vunpack.c.l.b16 %v3518
      %v3851 = vunpack.c.h.b16 %v3518
      %v3852 = vunpack.c.l.b16 %v3519
      %v3853 = vunpack.c.h.b16 %v3519
      %v3854 = vunpack.c.l.b16 %v3520
      %v3855 = vunpack.c.h.b16 %v3520
      %v3856 = vunpack.c.l.b16 %v3521
      %v3857 = vunpack.c.h.b16 %v3521
      %v3858 = vunpack.c.l.b16 %v3522
      %v3859 = vunpack.c.h.b16 %v3522
      %v3860 = vunpack.c.l.b16 %v3523
      %v3861 = vunpack.c.h.b16 %v3523
      %v3862 = vunpack.c.l.b16 %v3524
      %v3863 = vunpack.c.h.b16 %v3524
      %v3864 = vunpack.c.l.b16 %v3525
      %v3865 = vunpack.c.h.b16 %v3525
      %v3866 = vunpack.c.l.b16 %v3526
      %v3867 = vunpack.c.h.b16 %v3526
      %v3868 = vunpack.c.l.b16 %v3527
      %v3869 = vunpack.c.h.b16 %v3527
      %v3870 = vunpack.c.l.b16 %v3528
      %v3871 = vunpack.c.h.b16 %v3528
      %v3872 = vunpack.c.l.b16 %v3529
      %v3873 = vunpack.c.h.b16 %v3529
      %v3874 = vunpack.c.l.b16 %v3530
      %v3875 = vunpack.c.h.b16 %v3530
      %v3876 = vunpack.c.l.b16 %v3531
      %v3877 = vunpack.c.h.b16 %v3531
      %v3878 = vunpack.c.l.b16 %v3532
      %v3879 = vunpack.c.h.b16 %v3532
      %v3880 = vunpack.c.l.b16 %v3533
      %v3881 = vunpack.c.h.b16 %v3533
      %v3882 = vunpack.c.l.b16 %v3534
      %v3883 = vunpack.c.h.b16 %v3534
      %v3884 = vunpack.c.l.b16 %v3535
      %v3885 = vunpack.c.h.b16 %v3535
      %v3886 = vunpack.c.l.b16 %v3536
      %v3887 = vunpack.c.h.b16 %v3536
      %v3888 = vunpack.c.l.b16 %v3537
      %v3889 = vunpack.c.h.b16 %v3537
      %v3890 = vunpack.c.l.b16 %v3538
      %v3891 = vunpack.c.h.b16 %v3538
      %v3892 = vunpack.c.l.b16 %v3539
      %v3893 = vunpack.c.h.b16 %v3539
      %v3894 = vunpack.c.l.b16 %v3540
      %v3895 = vunpack.c.h.b16 %v3540
      %v3896 = vunpack.c.l.b16 %v3541
      %v3897 = vunpack.c.h.b16 %v3541
      %v3898 = vunpack.c.l.b16 %v3542
      %v3899 = vunpack.c.h.b16 %v3542
      %v3900 = vunpack.c.l.b16 %v3543
      %v3901 = vunpack.c.h.b16 %v3543
      %v3902 = vunpack.c.l.b16 %v3544
      %v3903 = vunpack.c.h.b16 %v3544
      %v3904 = vunpack.c.l.b16 %v3545
      %v3905 = vunpack.c.h.b16 %v3545
      %v3906 = vunpack.c.l.b16 %v3546
      %v3907 = vunpack.c.h.b16 %v3546
      %v3908 = vunpack.c.l.b16 %v3547
      %v3909 = vunpack.c.h.b16 %v3547
      %v3910 = vunpack.c.l.b16 %v3548
      %v3911 = vunpack.c.h.b16 %v3548
      %v3912 = vunpack.c.l.b16 %v3549
      %v3913 = vunpack.c.h.b16 %v3549
      %v3914 = vunpack.c.l.b16 %v3550
      %v3915 = vunpack.c.h.b16 %v3550
      %v3916 = vunpack.c.l.b16 %v3551
      %v3917 = vunpack.c.h.b16 %v3551
      %v3918 = vunpack.c.l.b16 %v3552
      %v3919 = vunpack.c.h.b16 %v3552
      %v3920 = vunpack.c.l.b16 %v3553
      %v3921 = vunpack.c.h.b16 %v3553
      %v3922 = vunpack.c.l.b16 %v3554
      %v3923 = vunpack.c.h.b16 %v3554
      %v3924 = vunpack.c.l.b16 %v3555
      %v3925 = vunpack.c.h.b16 %v3555
      %v3926 = vunpack.c.l.b16 %v3556
      %v3927 = vunpack.c.h.b16 %v3556
      %v3928 = vunpack.c.l.b16 %v3557
      %v3929 = vunpack.c.h.b16 %v3557
      %v3930 = vunpack.c.l.b16 %v3558
      %v3931 = vunpack.c.h.b16 %v3558
      %v3932 = vunpack.c.l.b16 %v3559
      %v3933 = vunpack.c.h.b16 %v3559
      %v3934 = vunpack.c.l.b16 %v3560
      %v3935 = vunpack.c.h.b16 %v3560
      %v3936 = vunpack.c.l.b16 %v3561
      %v3937 = vunpack.c.h.b16 %v3561
      %v3938 = vunpack.c.l.b16 %v3562
      %v3939 = vunpack.c.h.b16 %v3562
      %v3940 = vunpack.c.l.b16 %v3563
      %v3941 = vunpack.c.h.b16 %v3563
      %v3942 = vunpack.c.l.b16 %v3564
      %v3943 = vunpack.c.h.b16 %v3564
      %v3944 = vunpack.c.l.b16 %v3565
      %v3945 = vunpack.c.h.b16 %v3565
      %v3946 = vunpack.c.l.b16 %v3566
      %v3947 = vunpack.c.h.b16 %v3566
      %v3948 = vunpack.c.l.b16 %v3567
      %v3949 = vunpack.c.h.b16 %v3567
      %v3950 = vunpack.c.l.b16 %v3568
      %v3951 = vunpack.c.h.b16 %v3568
      %v3952 = vunpack.c.l.b16 %v3569
      %v3953 = vunpack.c.h.b16 %v3569
      %v3954 = vunpack.c.l.b16 %v3570
      %v3955 = vunpack.c.h.b16 %v3570
      %v3956 = vunpack.c.l.b16 %v3571
      %v3957 = vunpack.c.h.b16 %v3571
      %v3958 = vunpack.c.l.b16 %v3572
      %v3959 = vunpack.c.h.b16 %v3572
      %v3960 = vunpack.c.l.b16 %v3573
      %v3961 = vunpack.c.h.b16 %v3573
      %v3962 = vunpack.c.l.b16 %v3574
      %v3963 = vunpack.c.h.b16 %v3574
      %v3964 = vunpack.c.l.b16 %v3575
      %v3965 = vunpack.c.h.b16 %v3575
      %v3966 = vunpack.c.l.b16 %v3576
      %v3967 = vunpack.c.h.b16 %v3576
      %v3968 = vunpack.c.l.b16 %v3577
      %v3969 = vunpack.c.h.b16 %v3577
      %v3970 = vunpack.c.l.b16 %v3578
      %v3971 = vunpack.c.h.b16 %v3578
      %v3972 = vunpack.c.l.b16 %v3579
      %v3973 = vunpack.c.h.b16 %v3579
      %v3974 = vunpack.c.l.b16 %v3580
      %v3975 = vunpack.c.h.b16 %v3580
      %v3976 = vunpack.c.l.b16 %v3581
      %v3977 = vunpack.c.h.b16 %v3581
      %v3978 = vunpack.c.l.b16 %v3582
      %v3979 = vunpack.c.h.b16 %v3582
      %v3980 = vunpack.c.l.b16 %v3583
      %v3981 = vunpack.c.h.b16 %v3583
      %v3982 = vunpack.c.l.b16 %v3584
      %v3983 = vunpack.c.h.b16 %v3584
      %v3984 = vunpack.c.l.b16 %v3585
      %v3985 = vunpack.c.h.b16 %v3585
      %v3986 = vunpack.c.l.b16 %v3586
      %v3987 = vunpack.c.h.b16 %v3586
      %v3988 = vunpack.c.l.b16 %v3587
      %v3989 = vunpack.c.h.b16 %v3587
      %v3990 = vunpack.c.l.b16 %v3588
      %v3991 = vunpack.c.h.b16 %v3588
      %v3992 = vunpack.c.l.b16 %v3589
      %v3993 = vunpack.c.h.b16 %v3589
      %v3994 = vunpack.c.l.b16 %v3590
      %v3995 = vunpack.c.h.b16 %v3590
      %v3996 = vunpack.c.l.b16 %v3591
      %v3997 = vunpack.c.h.b16 %v3591
      %v3998 = vunpack.c.l.b16 %v3592
      %v3999 = vunpack.c.h.b16 %v3592
      %v4000 = vunpack.c.l.b16 %v3593
      %v4001 = vunpack.c.h.b16 %v3593
      %v4002 = vunpack.c.l.b16 %v3594
      %v4003 = vunpack.c.h.b16 %v3594
      %v4004 = vunpack.c.l.b16 %v3595
      %v4005 = vunpack.c.h.b16 %v3595
      %v4006 = vunpack.c.l.b16 %v3596
      %v4007 = vunpack.c.h.b16 %v3596
      %v4008 = vunpack.c.l.b16 %v3597
      %v4009 = vunpack.c.h.b16 %v3597
      %v4010 = vunpack.c.l.b16 %v3598
      %v4011 = vunpack.c.h.b16 %v3598
      %v4012 = vunpack.c.l.b16 %v3599
      %v4013 = vunpack.c.h.b16 %v3599
      %v4014 = vunpack.c.l.b16 %v3600
      %v4015 = vunpack.c.h.b16 %v3600
      %v4016 = vunpack.c.l.b16 %v3601
      %v4017 = vunpack.c.h.b16 %v3601
      %v4018 = vunpack.c.l.b16 %v3602
      %v4019 = vunpack.c.h.b16 %v3602
      %v4020 = vunpack.c.l.b16 %v3603
      %v4021 = vunpack.c.h.b16 %v3603
      %v4022 = vunpack.c.l.b16 %v3604
      %v4023 = vunpack.c.h.b16 %v3604
      %v4024 = vunpack.c.l.b16 %v3605
      %v4025 = vunpack.c.h.b16 %v3605
      %v4026 = vunpack.c.l.b16 %v3606
      %v4027 = vunpack.c.h.b16 %v3606
      %v4028 = vunpack.c.l.b16 %v3607
      %v4029 = vunpack.c.h.b16 %v3607
      %v4030 = vunpack.c.l.b16 %v3608
      %v4031 = vunpack.c.h.b16 %v3608
      %v4032 = vunpack.c.l.b16 %v3609
      %v4033 = vunpack.c.h.b16 %v3609
      %v4034 = vunpack.c.l.b16 %v3610
      %v4035 = vunpack.c.h.b16 %v3610
      %v4036 = vunpack.c.l.b16 %v3611
      %v4037 = vunpack.c.h.b16 %v3611
      %v4038 = vunpack.c.l.b16 %v3612
      %v4039 = vunpack.c.h.b16 %v3612
      %v4040 = vunpack.c.l.b16 %v3613
      %v4041 = vunpack.c.h.b16 %v3613
      %v4042 = vunpack.c.l.b16 %v3614
      %v4043 = vunpack.c.h.b16 %v3614
      %v4044 = vunpack.c.l.b16 %v3615
      %v4045 = vunpack.c.h.b16 %v3615
      %v4046 = vunpack.c.l.b16 %v3616
      %v4047 = vunpack.c.h.b16 %v3616
      %v4048 = vunpack.c.l.b16 %v3617
      %v4049 = vunpack.c.h.b16 %v3617
      %v4050 = vunpack.c.l.b16 %v3618
      %v4051 = vunpack.c.h.b16 %v3618
      %v4052 = vunpack.c.l.b16 %v3619
      %v4053 = vunpack.c.h.b16 %v3619
      %v4054 = vunpack.c.l.b16 %v3620
      %v4055 = vunpack.c.h.b16 %v3620
      %v4056 = vunpack.c.l.b16 %v3621
      %v4057 = vunpack.c.h.b16 %v3621
      %v4058 = vpack.c.b16 %v3806, %v3802
      %v4059 = vpack.c.b16 %v3807, %v3803
      %v4060 = vpack.c.b16 %v3808, %v3804
      %v4061 = vpack.c.b16 %v3809, %v3805
      %v4062 = vpack.c.b16 %v3814, %v3810
      %v4063 = vpack.c.b16 %v3815, %v3811
      %v4064 = vpack.c.b16 %v3816, %v3812
      %v4065 = vpack.c.b16 %v3817, %v3813
      %v4066 = vpack.c.b16 %v3822, %v3818
      %v4067 = vpack.c.b16 %v3823, %v3819
      %v4068 = vpack.c.b16 %v3824, %v3820
      %v4069 = vpack.c.b16 %v3825, %v3821
      %v4070 = vpack.c.b16 %v3830, %v3826
      %v4071 = vpack.c.b16 %v3831, %v3827
      %v4072 = vpack.c.b16 %v3832, %v3828
      %v4073 = vpack.c.b16 %v3833, %v3829
      %v4074 = vpack.c.b16 %v3838, %v3834
      %v4075 = vpack.c.b16 %v3839, %v3835
      %v4076 = vpack.c.b16 %v3840, %v3836
      %v4077 = vpack.c.b16 %v3841, %v3837
      %v4078 = vpack.c.b16 %v3846, %v3842
      %v4079 = vpack.c.b16 %v3847, %v3843
      %v4080 = vpack.c.b16 %v3848, %v3844
      %v4081 = vpack.c.b16 %v3849, %v3845
      %v4082 = vpack.c.b16 %v3854, %v3850
      %v4083 = vpack.c.b16 %v3855, %v3851
      %v4084 = vpack.c.b16 %v3856, %v3852
      %v4085 = vpack.c.b16 %v3857, %v3853
      %v4086 = vpack.c.b16 %v3862, %v3858
      %v4087 = vpack.c.b16 %v3863, %v3859
      %v4088 = vpack.c.b16 %v3864, %v3860
      %v4089 = vpack.c.b16 %v3865, %v3861
      %v4090 = vpack.c.b16 %v3870, %v3866
      %v4091 = vpack.c.b16 %v3871, %v3867
      %v4092 = vpack.c.b16 %v3872, %v3868
      %v4093 = vpack.c.b16 %v3873, %v3869
      %v4094 = vpack.c.b16 %v3878, %v3874
      %v4095 = vpack.c.b16 %v3879, %v3875
      %v4096 = vpack.c.b16 %v3880, %v3876
      %v4097 = vpack.c.b16 %v3881, %v3877
      %v4098 = vpack.c.b16 %v3886, %v3882
      %v4099 = vpack.c.b16 %v3887, %v3883
      %v4100 = vpack.c.b16 %v3888, %v3884
      %v4101 = vpack.c.b16 %v3889, %v3885
      %v4102 = vpack.c.b16 %v3894, %v3890
      %v4103 = vpack.c.b16 %v3895, %v3891
      %v4104 = vpack.c.b16 %v3896, %v3892
      %v4105 = vpack.c.b16 %v3897, %v3893
      %v4106 = vpack.c.b16 %v3902, %v3898
      %v4107 = vpack.c.b16 %v3903, %v3899
      %v4108 = vpack.c.b16 %v3904, %v3900
      %v4109 = vpack.c.b16 %v3905, %v3901
      %v4110 = vpack.c.b16 %v3910, %v3906
      %v4111 = vpack.c.b16 %v3911, %v3907
      %v4112 = vpack.c.b16 %v3912, %v3908
      %v4113 = vpack.c.b16 %v3913, %v3909
      %v4114 = vpack.c.b16 %v3918, %v3914
      %v4115 = vpack.c.b16 %v3919, %v3915
      %v4116 = vpack.c.b16 %v3920, %v3916
      %v4117 = vpack.c.b16 %v3921, %v3917
      %v4118 = vpack.c.b16 %v3926, %v3922
      %v4119 = vpack.c.b16 %v3927, %v3923
      %v4120 = vpack.c.b16 %v3928, %v3924
      %v4121 = vpack.c.b16 %v3929, %v3925
      %v4122 = vpack.c.b16 %v3934, %v3930
      %v4123 = vpack.c.b16 %v3935, %v3931
      %v4124 = vpack.c.b16 %v3936, %v3932
      %v4125 = vpack.c.b16 %v3937, %v3933
      %v4126 = vpack.c.b16 %v3942, %v3938
      %v4127 = vpack.c.b16 %v3943, %v3939
      %v4128 = vpack.c.b16 %v3944, %v3940
      %v4129 = vpack.c.b16 %v3945, %v3941
      %v4130 = vpack.c.b16 %v3950, %v3946
      %v4131 = vpack.c.b16 %v3951, %v3947
      %v4132 = vpack.c.b16 %v3952, %v3948
      %v4133 = vpack.c.b16 %v3953, %v3949
      %v4134 = vpack.c.b16 %v3958, %v3954
      %v4135 = vpack.c.b16 %v3959, %v3955
      %v4136 = vpack.c.b16 %v3960, %v3956
      %v4137 = vpack.c.b16 %v3961, %v3957
      %v4138 = vpack.c.b16 %v3966, %v3962
      %v4139 = vpack.c.b16 %v3967, %v3963
      %v4140 = vpack.c.b16 %v3968, %v3964
      %v4141 = vpack.c.b16 %v3969, %v3965
      %v4142 = vpack.c.b16 %v3974, %v3970
      %v4143 = vpack.c.b16 %v3975, %v3971
      %v4144 = vpack.c.b16 %v3976, %v3972
      %v4145 = vpack.c.b16 %v3977, %v3973
      %v4146 = vpack.c.b16 %v3982, %v3978
      %v4147 = vpack.c.b16 %v3983, %v3979
      %v4148 = vpack.c.b16 %v3984, %v3980
      %v4149 = vpack.c.b16 %v3985, %v3981
      %v4150 = vpack.c.b16 %v3990, %v3986
      %v4151 = vpack.c.b16 %v3991, %v3987
      %v4152 = vpack.c.b16 %v3992, %v3988
      %v4153 = vpack.c.b16 %v3993, %v3989
      %v4154 = vpack.c.b16 %v3998, %v3994
      %v4155 = vpack.c.b16 %v3999, %v3995
      %v4156 = vpack.c.b16 %v4000, %v3996
      %v4157 = vpack.c.b16 %v4001, %v3997
      %v4158 = vpack.c.b16 %v4006, %v4002
      %v4159 = vpack.c.b16 %v4007, %v4003
      %v4160 = vpack.c.b16 %v4008, %v4004
      %v4161 = vpack.c.b16 %v4009, %v4005
      %v4162 = vpack.c.b16 %v4014, %v4010
      %v4163 = vpack.c.b16 %v4015, %v4011
      %v4164 = vpack.c.b16 %v4016, %v4012
      %v4165 = vpack.c.b16 %v4017, %v4013
      %v4166 = vpack.c.b16 %v4022, %v4018
      %v4167 = vpack.c.b16 %v4023, %v4019
      %v4168 = vpack.c.b16 %v4024, %v4020
      %v4169 = vpack.c.b16 %v4025, %v4021
      %v4170 = vpack.c.b16 %v4030, %v4026
      %v4171 = vpack.c.b16 %v4031, %v4027
      %v4172 = vpack.c.b16 %v4032, %v4028
      %v4173 = vpack.c.b16 %v4033, %v4029
      %v4174 = vpack.c.b16 %v4038, %v4034
      %v4175 = vpack.c.b16 %v4039, %v4035
      %v4176 = vpack.c.b16 %v4040, %v4036
      %v4177 = vpack.c.b16 %v4041, %v4037
      %v4178 = vpack.c.b16 %v4046, %v4042
      %v4179 = vpack.c.b16 %v4047, %v4043
      %v4180 = vpack.c.b16 %v4048, %v4044
      %v4181 = vpack.c.b16 %v4049, %v4045
      %v4182 = vpack.c.b16 %v4054, %v4050
      %v4183 = vpack.c.b16 %v4055, %v4051
      %v4184 = vpack.c.b16 %v4056, %v4052
      %v4185 = vpack.c.b16 %v4057, %v4053
      %4314 = vmatprep.subr.bf16.mxu0 %v4087
      %4315 = vmatpush1.bf16.msra.mxu0 %v4086
      %4316 = vmatprep.subr.bf16.mxu0 %v4083
      %4317 = vmatpush1.bf16.msra.mxu0 %v4082
      %4318 = vmatprep.subr.bf16.mxu0 %v4079
      %4319 = vmatpush1.bf16.msra.mxu0 %v4078
      %4320 = vmatprep.subr.bf16.mxu0 %v4075
      %4321 = vmatpush1.bf16.msra.mxu0 %v4074
      %4322 = vmatprep.subr.bf16.mxu0 %v4071
      %4323 = vmatpush1.bf16.msra.mxu0 %v4070
      %4324 = vmatprep.subr.bf16.mxu0 %v4067
      %4325 = vmatpush1.bf16.msra.mxu0 %v4066
      %4326 = vmatprep.subr.bf16.mxu0 %v4063
      %4327 = vmatpush1.bf16.msra.mxu0 %v4062
      %4328 = vmatprep.subr.bf16.mxu0 %v4059
      %4329 = vmatpush1.bf16.msra.mxu0 %v4058
      %4330 = vmatprep.subr.bf16.mxu0 %v4119
      %4331 = vmatpush2.bf16.msra.mxu0 %v4118
      %4332 = vmatprep.subr.bf16.mxu0 %v4115
      %4333 = vmatpush2.bf16.msra.mxu0 %v4114
      %4334 = vmatprep.subr.bf16.mxu0 %v4111
      %4335 = vmatpush2.bf16.msra.mxu0 %v4110
      %4336 = vmatprep.subr.bf16.mxu0 %v4107
      %4337 = vmatpush2.bf16.msra.mxu0 %v4106
      %4338 = vmatprep.subr.bf16.mxu0 %v4103
      %4339 = vmatpush2.bf16.msra.mxu0 %v4102
      %4340 = vmatprep.subr.bf16.mxu0 %v4099
      %4341 = vmatpush2.bf16.msra.mxu0 %v4098
      %4342 = vmatprep.subr.bf16.mxu0 %v4095
      %4343 = vmatpush2.bf16.msra.mxu0 %v4094
      %4344 = vmatprep.subr.bf16.mxu0 %v4091
      %4345 = vmatpush2.bf16.msra.mxu0 %v4090
      %4346 = vmatprep.mubr.bf16.mxu0 %v3645
      %4347 = vmatmul.mubr.bf16.gmra.mxu0 %v3633
      %v4348 = vpop.f32.mrf.mxu0
      %v4349 = vadd.f32 0.0, %v4348
      %v4350 = vpop.f32.mrf.mxu0
      %v4351 = vadd.f32 0.0, %v4350
      %v4352 = vpop.f32.mrf.mxu0
      %v4353 = vadd.f32 0.0, %v4352
      %v4354 = vpop.f32.mrf.mxu0
      %v4355 = vadd.f32 0.0, %v4354
      %4356 = vdwg.mxu0
      %4357 = vmatprep.subr.bf16.mxu0 %v4151
      %4358 = vmatpush1.bf16.msra.mxu0 %v4150
      %4359 = vmatprep.subr.bf16.mxu0 %v4147
      %4360 = vmatpush1.bf16.msra.mxu0 %v4146
      %4361 = vmatprep.subr.bf16.mxu0 %v4143
      %4362 = vmatpush1.bf16.msra.mxu0 %v4142
      %4363 = vmatprep.subr.bf16.mxu0 %v4139
      %4364 = vmatpush1.bf16.msra.mxu0 %v4138
      %4365 = vmatprep.subr.bf16.mxu0 %v4135
      %4366 = vmatpush1.bf16.msra.mxu0 %v4134
      %4367 = vmatprep.subr.bf16.mxu0 %v4131
      %4368 = vmatpush1.bf16.msra.mxu0 %v4130
      %4369 = vmatprep.subr.bf16.mxu0 %v4127
      %4370 = vmatpush1.bf16.msra.mxu0 %v4126
      %4371 = vmatprep.subr.bf16.mxu0 %v4123
      %4372 = vmatpush1.bf16.msra.mxu0 %v4122
      %4373 = vmatprep.subr.bf16.mxu0 %v4183
      %4374 = vmatpush2.bf16.msra.mxu0 %v4182
      %4375 = vmatprep.subr.bf16.mxu0 %v4179
      %4376 = vmatpush2.bf16.msra.mxu0 %v4178
      %4377 = vmatprep.subr.bf16.mxu0 %v4175
      %4378 = vmatpush2.bf16.msra.mxu0 %v4174
      %4379 = vmatprep.subr.bf16.mxu0 %v4171
      %4380 = vmatpush2.bf16.msra.mxu0 %v4170
      %4381 = vmatprep.subr.bf16.mxu0 %v4167
      %4382 = vmatpush2.bf16.msra.mxu0 %v4166
      %4383 = vmatprep.subr.bf16.mxu0 %v4163
      %4384 = vmatpush2.bf16.msra.mxu0 %v4162
      %4385 = vmatprep.subr.bf16.mxu0 %v4159
      %4386 = vmatpush2.bf16.msra.mxu0 %v4158
      %4387 = vmatprep.subr.bf16.mxu0 %v4155
      %4388 = vmatpush2.bf16.msra.mxu0 %v4154
      %4389 = vmatprep.mubr.bf16.mxu0 %v3669
      %4390 = vmatmul.mubr.bf16.gmra.mxu0 %v3657
      %v4391 = vpop.f32.mrf.mxu0
      %v4392 = vadd.f32 %v4349, %v4391
      %v4393 = vpop.f32.mrf.mxu0
      %v4394 = vadd.f32 %v4351, %v4393
      %v4395 = vpop.f32.mrf.mxu0
      %v4396 = vadd.f32 %v4353, %v4395
      %v4397 = vpop.f32.mrf.mxu0
      %v4398 = vadd.f32 %v4355, %v4397
      %4399 = vdwg.mxu0
      %4400 = vmatprep.subr.bf16.mxu0 %v4089
      %4401 = vmatpush1.bf16.msra.mxu0 %v4088
      %4402 = vmatprep.subr.bf16.mxu0 %v4085
      %4403 = vmatpush1.bf16.msra.mxu0 %v4084
      %4404 = vmatprep.subr.bf16.mxu0 %v4081
      %4405 = vmatpush1.bf16.msra.mxu0 %v4080
      %4406 = vmatprep.subr.bf16.mxu0 %v4077
      %4407 = vmatpush1.bf16.msra.mxu0 %v4076
      %4408 = vmatprep.subr.bf16.mxu0 %v4073
      %4409 = vmatpush1.bf16.msra.mxu0 %v4072
      %4410 = vmatprep.subr.bf16.mxu0 %v4069
      %4411 = vmatpush1.bf16.msra.mxu0 %v4068
      %4412 = vmatprep.subr.bf16.mxu0 %v4065
      %4413 = vmatpush1.bf16.msra.mxu0 %v4064
      %4414 = vmatprep.subr.bf16.mxu0 %v4061
      %4415 = vmatpush1.bf16.msra.mxu0 %v4060
      %4416 = vmatprep.subr.bf16.mxu0 %v4121
      %4417 = vmatpush2.bf16.msra.mxu0 %v4120
      %4418 = vmatprep.subr.bf16.mxu0 %v4117
      %4419 = vmatpush2.bf16.msra.mxu0 %v4116
      %4420 = vmatprep.subr.bf16.mxu0 %v4113
      %4421 = vmatpush2.bf16.msra.mxu0 %v4112
      %4422 = vmatprep.subr.bf16.mxu0 %v4109
      %4423 = vmatpush2.bf16.msra.mxu0 %v4108
      %4424 = vmatprep.subr.bf16.mxu0 %v4105
      %4425 = vmatpush2.bf16.msra.mxu0 %v4104
      %4426 = vmatprep.subr.bf16.mxu0 %v4101
      %4427 = vmatpush2.bf16.msra.mxu0 %v4100
      %4428 = vmatprep.subr.bf16.mxu0 %v4097
      %4429 = vmatpush2.bf16.msra.mxu0 %v4096
      %4430 = vmatprep.subr.bf16.mxu0 %v4093
      %4431 = vmatpush2.bf16.msra.mxu0 %v4092
      %4432 = vmatprep.mubr.bf16.mxu0 %v3645
      %4433 = vmatmul.mubr.bf16.gmra.mxu0 %v3633
      %v4434 = vpop.f32.mrf.mxu0
      %v4435 = vadd.f32 0.0, %v4434
      %v4436 = vpop.f32.mrf.mxu0
      %v4437 = vadd.f32 0.0, %v4436
      %v4438 = vpop.f32.mrf.mxu0
      %v4439 = vadd.f32 0.0, %v4438
      %v4440 = vpop.f32.mrf.mxu0
      %v4441 = vadd.f32 0.0, %v4440
      %4442 = vdwg.mxu0
      %4443 = vmatprep.subr.bf16.mxu0 %v4153
      %4444 = vmatpush1.bf16.msra.mxu0 %v4152
      %4445 = vmatprep.subr.bf16.mxu0 %v4149
      %4446 = vmatpush1.bf16.msra.mxu0 %v4148
      %4447 = vmatprep.subr.bf16.mxu0 %v4145
      %4448 = vmatpush1.bf16.msra.mxu0 %v4144
      %4449 = vmatprep.subr.bf16.mxu0 %v4141
      %4450 = vmatpush1.bf16.msra.mxu0 %v4140
      %4451 = vmatprep.subr.bf16.mxu0 %v4137
      %4452 = vmatpush1.bf16.msra.mxu0 %v4136
      %4453 = vmatprep.subr.bf16.mxu0 %v4133
      %4454 = vmatpush1.bf16.msra.mxu0 %v4132
      %4455 = vmatprep.subr.bf16.mxu0 %v4129
      %4456 = vmatpush1.bf16.msra.mxu0 %v4128
      %4457 = vmatprep.subr.bf16.mxu0 %v4125
      %4458 = vmatpush1.bf16.msra.mxu0 %v4124
      %4459 = vmatprep.subr.bf16.mxu0 %v4185
      %4460 = vmatpush2.bf16.msra.mxu0 %v4184
      %4461 = vmatprep.subr.bf16.mxu0 %v4181
      %4462 = vmatpush2.bf16.msra.mxu0 %v4180
      %4463 = vmatprep.subr.bf16.mxu0 %v4177
      %4464 = vmatpush2.bf16.msra.mxu0 %v4176
      %4465 = vmatprep.subr.bf16.mxu0 %v4173
      %4466 = vmatpush2.bf16.msra.mxu0 %v4172
      %4467 = vmatprep.subr.bf16.mxu0 %v4169
      %4468 = vmatpush2.bf16.msra.mxu0 %v4168
      %4469 = vmatprep.subr.bf16.mxu0 %v4165
      %4470 = vmatpush2.bf16.msra.mxu0 %v4164
      %4471 = vmatprep.subr.bf16.mxu0 %v4161
      %4472 = vmatpush2.bf16.msra.mxu0 %v4160
      %4473 = vmatprep.subr.bf16.mxu0 %v4157
      %4474 = vmatpush2.bf16.msra.mxu0 %v4156
      %4475 = vmatprep.mubr.bf16.mxu0 %v3669
      %4476 = vmatmul.mubr.bf16.gmra.mxu0 %v3657
      %v4477 = vpop.f32.mrf.mxu0
      %v4478 = vadd.f32 %v4435, %v4477
      %v4479 = vpop.f32.mrf.mxu0
      %v4480 = vadd.f32 %v4437, %v4479
      %v4481 = vpop.f32.mrf.mxu0
      %v4482 = vadd.f32 %v4439, %v4481
      %v4483 = vpop.f32.mrf.mxu0
      %v4484 = vadd.f32 %v4441, %v4483
      %4485 = vdwg.mxu0
      %v4614 = vunpack.c.l.b16 %v3349
      %v4615 = vunpack.c.h.b16 %v3349
      %v4616 = vunpack.c.l.b16 %v3350
      %v4617 = vunpack.c.h.b16 %v3350
      %v4618 = vunpack.c.l.b16 %v3351
      %v4619 = vunpack.c.h.b16 %v3351
      %v4620 = vunpack.c.l.b16 %v3352
      %v4621 = vunpack.c.h.b16 %v3352
      %v4622 = vunpack.c.l.b16 %v3353
      %v4623 = vunpack.c.h.b16 %v3353
      %v4624 = vunpack.c.l.b16 %v3354
      %v4625 = vunpack.c.h.b16 %v3354
      %v4626 = vunpack.c.l.b16 %v3355
      %v4627 = vunpack.c.h.b16 %v3355
      %v4628 = vunpack.c.l.b16 %v3356
      %v4629 = vunpack.c.h.b16 %v3356
      %v4630 = vunpack.c.l.b16 %v3357
      %v4631 = vunpack.c.h.b16 %v3357
      %v4632 = vunpack.c.l.b16 %v3358
      %v4633 = vunpack.c.h.b16 %v3358
      %v4634 = vunpack.c.l.b16 %v3359
      %v4635 = vunpack.c.h.b16 %v3359
      %v4636 = vunpack.c.l.b16 %v3360
      %v4637 = vunpack.c.h.b16 %v3360
      %v4638 = vunpack.c.l.b16 %v3361
      %v4639 = vunpack.c.h.b16 %v3361
      %v4640 = vunpack.c.l.b16 %v3362
      %v4641 = vunpack.c.h.b16 %v3362
      %v4642 = vunpack.c.l.b16 %v3363
      %v4643 = vunpack.c.h.b16 %v3363
      %v4644 = vunpack.c.l.b16 %v3364
      %v4645 = vunpack.c.h.b16 %v3364
      %v4646 = vunpack.c.l.b16 %v3365
      %v4647 = vunpack.c.h.b16 %v3365
      %v4648 = vunpack.c.l.b16 %v3366
      %v4649 = vunpack.c.h.b16 %v3366
      %v4650 = vunpack.c.l.b16 %v3367
      %v4651 = vunpack.c.h.b16 %v3367
      %v4652 = vunpack.c.l.b16 %v3368
      %v4653 = vunpack.c.h.b16 %v3368
      %v4654 = vunpack.c.l.b16 %v3369
      %v4655 = vunpack.c.h.b16 %v3369
      %v4656 = vunpack.c.l.b16 %v3370
      %v4657 = vunpack.c.h.b16 %v3370
      %v4658 = vunpack.c.l.b16 %v3371
      %v4659 = vunpack.c.h.b16 %v3371
      %v4660 = vunpack.c.l.b16 %v3372
      %v4661 = vunpack.c.h.b16 %v3372
      %v4662 = vunpack.c.l.b16 %v3373
      %v4663 = vunpack.c.h.b16 %v3373
      %v4664 = vunpack.c.l.b16 %v3374
      %v4665 = vunpack.c.h.b16 %v3374
      %v4666 = vunpack.c.l.b16 %v3375
      %v4667 = vunpack.c.h.b16 %v3375
      %v4668 = vunpack.c.l.b16 %v3376
      %v4669 = vunpack.c.h.b16 %v3376
      %v4670 = vunpack.c.l.b16 %v3377
      %v4671 = vunpack.c.h.b16 %v3377
      %v4672 = vunpack.c.l.b16 %v3378
      %v4673 = vunpack.c.h.b16 %v3378
      %v4674 = vunpack.c.l.b16 %v3379
      %v4675 = vunpack.c.h.b16 %v3379
      %v4676 = vunpack.c.l.b16 %v3380
      %v4677 = vunpack.c.h.b16 %v3380
      %v4678 = vunpack.c.l.b16 %v3381
      %v4679 = vunpack.c.h.b16 %v3381
      %v4680 = vunpack.c.l.b16 %v3382
      %v4681 = vunpack.c.h.b16 %v3382
      %v4682 = vunpack.c.l.b16 %v3383
      %v4683 = vunpack.c.h.b16 %v3383
      %v4684 = vunpack.c.l.b16 %v3384
      %v4685 = vunpack.c.h.b16 %v3384
      %v4686 = vunpack.c.l.b16 %v3385
      %v4687 = vunpack.c.h.b16 %v3385
      %v4688 = vunpack.c.l.b16 %v3386
      %v4689 = vunpack.c.h.b16 %v3386
      %v4690 = vunpack.c.l.b16 %v3387
      %v4691 = vunpack.c.h.b16 %v3387
      %v4692 = vunpack.c.l.b16 %v3388
      %v4693 = vunpack.c.h.b16 %v3388
      %v4694 = vunpack.c.l.b16 %v3389
      %v4695 = vunpack.c.h.b16 %v3389
      %v4696 = vunpack.c.l.b16 %v3390
      %v4697 = vunpack.c.h.b16 %v3390
      %v4698 = vunpack.c.l.b16 %v3391
      %v4699 = vunpack.c.h.b16 %v3391
      %v4700 = vunpack.c.l.b16 %v3392
      %v4701 = vunpack.c.h.b16 %v3392
      %v4702 = vunpack.c.l.b16 %v3393
      %v4703 = vunpack.c.h.b16 %v3393
      %v4704 = vunpack.c.l.b16 %v3394
      %v4705 = vunpack.c.h.b16 %v3394
      %v4706 = vunpack.c.l.b16 %v3395
      %v4707 = vunpack.c.h.b16 %v3395
      %v4708 = vunpack.c.l.b16 %v3396
      %v4709 = vunpack.c.h.b16 %v3396
      %v4710 = vunpack.c.l.b16 %v3397
      %v4711 = vunpack.c.h.b16 %v3397
      %v4712 = vunpack.c.l.b16 %v3398
      %v4713 = vunpack.c.h.b16 %v3398
      %v4714 = vunpack.c.l.b16 %v3399
      %v4715 = vunpack.c.h.b16 %v3399
      %v4716 = vunpack.c.l.b16 %v3400
      %v4717 = vunpack.c.h.b16 %v3400
      %v4718 = vunpack.c.l.b16 %v3401
      %v4719 = vunpack.c.h.b16 %v3401
      %v4720 = vunpack.c.l.b16 %v3402
      %v4721 = vunpack.c.h.b16 %v3402
      %v4722 = vunpack.c.l.b16 %v3403
      %v4723 = vunpack.c.h.b16 %v3403
      %v4724 = vunpack.c.l.b16 %v3404
      %v4725 = vunpack.c.h.b16 %v3404
      %v4726 = vunpack.c.l.b16 %v3405
      %v4727 = vunpack.c.h.b16 %v3405
      %v4728 = vunpack.c.l.b16 %v3406
      %v4729 = vunpack.c.h.b16 %v3406
      %v4730 = vunpack.c.l.b16 %v3407
      %v4731 = vunpack.c.h.b16 %v3407
      %v4732 = vunpack.c.l.b16 %v3408
      %v4733 = vunpack.c.h.b16 %v3408
      %v4734 = vunpack.c.l.b16 %v3409
      %v4735 = vunpack.c.h.b16 %v3409
      %v4736 = vunpack.c.l.b16 %v3410
      %v4737 = vunpack.c.h.b16 %v3410
      %v4738 = vunpack.c.l.b16 %v3411
      %v4739 = vunpack.c.h.b16 %v3411
      %v4740 = vunpack.c.l.b16 %v3412
      %v4741 = vunpack.c.h.b16 %v3412
      %v4742 = vunpack.c.l.b16 %v3413
      %v4743 = vunpack.c.h.b16 %v3413
      %v4744 = vunpack.c.l.b16 %v3414
      %v4745 = vunpack.c.h.b16 %v3414
      %v4746 = vunpack.c.l.b16 %v3415
      %v4747 = vunpack.c.h.b16 %v3415
      %v4748 = vunpack.c.l.b16 %v3416
      %v4749 = vunpack.c.h.b16 %v3416
      %v4750 = vunpack.c.l.b16 %v3417
      %v4751 = vunpack.c.h.b16 %v3417
      %v4752 = vunpack.c.l.b16 %v3418
      %v4753 = vunpack.c.h.b16 %v3418
      %v4754 = vunpack.c.l.b16 %v3419
      %v4755 = vunpack.c.h.b16 %v3419
      %v4756 = vunpack.c.l.b16 %v3420
      %v4757 = vunpack.c.h.b16 %v3420
      %v4758 = vunpack.c.l.b16 %v3421
      %v4759 = vunpack.c.h.b16 %v3421
      %v4760 = vunpack.c.l.b16 %v3422
      %v4761 = vunpack.c.h.b16 %v3422
      %v4762 = vunpack.c.l.b16 %v3423
      %v4763 = vunpack.c.h.b16 %v3423
      %v4764 = vunpack.c.l.b16 %v3424
      %v4765 = vunpack.c.h.b16 %v3424
      %v4766 = vunpack.c.l.b16 %v3425
      %v4767 = vunpack.c.h.b16 %v3425
      %v4768 = vunpack.c.l.b16 %v3426
      %v4769 = vunpack.c.h.b16 %v3426
      %v4770 = vunpack.c.l.b16 %v3427
      %v4771 = vunpack.c.h.b16 %v3427
      %v4772 = vunpack.c.l.b16 %v3428
      %v4773 = vunpack.c.h.b16 %v3428
      %v4774 = vunpack.c.l.b16 %v3429
      %v4775 = vunpack.c.h.b16 %v3429
      %v4776 = vunpack.c.l.b16 %v3430
      %v4777 = vunpack.c.h.b16 %v3430
      %v4778 = vunpack.c.l.b16 %v3431
      %v4779 = vunpack.c.h.b16 %v3431
      %v4780 = vunpack.c.l.b16 %v3432
      %v4781 = vunpack.c.h.b16 %v3432
      %v4782 = vunpack.c.l.b16 %v3433
      %v4783 = vunpack.c.h.b16 %v3433
      %v4784 = vunpack.c.l.b16 %v3434
      %v4785 = vunpack.c.h.b16 %v3434
      %v4786 = vunpack.c.l.b16 %v3435
      %v4787 = vunpack.c.h.b16 %v3435
      %v4788 = vunpack.c.l.b16 %v3436
      %v4789 = vunpack.c.h.b16 %v3436
      %v4790 = vunpack.c.l.b16 %v3437
      %v4791 = vunpack.c.h.b16 %v3437
      %v4792 = vunpack.c.l.b16 %v3438
      %v4793 = vunpack.c.h.b16 %v3438
      %v4794 = vunpack.c.l.b16 %v3439
      %v4795 = vunpack.c.h.b16 %v3439
      %v4796 = vunpack.c.l.b16 %v3440
      %v4797 = vunpack.c.h.b16 %v3440
      %v4798 = vunpack.c.l.b16 %v3441
      %v4799 = vunpack.c.h.b16 %v3441
      %v4800 = vunpack.c.l.b16 %v3442
      %v4801 = vunpack.c.h.b16 %v3442
      %v4802 = vunpack.c.l.b16 %v3443
      %v4803 = vunpack.c.h.b16 %v3443
      %v4804 = vunpack.c.l.b16 %v3444
      %v4805 = vunpack.c.h.b16 %v3444
      %v4806 = vunpack.c.l.b16 %v3445
      %v4807 = vunpack.c.h.b16 %v3445
      %v4808 = vunpack.c.l.b16 %v3446
      %v4809 = vunpack.c.h.b16 %v3446
      %v4810 = vunpack.c.l.b16 %v3447
      %v4811 = vunpack.c.h.b16 %v3447
      %v4812 = vunpack.c.l.b16 %v3448
      %v4813 = vunpack.c.h.b16 %v3448
      %v4814 = vunpack.c.l.b16 %v3449
      %v4815 = vunpack.c.h.b16 %v3449
      %v4816 = vunpack.c.l.b16 %v3450
      %v4817 = vunpack.c.h.b16 %v3450
      %v4818 = vunpack.c.l.b16 %v3451
      %v4819 = vunpack.c.h.b16 %v3451
      %v4820 = vunpack.c.l.b16 %v3452
      %v4821 = vunpack.c.h.b16 %v3452
      %v4822 = vunpack.c.l.b16 %v3453
      %v4823 = vunpack.c.h.b16 %v3453
      %v4824 = vunpack.c.l.b16 %v3454
      %v4825 = vunpack.c.h.b16 %v3454
      %v4826 = vunpack.c.l.b16 %v3455
      %v4827 = vunpack.c.h.b16 %v3455
      %v4828 = vunpack.c.l.b16 %v3456
      %v4829 = vunpack.c.h.b16 %v3456
      %v4830 = vunpack.c.l.b16 %v3457
      %v4831 = vunpack.c.h.b16 %v3457
      %v4832 = vunpack.c.l.b16 %v3458
      %v4833 = vunpack.c.h.b16 %v3458
      %v4834 = vunpack.c.l.b16 %v3459
      %v4835 = vunpack.c.h.b16 %v3459
      %v4836 = vunpack.c.l.b16 %v3460
      %v4837 = vunpack.c.h.b16 %v3460
      %v4838 = vunpack.c.l.b16 %v3461
      %v4839 = vunpack.c.h.b16 %v3461
      %v4840 = vunpack.c.l.b16 %v3462
      %v4841 = vunpack.c.h.b16 %v3462
      %v4842 = vunpack.c.l.b16 %v3463
      %v4843 = vunpack.c.h.b16 %v3463
      %v4844 = vunpack.c.l.b16 %v3464
      %v4845 = vunpack.c.h.b16 %v3464
      %v4846 = vunpack.c.l.b16 %v3465
      %v4847 = vunpack.c.h.b16 %v3465
      %v4848 = vunpack.c.l.b16 %v3466
      %v4849 = vunpack.c.h.b16 %v3466
      %v4850 = vunpack.c.l.b16 %v3467
      %v4851 = vunpack.c.h.b16 %v3467
      %v4852 = vunpack.c.l.b16 %v3468
      %v4853 = vunpack.c.h.b16 %v3468
      %v4854 = vunpack.c.l.b16 %v3469
      %v4855 = vunpack.c.h.b16 %v3469
      %v4856 = vunpack.c.l.b16 %v3470
      %v4857 = vunpack.c.h.b16 %v3470
      %v4858 = vunpack.c.l.b16 %v3471
      %v4859 = vunpack.c.h.b16 %v3471
      %v4860 = vunpack.c.l.b16 %v3472
      %v4861 = vunpack.c.h.b16 %v3472
      %v4862 = vunpack.c.l.b16 %v3473
      %v4863 = vunpack.c.h.b16 %v3473
      %v4864 = vunpack.c.l.b16 %v3474
      %v4865 = vunpack.c.h.b16 %v3474
      %v4866 = vunpack.c.l.b16 %v3475
      %v4867 = vunpack.c.h.b16 %v3475
      %v4868 = vunpack.c.l.b16 %v3476
      %v4869 = vunpack.c.h.b16 %v3476
      %v4870 = vpack.c.b16 %v4618, %v4614
      %v4871 = vpack.c.b16 %v4619, %v4615
      %v4872 = vpack.c.b16 %v4620, %v4616
      %v4873 = vpack.c.b16 %v4621, %v4617
      %v4874 = vpack.c.b16 %v4626, %v4622
      %v4875 = vpack.c.b16 %v4627, %v4623
      %v4876 = vpack.c.b16 %v4628, %v4624
      %v4877 = vpack.c.b16 %v4629, %v4625
      %v4878 = vpack.c.b16 %v4634, %v4630
      %v4879 = vpack.c.b16 %v4635, %v4631
      %v4880 = vpack.c.b16 %v4636, %v4632
      %v4881 = vpack.c.b16 %v4637, %v4633
      %v4882 = vpack.c.b16 %v4642, %v4638
      %v4883 = vpack.c.b16 %v4643, %v4639
      %v4884 = vpack.c.b16 %v4644, %v4640
      %v4885 = vpack.c.b16 %v4645, %v4641
      %v4886 = vpack.c.b16 %v4650, %v4646
      %v4887 = vpack.c.b16 %v4651, %v4647
      %v4888 = vpack.c.b16 %v4652, %v4648
      %v4889 = vpack.c.b16 %v4653, %v4649
      %v4890 = vpack.c.b16 %v4658, %v4654
      %v4891 = vpack.c.b16 %v4659, %v4655
      %v4892 = vpack.c.b16 %v4660, %v4656
      %v4893 = vpack.c.b16 %v4661, %v4657
      %v4894 = vpack.c.b16 %v4666, %v4662
      %v4895 = vpack.c.b16 %v4667, %v4663
      %v4896 = vpack.c.b16 %v4668, %v4664
      %v4897 = vpack.c.b16 %v4669, %v4665
      %v4898 = vpack.c.b16 %v4674, %v4670
      %v4899 = vpack.c.b16 %v4675, %v4671
      %v4900 = vpack.c.b16 %v4676, %v4672
      %v4901 = vpack.c.b16 %v4677, %v4673
      %v4902 = vpack.c.b16 %v4682, %v4678
      %v4903 = vpack.c.b16 %v4683, %v4679
      %v4904 = vpack.c.b16 %v4684, %v4680
      %v4905 = vpack.c.b16 %v4685, %v4681
      %v4906 = vpack.c.b16 %v4690, %v4686
      %v4907 = vpack.c.b16 %v4691, %v4687
      %v4908 = vpack.c.b16 %v4692, %v4688
      %v4909 = vpack.c.b16 %v4693, %v4689
      %v4910 = vpack.c.b16 %v4698, %v4694
      %v4911 = vpack.c.b16 %v4699, %v4695
      %v4912 = vpack.c.b16 %v4700, %v4696
      %v4913 = vpack.c.b16 %v4701, %v4697
      %v4914 = vpack.c.b16 %v4706, %v4702
      %v4915 = vpack.c.b16 %v4707, %v4703
      %v4916 = vpack.c.b16 %v4708, %v4704
      %v4917 = vpack.c.b16 %v4709, %v4705
      %v4918 = vpack.c.b16 %v4714, %v4710
      %v4919 = vpack.c.b16 %v4715, %v4711
      %v4920 = vpack.c.b16 %v4716, %v4712
      %v4921 = vpack.c.b16 %v4717, %v4713
      %v4922 = vpack.c.b16 %v4722, %v4718
      %v4923 = vpack.c.b16 %v4723, %v4719
      %v4924 = vpack.c.b16 %v4724, %v4720
      %v4925 = vpack.c.b16 %v4725, %v4721
      %v4926 = vpack.c.b16 %v4730, %v4726
      %v4927 = vpack.c.b16 %v4731, %v4727
      %v4928 = vpack.c.b16 %v4732, %v4728
      %v4929 = vpack.c.b16 %v4733, %v4729
      %v4930 = vpack.c.b16 %v4738, %v4734
      %v4931 = vpack.c.b16 %v4739, %v4735
      %v4932 = vpack.c.b16 %v4740, %v4736
      %v4933 = vpack.c.b16 %v4741, %v4737
      %v4934 = vpack.c.b16 %v4746, %v4742
      %v4935 = vpack.c.b16 %v4747, %v4743
      %v4936 = vpack.c.b16 %v4748, %v4744
      %v4937 = vpack.c.b16 %v4749, %v4745
      %v4938 = vpack.c.b16 %v4754, %v4750
      %v4939 = vpack.c.b16 %v4755, %v4751
      %v4940 = vpack.c.b16 %v4756, %v4752
      %v4941 = vpack.c.b16 %v4757, %v4753
      %v4942 = vpack.c.b16 %v4762, %v4758
      %v4943 = vpack.c.b16 %v4763, %v4759
      %v4944 = vpack.c.b16 %v4764, %v4760
      %v4945 = vpack.c.b16 %v4765, %v4761
      %v4946 = vpack.c.b16 %v4770, %v4766
      %v4947 = vpack.c.b16 %v4771, %v4767
      %v4948 = vpack.c.b16 %v4772, %v4768
      %v4949 = vpack.c.b16 %v4773, %v4769
      %v4950 = vpack.c.b16 %v4778, %v4774
      %v4951 = vpack.c.b16 %v4779, %v4775
      %v4952 = vpack.c.b16 %v4780, %v4776
      %v4953 = vpack.c.b16 %v4781, %v4777
      %v4954 = vpack.c.b16 %v4786, %v4782
      %v4955 = vpack.c.b16 %v4787, %v4783
      %v4956 = vpack.c.b16 %v4788, %v4784
      %v4957 = vpack.c.b16 %v4789, %v4785
      %v4958 = vpack.c.b16 %v4794, %v4790
      %v4959 = vpack.c.b16 %v4795, %v4791
      %v4960 = vpack.c.b16 %v4796, %v4792
      %v4961 = vpack.c.b16 %v4797, %v4793
      %v4962 = vpack.c.b16 %v4802, %v4798
      %v4963 = vpack.c.b16 %v4803, %v4799
      %v4964 = vpack.c.b16 %v4804, %v4800
      %v4965 = vpack.c.b16 %v4805, %v4801
      %v4966 = vpack.c.b16 %v4810, %v4806
      %v4967 = vpack.c.b16 %v4811, %v4807
      %v4968 = vpack.c.b16 %v4812, %v4808
      %v4969 = vpack.c.b16 %v4813, %v4809
      %v4970 = vpack.c.b16 %v4818, %v4814
      %v4971 = vpack.c.b16 %v4819, %v4815
      %v4972 = vpack.c.b16 %v4820, %v4816
      %v4973 = vpack.c.b16 %v4821, %v4817
      %v4974 = vpack.c.b16 %v4826, %v4822
      %v4975 = vpack.c.b16 %v4827, %v4823
      %v4976 = vpack.c.b16 %v4828, %v4824
      %v4977 = vpack.c.b16 %v4829, %v4825
      %v4978 = vpack.c.b16 %v4834, %v4830
      %v4979 = vpack.c.b16 %v4835, %v4831
      %v4980 = vpack.c.b16 %v4836, %v4832
      %v4981 = vpack.c.b16 %v4837, %v4833
      %v4982 = vpack.c.b16 %v4842, %v4838
      %v4983 = vpack.c.b16 %v4843, %v4839
      %v4984 = vpack.c.b16 %v4844, %v4840
      %v4985 = vpack.c.b16 %v4845, %v4841
      %v4986 = vpack.c.b16 %v4850, %v4846
      %v4987 = vpack.c.b16 %v4851, %v4847
      %v4988 = vpack.c.b16 %v4852, %v4848
      %v4989 = vpack.c.b16 %v4853, %v4849
      %v4990 = vpack.c.b16 %v4858, %v4854
      %v4991 = vpack.c.b16 %v4859, %v4855
      %v4992 = vpack.c.b16 %v4860, %v4856
      %v4993 = vpack.c.b16 %v4861, %v4857
      %v4994 = vpack.c.b16 %v4866, %v4862
      %v4995 = vpack.c.b16 %v4867, %v4863
      %v4996 = vpack.c.b16 %v4868, %v4864
      %v4997 = vpack.c.b16 %v4869, %v4865
      %5126 = vmatprep.subr.bf16.mxu0 %v4899
      %5127 = vmatpush1.bf16.msra.mxu0 %v4898
      %5128 = vmatprep.subr.bf16.mxu0 %v4895
      %5129 = vmatpush1.bf16.msra.mxu0 %v4894
      %5130 = vmatprep.subr.bf16.mxu0 %v4891
      %5131 = vmatpush1.bf16.msra.mxu0 %v4890
      %5132 = vmatprep.subr.bf16.mxu0 %v4887
      %5133 = vmatpush1.bf16.msra.mxu0 %v4886
      %5134 = vmatprep.subr.bf16.mxu0 %v4883
      %5135 = vmatpush1.bf16.msra.mxu0 %v4882
      %5136 = vmatprep.subr.bf16.mxu0 %v4879
      %5137 = vmatpush1.bf16.msra.mxu0 %v4878
      %5138 = vmatprep.subr.bf16.mxu0 %v4875
      %5139 = vmatpush1.bf16.msra.mxu0 %v4874
      %5140 = vmatprep.subr.bf16.mxu0 %v4871
      %5141 = vmatpush1.bf16.msra.mxu0 %v4870
      %5142 = vmatprep.subr.bf16.mxu0 %v4931
      %5143 = vmatpush2.bf16.msra.mxu0 %v4930
      %5144 = vmatprep.subr.bf16.mxu0 %v4927
      %5145 = vmatpush2.bf16.msra.mxu0 %v4926
      %5146 = vmatprep.subr.bf16.mxu0 %v4923
      %5147 = vmatpush2.bf16.msra.mxu0 %v4922
      %5148 = vmatprep.subr.bf16.mxu0 %v4919
      %5149 = vmatpush2.bf16.msra.mxu0 %v4918
      %5150 = vmatprep.subr.bf16.mxu0 %v4915
      %5151 = vmatpush2.bf16.msra.mxu0 %v4914
      %5152 = vmatprep.subr.bf16.mxu0 %v4911
      %5153 = vmatpush2.bf16.msra.mxu0 %v4910
      %5154 = vmatprep.subr.bf16.mxu0 %v4907
      %5155 = vmatpush2.bf16.msra.mxu0 %v4906
      %5156 = vmatprep.subr.bf16.mxu0 %v4903
      %5157 = vmatpush2.bf16.msra.mxu0 %v4902
      %5158 = vmatprep.mubr.bf16.mxu0 %v3346
      %5159 = vmatmul.mubr.bf16.gmra.mxu0 %v3345
      %v5160 = vpop.f32.mrf.mxu0
      %v5161 = vadd.f32 %v4392, %v5160
      %v5162 = vpop.f32.mrf.mxu0
      %v5163 = vadd.f32 %v4394, %v5162
      %v5164 = vpop.f32.mrf.mxu0
      %v5165 = vadd.f32 %v4396, %v5164
      %v5166 = vpop.f32.mrf.mxu0
      %v5167 = vadd.f32 %v4398, %v5166
      %5168 = vdwg.mxu0
      %5169 = vmatprep.subr.bf16.mxu0 %v4963
      %5170 = vmatpush1.bf16.msra.mxu0 %v4962
      %5171 = vmatprep.subr.bf16.mxu0 %v4959
      %5172 = vmatpush1.bf16.msra.mxu0 %v4958
      %5173 = vmatprep.subr.bf16.mxu0 %v4955
      %5174 = vmatpush1.bf16.msra.mxu0 %v4954
      %5175 = vmatprep.subr.bf16.mxu0 %v4951
      %5176 = vmatpush1.bf16.msra.mxu0 %v4950
      %5177 = vmatprep.subr.bf16.mxu0 %v4947
      %5178 = vmatpush1.bf16.msra.mxu0 %v4946
      %5179 = vmatprep.subr.bf16.mxu0 %v4943
      %5180 = vmatpush1.bf16.msra.mxu0 %v4942
      %5181 = vmatprep.subr.bf16.mxu0 %v4939
      %5182 = vmatpush1.bf16.msra.mxu0 %v4938
      %5183 = vmatprep.subr.bf16.mxu0 %v4935
      %5184 = vmatpush1.bf16.msra.mxu0 %v4934
      %5185 = vmatprep.subr.bf16.mxu0 %v4995
      %5186 = vmatpush2.bf16.msra.mxu0 %v4994
      %5187 = vmatprep.subr.bf16.mxu0 %v4991
      %5188 = vmatpush2.bf16.msra.mxu0 %v4990
      %5189 = vmatprep.subr.bf16.mxu0 %v4987
      %5190 = vmatpush2.bf16.msra.mxu0 %v4986
      %5191 = vmatprep.subr.bf16.mxu0 %v4983
      %5192 = vmatpush2.bf16.msra.mxu0 %v4982
      %5193 = vmatprep.subr.bf16.mxu0 %v4979
      %5194 = vmatpush2.bf16.msra.mxu0 %v4978
      %5195 = vmatprep.subr.bf16.mxu0 %v4975
      %5196 = vmatpush2.bf16.msra.mxu0 %v4974
      %5197 = vmatprep.subr.bf16.mxu0 %v4971
      %5198 = vmatpush2.bf16.msra.mxu0 %v4970
      %5199 = vmatprep.subr.bf16.mxu0 %v4967
      %5200 = vmatpush2.bf16.msra.mxu0 %v4966
      %5201 = vmatprep.mubr.bf16.mxu0 %v3348
      %5202 = vmatmul.mubr.bf16.gmra.mxu0 %v3347
      %v5203 = vpop.f32.mrf.mxu0
      %v5204 = vadd.f32 %v5161, %v5203
      %v5205 = vpop.f32.mrf.mxu0
      %v5206 = vadd.f32 %v5163, %v5205
      %v5207 = vpop.f32.mrf.mxu0
      %v5208 = vadd.f32 %v5165, %v5207
      %v5209 = vpop.f32.mrf.mxu0
      %v5210 = vadd.f32 %v5167, %v5209
      %5211 = vdwg.mxu0
      %5212 = vmatprep.subr.bf16.mxu0 %v4901
      %5213 = vmatpush1.bf16.msra.mxu0 %v4900
      %5214 = vmatprep.subr.bf16.mxu0 %v4897
      %5215 = vmatpush1.bf16.msra.mxu0 %v4896
      %5216 = vmatprep.subr.bf16.mxu0 %v4893
      %5217 = vmatpush1.bf16.msra.mxu0 %v4892
      %5218 = vmatprep.subr.bf16.mxu0 %v4889
      %5219 = vmatpush1.bf16.msra.mxu0 %v4888
      %5220 = vmatprep.subr.bf16.mxu0 %v4885
      %5221 = vmatpush1.bf16.msra.mxu0 %v4884
      %5222 = vmatprep.subr.bf16.mxu0 %v4881
      %5223 = vmatpush1.bf16.msra.mxu0 %v4880
      %5224 = vmatprep.subr.bf16.mxu0 %v4877
      %5225 = vmatpush1.bf16.msra.mxu0 %v4876
      %5226 = vmatprep.subr.bf16.mxu0 %v4873
      %5227 = vmatpush1.bf16.msra.mxu0 %v4872
      %5228 = vmatprep.subr.bf16.mxu0 %v4933
      %5229 = vmatpush2.bf16.msra.mxu0 %v4932
      %5230 = vmatprep.subr.bf16.mxu0 %v4929
      %5231 = vmatpush2.bf16.msra.mxu0 %v4928
      %5232 = vmatprep.subr.bf16.mxu0 %v4925
      %5233 = vmatpush2.bf16.msra.mxu0 %v4924
      %5234 = vmatprep.subr.bf16.mxu0 %v4921
      %5235 = vmatpush2.bf16.msra.mxu0 %v4920
      %5236 = vmatprep.subr.bf16.mxu0 %v4917
      %5237 = vmatpush2.bf16.msra.mxu0 %v4916
      %5238 = vmatprep.subr.bf16.mxu0 %v4913
      %5239 = vmatpush2.bf16.msra.mxu0 %v4912
      %5240 = vmatprep.subr.bf16.mxu0 %v4909
      %5241 = vmatpush2.bf16.msra.mxu0 %v4908
      %5242 = vmatprep.subr.bf16.mxu0 %v4905
      %5243 = vmatpush2.bf16.msra.mxu0 %v4904
      %5244 = vmatprep.mubr.bf16.mxu0 %v3346
      %5245 = vmatmul.mubr.bf16.gmra.mxu0 %v3345
      %v5246 = vpop.f32.mrf.mxu0
      %v5247 = vadd.f32 %v4478, %v5246
      %v5248 = vpop.f32.mrf.mxu0
      %v5249 = vadd.f32 %v4480, %v5248
      %v5250 = vpop.f32.mrf.mxu0
      %v5251 = vadd.f32 %v4482, %v5250
      %v5252 = vpop.f32.mrf.mxu0
      %v5253 = vadd.f32 %v4484, %v5252
      %5254 = vdwg.mxu0
      %5255 = vmatprep.subr.bf16.mxu0 %v4965
      %5256 = vmatpush1.bf16.msra.mxu0 %v4964
      %5257 = vmatprep.subr.bf16.mxu0 %v4961
      %5258 = vmatpush1.bf16.msra.mxu0 %v4960
      %5259 = vmatprep.subr.bf16.mxu0 %v4957
      %5260 = vmatpush1.bf16.msra.mxu0 %v4956
      %5261 = vmatprep.subr.bf16.mxu0 %v4953
      %5262 = vmatpush1.bf16.msra.mxu0 %v4952
      %5263 = vmatprep.subr.bf16.mxu0 %v4949
      %5264 = vmatpush1.bf16.msra.mxu0 %v4948
      %5265 = vmatprep.subr.bf16.mxu0 %v4945
      %5266 = vmatpush1.bf16.msra.mxu0 %v4944
      %5267 = vmatprep.subr.bf16.mxu0 %v4941
      %5268 = vmatpush1.bf16.msra.mxu0 %v4940
      %5269 = vmatprep.subr.bf16.mxu0 %v4937
      %5270 = vmatpush1.bf16.msra.mxu0 %v4936
      %5271 = vmatprep.subr.bf16.mxu0 %v4997
      %5272 = vmatpush2.bf16.msra.mxu0 %v4996
      %5273 = vmatprep.subr.bf16.mxu0 %v4993
      %5274 = vmatpush2.bf16.msra.mxu0 %v4992
      %5275 = vmatprep.subr.bf16.mxu0 %v4989
      %5276 = vmatpush2.bf16.msra.mxu0 %v4988
      %5277 = vmatprep.subr.bf16.mxu0 %v4985
      %5278 = vmatpush2.bf16.msra.mxu0 %v4984
      %5279 = vmatprep.subr.bf16.mxu0 %v4981
      %5280 = vmatpush2.bf16.msra.mxu0 %v4980
      %5281 = vmatprep.subr.bf16.mxu0 %v4977
      %5282 = vmatpush2.bf16.msra.mxu0 %v4976
      %5283 = vmatprep.subr.bf16.mxu0 %v4973
      %5284 = vmatpush2.bf16.msra.mxu0 %v4972
      %5285 = vmatprep.subr.bf16.mxu0 %v4969
      %5286 = vmatpush2.bf16.msra.mxu0 %v4968
      %5287 = vmatprep.mubr.bf16.mxu0 %v3348
      %5288 = vmatmul.mubr.bf16.gmra.mxu0 %v3347
      %v5289 = vpop.f32.mrf.mxu0
      %v5290 = vadd.f32 %v5247, %v5289
      %v5291 = vpop.f32.mrf.mxu0
      %v5292 = vadd.f32 %v5249, %v5291
      %v5293 = vpop.f32.mrf.mxu0
      %v5294 = vadd.f32 %v5251, %v5293
      %v5295 = vpop.f32.mrf.mxu0
      %v5296 = vadd.f32 %v5253, %v5295
      %5297 = vdwg.mxu0
      %v5298 = vld [vmem:[#allocation2] sm:$0xfc]
      %v5299 = vld [vmem:[#allocation2 + $0x8] sm:$0xfc]
      %v5300 = vld [vmem:[#allocation2 + $0x10] sm:$0xfc]
      %v5301 = vld [vmem:[#allocation2 + $0x18] sm:$0xfc]
      %v5302 = vld [vmem:[#allocation2 + $0x40] sm:$0x3]
      %v5303 = vld [vmem:[#allocation2 + $0x48] sm:$0x3]
      %v5304 = vld [vmem:[#allocation2 + $0x50] sm:$0x3]
      %v5305 = vld [vmem:[#allocation2 + $0x58] sm:$0x3]
      %v5306 = vpack.c.bf16 %v3341, %v5298
      %v5307 = vpack.c.bf16 %v3342, %v5299
      %v5308 = vpack.c.bf16 %v3343, %v5300
      %v5309 = vpack.c.bf16 %v3344, %v5301
      %v5310 = vpack.c.bf16 %v5302, %v5302
      %v5311 = vpack.c.bf16 %v5303, %v5303
      %v5312 = vpack.c.bf16 %v5304, %v5304
      %v5313 = vpack.c.bf16 %v5305, %v5305
      %s5314 = scalar_lea.vmem %s3, 2048
      %v5315 = vld [vmem:[%s5314] sm:$0xff]
      %v5316 = vld [vmem:[%s5314 + $0x8] sm:$0xff]
      %v5317 = vld [vmem:[%s5314 + $0x10] sm:$0xff]
      %v5318 = vld [vmem:[%s5314 + $0x18] sm:$0xff]
      %v5319 = vld [vmem:[%s5314 + $0x20] sm:$0xff]
      %v5320 = vld [vmem:[%s5314 + $0x28] sm:$0xff]
      %v5321 = vld [vmem:[%s5314 + $0x30] sm:$0xff]
      %v5322 = vld [vmem:[%s5314 + $0x38] sm:$0xff]
      %v5323 = vld [vmem:[%s5314 + $0x40] sm:$0xff]
      %v5324 = vld [vmem:[%s5314 + $0x48] sm:$0xff]
      %v5325 = vld [vmem:[%s5314 + $0x50] sm:$0xff]
      %v5326 = vld [vmem:[%s5314 + $0x58] sm:$0xff]
      %v5327 = vld [vmem:[%s5314 + $0x60] sm:$0xff]
      %v5328 = vld [vmem:[%s5314 + $0x68] sm:$0xff]
      %v5329 = vld [vmem:[%s5314 + $0x70] sm:$0xff]
      %v5330 = vld [vmem:[%s5314 + $0x78] sm:$0xff]
      %v5331 = vld [vmem:[%s5314 + $0x80] sm:$0xff]
      %v5332 = vld [vmem:[%s5314 + $0x88] sm:$0xff]
      %v5333 = vld [vmem:[%s5314 + $0x90] sm:$0xff]
      %v5334 = vld [vmem:[%s5314 + $0x98] sm:$0xff]
      %v5335 = vld [vmem:[%s5314 + $0xa0] sm:$0xff]
      %v5336 = vld [vmem:[%s5314 + $0xa8] sm:$0xff]
      %v5337 = vld [vmem:[%s5314 + $0xb0] sm:$0xff]
      %v5338 = vld [vmem:[%s5314 + $0xb8] sm:$0xff]
      %v5339 = vld [vmem:[%s5314 + $0xc0] sm:$0xff]
      %v5340 = vld [vmem:[%s5314 + $0xc8] sm:$0xff]
      %v5341 = vld [vmem:[%s5314 + $0xd0] sm:$0xff]
      %v5342 = vld [vmem:[%s5314 + $0xd8] sm:$0xff]
      %v5343 = vld [vmem:[%s5314 + $0xe0] sm:$0xff]
      %v5344 = vld [vmem:[%s5314 + $0xe8] sm:$0xff]
      %v5345 = vld [vmem:[%s5314 + $0xf0] sm:$0xff]
      %v5346 = vld [vmem:[%s5314 + $0xf8] sm:$0xff]
      %v5347 = vld [vmem:[%s5314 + $0x100] sm:$0xff]
      %v5348 = vld [vmem:[%s5314 + $0x108] sm:$0xff]
      %v5349 = vld [vmem:[%s5314 + $0x110] sm:$0xff]
      %v5350 = vld [vmem:[%s5314 + $0x118] sm:$0xff]
      %v5351 = vld [vmem:[%s5314 + $0x120] sm:$0xff]
      %v5352 = vld [vmem:[%s5314 + $0x128] sm:$0xff]
      %v5353 = vld [vmem:[%s5314 + $0x130] sm:$0xff]
      %v5354 = vld [vmem:[%s5314 + $0x138] sm:$0xff]
      %v5355 = vld [vmem:[%s5314 + $0x140] sm:$0xff]
      %v5356 = vld [vmem:[%s5314 + $0x148] sm:$0xff]
      %v5357 = vld [vmem:[%s5314 + $0x150] sm:$0xff]
      %v5358 = vld [vmem:[%s5314 + $0x158] sm:$0xff]
      %v5359 = vld [vmem:[%s5314 + $0x160] sm:$0xff]
      %v5360 = vld [vmem:[%s5314 + $0x168] sm:$0xff]
      %v5361 = vld [vmem:[%s5314 + $0x170] sm:$0xff]
      %v5362 = vld [vmem:[%s5314 + $0x178] sm:$0xff]
      %v5363 = vld [vmem:[%s5314 + $0x180] sm:$0xff]
      %v5364 = vld [vmem:[%s5314 + $0x188] sm:$0xff]
      %v5365 = vld [vmem:[%s5314 + $0x190] sm:$0xff]
      %v5366 = vld [vmem:[%s5314 + $0x198] sm:$0xff]
      %v5367 = vld [vmem:[%s5314 + $0x1a0] sm:$0xff]
      %v5368 = vld [vmem:[%s5314 + $0x1a8] sm:$0xff]
      %v5369 = vld [vmem:[%s5314 + $0x1b0] sm:$0xff]
      %v5370 = vld [vmem:[%s5314 + $0x1b8] sm:$0xff]
      %v5371 = vld [vmem:[%s5314 + $0x1c0] sm:$0xff]
      %v5372 = vld [vmem:[%s5314 + $0x1c8] sm:$0xff]
      %v5373 = vld [vmem:[%s5314 + $0x1d0] sm:$0xff]
      %v5374 = vld [vmem:[%s5314 + $0x1d8] sm:$0xff]
      %v5375 = vld [vmem:[%s5314 + $0x1e0] sm:$0xff]
      %v5376 = vld [vmem:[%s5314 + $0x1e8] sm:$0xff]
      %v5377 = vld [vmem:[%s5314 + $0x1f0] sm:$0xff]
      %v5378 = vld [vmem:[%s5314 + $0x1f8] sm:$0xff]
      %v5379 = vld [vmem:[%s5314 + $0x200] sm:$0xff]
      %v5380 = vld [vmem:[%s5314 + $0x208] sm:$0xff]
      %v5381 = vld [vmem:[%s5314 + $0x210] sm:$0xff]
      %v5382 = vld [vmem:[%s5314 + $0x218] sm:$0xff]
      %v5383 = vld [vmem:[%s5314 + $0x220] sm:$0xff]
      %v5384 = vld [vmem:[%s5314 + $0x228] sm:$0xff]
      %v5385 = vld [vmem:[%s5314 + $0x230] sm:$0xff]
      %v5386 = vld [vmem:[%s5314 + $0x238] sm:$0xff]
      %v5387 = vld [vmem:[%s5314 + $0x240] sm:$0xff]
      %v5388 = vld [vmem:[%s5314 + $0x248] sm:$0xff]
      %v5389 = vld [vmem:[%s5314 + $0x250] sm:$0xff]
      %v5390 = vld [vmem:[%s5314 + $0x258] sm:$0xff]
      %v5391 = vld [vmem:[%s5314 + $0x260] sm:$0xff]
      %v5392 = vld [vmem:[%s5314 + $0x268] sm:$0xff]
      %v5393 = vld [vmem:[%s5314 + $0x270] sm:$0xff]
      %v5394 = vld [vmem:[%s5314 + $0x278] sm:$0xff]
      %v5395 = vld [vmem:[%s5314 + $0x280] sm:$0xff]
      %v5396 = vld [vmem:[%s5314 + $0x288] sm:$0xff]
      %v5397 = vld [vmem:[%s5314 + $0x290] sm:$0xff]
      %v5398 = vld [vmem:[%s5314 + $0x298] sm:$0xff]
      %v5399 = vld [vmem:[%s5314 + $0x2a0] sm:$0xff]
      %v5400 = vld [vmem:[%s5314 + $0x2a8] sm:$0xff]
      %v5401 = vld [vmem:[%s5314 + $0x2b0] sm:$0xff]
      %v5402 = vld [vmem:[%s5314 + $0x2b8] sm:$0xff]
      %v5403 = vld [vmem:[%s5314 + $0x2c0] sm:$0xff]
      %v5404 = vld [vmem:[%s5314 + $0x2c8] sm:$0xff]
      %v5405 = vld [vmem:[%s5314 + $0x2d0] sm:$0xff]
      %v5406 = vld [vmem:[%s5314 + $0x2d8] sm:$0xff]
      %v5407 = vld [vmem:[%s5314 + $0x2e0] sm:$0xff]
      %v5408 = vld [vmem:[%s5314 + $0x2e8] sm:$0xff]
      %v5409 = vld [vmem:[%s5314 + $0x2f0] sm:$0xff]
      %v5410 = vld [vmem:[%s5314 + $0x2f8] sm:$0xff]
      %v5411 = vld [vmem:[%s5314 + $0x300] sm:$0xff]
      %v5412 = vld [vmem:[%s5314 + $0x308] sm:$0xff]
      %v5413 = vld [vmem:[%s5314 + $0x310] sm:$0xff]
      %v5414 = vld [vmem:[%s5314 + $0x318] sm:$0xff]
      %v5415 = vld [vmem:[%s5314 + $0x320] sm:$0xff]
      %v5416 = vld [vmem:[%s5314 + $0x328] sm:$0xff]
      %v5417 = vld [vmem:[%s5314 + $0x330] sm:$0xff]
      %v5418 = vld [vmem:[%s5314 + $0x338] sm:$0xff]
      %v5419 = vld [vmem:[%s5314 + $0x340] sm:$0xff]
      %v5420 = vld [vmem:[%s5314 + $0x348] sm:$0xff]
      %v5421 = vld [vmem:[%s5314 + $0x350] sm:$0xff]
      %v5422 = vld [vmem:[%s5314 + $0x358] sm:$0xff]
      %v5423 = vld [vmem:[%s5314 + $0x360] sm:$0xff]
      %v5424 = vld [vmem:[%s5314 + $0x368] sm:$0xff]
      %v5425 = vld [vmem:[%s5314 + $0x370] sm:$0xff]
      %v5426 = vld [vmem:[%s5314 + $0x378] sm:$0xff]
      %v5427 = vld [vmem:[%s5314 + $0x380] sm:$0xff]
      %v5428 = vld [vmem:[%s5314 + $0x388] sm:$0xff]
      %v5429 = vld [vmem:[%s5314 + $0x390] sm:$0xff]
      %v5430 = vld [vmem:[%s5314 + $0x398] sm:$0xff]
      %v5431 = vld [vmem:[%s5314 + $0x3a0] sm:$0xff]
      %v5432 = vld [vmem:[%s5314 + $0x3a8] sm:$0xff]
      %v5433 = vld [vmem:[%s5314 + $0x3b0] sm:$0xff]
      %v5434 = vld [vmem:[%s5314 + $0x3b8] sm:$0xff]
      %v5435 = vld [vmem:[%s5314 + $0x3c0] sm:$0xff]
      %v5436 = vld [vmem:[%s5314 + $0x3c8] sm:$0xff]
      %v5437 = vld [vmem:[%s5314 + $0x3d0] sm:$0xff]
      %v5438 = vld [vmem:[%s5314 + $0x3d8] sm:$0xff]
      %v5439 = vld [vmem:[%s5314 + $0x3e0] sm:$0xff]
      %v5440 = vld [vmem:[%s5314 + $0x3e8] sm:$0xff]
      %v5441 = vld [vmem:[%s5314 + $0x3f0] sm:$0xff]
      %v5442 = vld [vmem:[%s5314 + $0x3f8] sm:$0xff]
      %v5451 = vrot.slane %v5306, 1
      %v5452 = vrot.slane %v5310, 1
      %v5453 = vsel %vm2402, %v5451, %v5452
      %v5454 = vrot.slane %v5307, 1
      %v5455 = vrot.slane %v5311, 1
      %v5456 = vsel %vm2402, %v5454, %v5455
      %v5457 = vrot.slane %v5308, 1
      %v5458 = vrot.slane %v5312, 1
      %v5459 = vsel %vm2402, %v5457, %v5458
      %v5460 = vrot.slane %v5309, 1
      %v5461 = vrot.slane %v5313, 1
      %v5462 = vsel %vm2402, %v5460, %v5461
      %v5595 = vunpack.c.l.b16 %v5315
      %v5596 = vunpack.c.h.b16 %v5315
      %v5597 = vunpack.c.l.b16 %v5316
      %v5598 = vunpack.c.h.b16 %v5316
      %v5599 = vunpack.c.l.b16 %v5317
      %v5600 = vunpack.c.h.b16 %v5317
      %v5601 = vunpack.c.l.b16 %v5318
      %v5602 = vunpack.c.h.b16 %v5318
      %v5603 = vunpack.c.l.b16 %v5319
      %v5604 = vunpack.c.h.b16 %v5319
      %v5605 = vunpack.c.l.b16 %v5320
      %v5606 = vunpack.c.h.b16 %v5320
      %v5607 = vunpack.c.l.b16 %v5321
      %v5608 = vunpack.c.h.b16 %v5321
      %v5609 = vunpack.c.l.b16 %v5322
      %v5610 = vunpack.c.h.b16 %v5322
      %v5611 = vunpack.c.l.b16 %v5323
      %v5612 = vunpack.c.h.b16 %v5323
      %v5613 = vunpack.c.l.b16 %v5324
      %v5614 = vunpack.c.h.b16 %v5324
      %v5615 = vunpack.c.l.b16 %v5325
      %v5616 = vunpack.c.h.b16 %v5325
      %v5617 = vunpack.c.l.b16 %v5326
      %v5618 = vunpack.c.h.b16 %v5326
      %v5619 = vunpack.c.l.b16 %v5327
      %v5620 = vunpack.c.h.b16 %v5327
      %v5621 = vunpack.c.l.b16 %v5328
      %v5622 = vunpack.c.h.b16 %v5328
      %v5623 = vunpack.c.l.b16 %v5329
      %v5624 = vunpack.c.h.b16 %v5329
      %v5625 = vunpack.c.l.b16 %v5330
      %v5626 = vunpack.c.h.b16 %v5330
      %v5627 = vunpack.c.l.b16 %v5331
      %v5628 = vunpack.c.h.b16 %v5331
      %v5629 = vunpack.c.l.b16 %v5332
      %v5630 = vunpack.c.h.b16 %v5332
      %v5631 = vunpack.c.l.b16 %v5333
      %v5632 = vunpack.c.h.b16 %v5333
      %v5633 = vunpack.c.l.b16 %v5334
      %v5634 = vunpack.c.h.b16 %v5334
      %v5635 = vunpack.c.l.b16 %v5335
      %v5636 = vunpack.c.h.b16 %v5335
      %v5637 = vunpack.c.l.b16 %v5336
      %v5638 = vunpack.c.h.b16 %v5336
      %v5639 = vunpack.c.l.b16 %v5337
      %v5640 = vunpack.c.h.b16 %v5337
      %v5641 = vunpack.c.l.b16 %v5338
      %v5642 = vunpack.c.h.b16 %v5338
      %v5643 = vunpack.c.l.b16 %v5339
      %v5644 = vunpack.c.h.b16 %v5339
      %v5645 = vunpack.c.l.b16 %v5340
      %v5646 = vunpack.c.h.b16 %v5340
      %v5647 = vunpack.c.l.b16 %v5341
      %v5648 = vunpack.c.h.b16 %v5341
      %v5649 = vunpack.c.l.b16 %v5342
      %v5650 = vunpack.c.h.b16 %v5342
      %v5651 = vunpack.c.l.b16 %v5343
      %v5652 = vunpack.c.h.b16 %v5343
      %v5653 = vunpack.c.l.b16 %v5344
      %v5654 = vunpack.c.h.b16 %v5344
      %v5655 = vunpack.c.l.b16 %v5345
      %v5656 = vunpack.c.h.b16 %v5345
      %v5657 = vunpack.c.l.b16 %v5346
      %v5658 = vunpack.c.h.b16 %v5346
      %v5659 = vunpack.c.l.b16 %v5347
      %v5660 = vunpack.c.h.b16 %v5347
      %v5661 = vunpack.c.l.b16 %v5348
      %v5662 = vunpack.c.h.b16 %v5348
      %v5663 = vunpack.c.l.b16 %v5349
      %v5664 = vunpack.c.h.b16 %v5349
      %v5665 = vunpack.c.l.b16 %v5350
      %v5666 = vunpack.c.h.b16 %v5350
      %v5667 = vunpack.c.l.b16 %v5351
      %v5668 = vunpack.c.h.b16 %v5351
      %v5669 = vunpack.c.l.b16 %v5352
      %v5670 = vunpack.c.h.b16 %v5352
      %v5671 = vunpack.c.l.b16 %v5353
      %v5672 = vunpack.c.h.b16 %v5353
      %v5673 = vunpack.c.l.b16 %v5354
      %v5674 = vunpack.c.h.b16 %v5354
      %v5675 = vunpack.c.l.b16 %v5355
      %v5676 = vunpack.c.h.b16 %v5355
      %v5677 = vunpack.c.l.b16 %v5356
      %v5678 = vunpack.c.h.b16 %v5356
      %v5679 = vunpack.c.l.b16 %v5357
      %v5680 = vunpack.c.h.b16 %v5357
      %v5681 = vunpack.c.l.b16 %v5358
      %v5682 = vunpack.c.h.b16 %v5358
      %v5683 = vunpack.c.l.b16 %v5359
      %v5684 = vunpack.c.h.b16 %v5359
      %v5685 = vunpack.c.l.b16 %v5360
      %v5686 = vunpack.c.h.b16 %v5360
      %v5687 = vunpack.c.l.b16 %v5361
      %v5688 = vunpack.c.h.b16 %v5361
      %v5689 = vunpack.c.l.b16 %v5362
      %v5690 = vunpack.c.h.b16 %v5362
      %v5691 = vunpack.c.l.b16 %v5363
      %v5692 = vunpack.c.h.b16 %v5363
      %v5693 = vunpack.c.l.b16 %v5364
      %v5694 = vunpack.c.h.b16 %v5364
      %v5695 = vunpack.c.l.b16 %v5365
      %v5696 = vunpack.c.h.b16 %v5365
      %v5697 = vunpack.c.l.b16 %v5366
      %v5698 = vunpack.c.h.b16 %v5366
      %v5699 = vunpack.c.l.b16 %v5367
      %v5700 = vunpack.c.h.b16 %v5367
      %v5701 = vunpack.c.l.b16 %v5368
      %v5702 = vunpack.c.h.b16 %v5368
      %v5703 = vunpack.c.l.b16 %v5369
      %v5704 = vunpack.c.h.b16 %v5369
      %v5705 = vunpack.c.l.b16 %v5370
      %v5706 = vunpack.c.h.b16 %v5370
      %v5707 = vunpack.c.l.b16 %v5371
      %v5708 = vunpack.c.h.b16 %v5371
      %v5709 = vunpack.c.l.b16 %v5372
      %v5710 = vunpack.c.h.b16 %v5372
      %v5711 = vunpack.c.l.b16 %v5373
      %v5712 = vunpack.c.h.b16 %v5373
      %v5713 = vunpack.c.l.b16 %v5374
      %v5714 = vunpack.c.h.b16 %v5374
      %v5715 = vunpack.c.l.b16 %v5375
      %v5716 = vunpack.c.h.b16 %v5375
      %v5717 = vunpack.c.l.b16 %v5376
      %v5718 = vunpack.c.h.b16 %v5376
      %v5719 = vunpack.c.l.b16 %v5377
      %v5720 = vunpack.c.h.b16 %v5377
      %v5721 = vunpack.c.l.b16 %v5378
      %v5722 = vunpack.c.h.b16 %v5378
      %v5723 = vunpack.c.l.b16 %v5379
      %v5724 = vunpack.c.h.b16 %v5379
      %v5725 = vunpack.c.l.b16 %v5380
      %v5726 = vunpack.c.h.b16 %v5380
      %v5727 = vunpack.c.l.b16 %v5381
      %v5728 = vunpack.c.h.b16 %v5381
      %v5729 = vunpack.c.l.b16 %v5382
      %v5730 = vunpack.c.h.b16 %v5382
      %v5731 = vunpack.c.l.b16 %v5383
      %v5732 = vunpack.c.h.b16 %v5383
      %v5733 = vunpack.c.l.b16 %v5384
      %v5734 = vunpack.c.h.b16 %v5384
      %v5735 = vunpack.c.l.b16 %v5385
      %v5736 = vunpack.c.h.b16 %v5385
      %v5737 = vunpack.c.l.b16 %v5386
      %v5738 = vunpack.c.h.b16 %v5386
      %v5739 = vunpack.c.l.b16 %v5387
      %v5740 = vunpack.c.h.b16 %v5387
      %v5741 = vunpack.c.l.b16 %v5388
      %v5742 = vunpack.c.h.b16 %v5388
      %v5743 = vunpack.c.l.b16 %v5389
      %v5744 = vunpack.c.h.b16 %v5389
      %v5745 = vunpack.c.l.b16 %v5390
      %v5746 = vunpack.c.h.b16 %v5390
      %v5747 = vunpack.c.l.b16 %v5391
      %v5748 = vunpack.c.h.b16 %v5391
      %v5749 = vunpack.c.l.b16 %v5392
      %v5750 = vunpack.c.h.b16 %v5392
      %v5751 = vunpack.c.l.b16 %v5393
      %v5752 = vunpack.c.h.b16 %v5393
      %v5753 = vunpack.c.l.b16 %v5394
      %v5754 = vunpack.c.h.b16 %v5394
      %v5755 = vunpack.c.l.b16 %v5395
      %v5756 = vunpack.c.h.b16 %v5395
      %v5757 = vunpack.c.l.b16 %v5396
      %v5758 = vunpack.c.h.b16 %v5396
      %v5759 = vunpack.c.l.b16 %v5397
      %v5760 = vunpack.c.h.b16 %v5397
      %v5761 = vunpack.c.l.b16 %v5398
      %v5762 = vunpack.c.h.b16 %v5398
      %v5763 = vunpack.c.l.b16 %v5399
      %v5764 = vunpack.c.h.b16 %v5399
      %v5765 = vunpack.c.l.b16 %v5400
      %v5766 = vunpack.c.h.b16 %v5400
      %v5767 = vunpack.c.l.b16 %v5401
      %v5768 = vunpack.c.h.b16 %v5401
      %v5769 = vunpack.c.l.b16 %v5402
      %v5770 = vunpack.c.h.b16 %v5402
      %v5771 = vunpack.c.l.b16 %v5403
      %v5772 = vunpack.c.h.b16 %v5403
      %v5773 = vunpack.c.l.b16 %v5404
      %v5774 = vunpack.c.h.b16 %v5404
      %v5775 = vunpack.c.l.b16 %v5405
      %v5776 = vunpack.c.h.b16 %v5405
      %v5777 = vunpack.c.l.b16 %v5406
      %v5778 = vunpack.c.h.b16 %v5406
      %v5779 = vunpack.c.l.b16 %v5407
      %v5780 = vunpack.c.h.b16 %v5407
      %v5781 = vunpack.c.l.b16 %v5408
      %v5782 = vunpack.c.h.b16 %v5408
      %v5783 = vunpack.c.l.b16 %v5409
      %v5784 = vunpack.c.h.b16 %v5409
      %v5785 = vunpack.c.l.b16 %v5410
      %v5786 = vunpack.c.h.b16 %v5410
      %v5787 = vunpack.c.l.b16 %v5411
      %v5788 = vunpack.c.h.b16 %v5411
      %v5789 = vunpack.c.l.b16 %v5412
      %v5790 = vunpack.c.h.b16 %v5412
      %v5791 = vunpack.c.l.b16 %v5413
      %v5792 = vunpack.c.h.b16 %v5413
      %v5793 = vunpack.c.l.b16 %v5414
      %v5794 = vunpack.c.h.b16 %v5414
      %v5795 = vunpack.c.l.b16 %v5415
      %v5796 = vunpack.c.h.b16 %v5415
      %v5797 = vunpack.c.l.b16 %v5416
      %v5798 = vunpack.c.h.b16 %v5416
      %v5799 = vunpack.c.l.b16 %v5417
      %v5800 = vunpack.c.h.b16 %v5417
      %v5801 = vunpack.c.l.b16 %v5418
      %v5802 = vunpack.c.h.b16 %v5418
      %v5803 = vunpack.c.l.b16 %v5419
      %v5804 = vunpack.c.h.b16 %v5419
      %v5805 = vunpack.c.l.b16 %v5420
      %v5806 = vunpack.c.h.b16 %v5420
      %v5807 = vunpack.c.l.b16 %v5421
      %v5808 = vunpack.c.h.b16 %v5421
      %v5809 = vunpack.c.l.b16 %v5422
      %v5810 = vunpack.c.h.b16 %v5422
      %v5811 = vunpack.c.l.b16 %v5423
      %v5812 = vunpack.c.h.b16 %v5423
      %v5813 = vunpack.c.l.b16 %v5424
      %v5814 = vunpack.c.h.b16 %v5424
      %v5815 = vunpack.c.l.b16 %v5425
      %v5816 = vunpack.c.h.b16 %v5425
      %v5817 = vunpack.c.l.b16 %v5426
      %v5818 = vunpack.c.h.b16 %v5426
      %v5819 = vunpack.c.l.b16 %v5427
      %v5820 = vunpack.c.h.b16 %v5427
      %v5821 = vunpack.c.l.b16 %v5428
      %v5822 = vunpack.c.h.b16 %v5428
      %v5823 = vunpack.c.l.b16 %v5429
      %v5824 = vunpack.c.h.b16 %v5429
      %v5825 = vunpack.c.l.b16 %v5430
      %v5826 = vunpack.c.h.b16 %v5430
      %v5827 = vunpack.c.l.b16 %v5431
      %v5828 = vunpack.c.h.b16 %v5431
      %v5829 = vunpack.c.l.b16 %v5432
      %v5830 = vunpack.c.h.b16 %v5432
      %v5831 = vunpack.c.l.b16 %v5433
      %v5832 = vunpack.c.h.b16 %v5433
      %v5833 = vunpack.c.l.b16 %v5434
      %v5834 = vunpack.c.h.b16 %v5434
      %v5835 = vunpack.c.l.b16 %v5435
      %v5836 = vunpack.c.h.b16 %v5435
      %v5837 = vunpack.c.l.b16 %v5436
      %v5838 = vunpack.c.h.b16 %v5436
      %v5839 = vunpack.c.l.b16 %v5437
      %v5840 = vunpack.c.h.b16 %v5437
      %v5841 = vunpack.c.l.b16 %v5438
      %v5842 = vunpack.c.h.b16 %v5438
      %v5843 = vunpack.c.l.b16 %v5439
      %v5844 = vunpack.c.h.b16 %v5439
      %v5845 = vunpack.c.l.b16 %v5440
      %v5846 = vunpack.c.h.b16 %v5440
      %v5847 = vunpack.c.l.b16 %v5441
      %v5848 = vunpack.c.h.b16 %v5441
      %v5849 = vunpack.c.l.b16 %v5442
      %v5850 = vunpack.c.h.b16 %v5442
      %v5851 = vpack.c.b16 %v5599, %v5595
      %v5852 = vpack.c.b16 %v5600, %v5596
      %v5853 = vpack.c.b16 %v5601, %v5597
      %v5854 = vpack.c.b16 %v5602, %v5598
      %v5855 = vpack.c.b16 %v5607, %v5603
      %v5856 = vpack.c.b16 %v5608, %v5604
      %v5857 = vpack.c.b16 %v5609, %v5605
      %v5858 = vpack.c.b16 %v5610, %v5606
      %v5859 = vpack.c.b16 %v5615, %v5611
      %v5860 = vpack.c.b16 %v5616, %v5612
      %v5861 = vpack.c.b16 %v5617, %v5613
      %v5862 = vpack.c.b16 %v5618, %v5614
      %v5863 = vpack.c.b16 %v5623, %v5619
      %v5864 = vpack.c.b16 %v5624, %v5620
      %v5865 = vpack.c.b16 %v5625, %v5621
      %v5866 = vpack.c.b16 %v5626, %v5622
      %v5867 = vpack.c.b16 %v5631, %v5627
      %v5868 = vpack.c.b16 %v5632, %v5628
      %v5869 = vpack.c.b16 %v5633, %v5629
      %v5870 = vpack.c.b16 %v5634, %v5630
      %v5871 = vpack.c.b16 %v5639, %v5635
      %v5872 = vpack.c.b16 %v5640, %v5636
      %v5873 = vpack.c.b16 %v5641, %v5637
      %v5874 = vpack.c.b16 %v5642, %v5638
      %v5875 = vpack.c.b16 %v5647, %v5643
      %v5876 = vpack.c.b16 %v5648, %v5644
      %v5877 = vpack.c.b16 %v5649, %v5645
      %v5878 = vpack.c.b16 %v5650, %v5646
      %v5879 = vpack.c.b16 %v5655, %v5651
      %v5880 = vpack.c.b16 %v5656, %v5652
      %v5881 = vpack.c.b16 %v5657, %v5653
      %v5882 = vpack.c.b16 %v5658, %v5654
      %v5883 = vpack.c.b16 %v5663, %v5659
      %v5884 = vpack.c.b16 %v5664, %v5660
      %v5885 = vpack.c.b16 %v5665, %v5661
      %v5886 = vpack.c.b16 %v5666, %v5662
      %v5887 = vpack.c.b16 %v5671, %v5667
      %v5888 = vpack.c.b16 %v5672, %v5668
      %v5889 = vpack.c.b16 %v5673, %v5669
      %v5890 = vpack.c.b16 %v5674, %v5670
      %v5891 = vpack.c.b16 %v5679, %v5675
      %v5892 = vpack.c.b16 %v5680, %v5676
      %v5893 = vpack.c.b16 %v5681, %v5677
      %v5894 = vpack.c.b16 %v5682, %v5678
      %v5895 = vpack.c.b16 %v5687, %v5683
      %v5896 = vpack.c.b16 %v5688, %v5684
      %v5897 = vpack.c.b16 %v5689, %v5685
      %v5898 = vpack.c.b16 %v5690, %v5686
      %v5899 = vpack.c.b16 %v5695, %v5691
      %v5900 = vpack.c.b16 %v5696, %v5692
      %v5901 = vpack.c.b16 %v5697, %v5693
      %v5902 = vpack.c.b16 %v5698, %v5694
      %v5903 = vpack.c.b16 %v5703, %v5699
      %v5904 = vpack.c.b16 %v5704, %v5700
      %v5905 = vpack.c.b16 %v5705, %v5701
      %v5906 = vpack.c.b16 %v5706, %v5702
      %v5907 = vpack.c.b16 %v5711, %v5707
      %v5908 = vpack.c.b16 %v5712, %v5708
      %v5909 = vpack.c.b16 %v5713, %v5709
      %v5910 = vpack.c.b16 %v5714, %v5710
      %v5911 = vpack.c.b16 %v5719, %v5715
      %v5912 = vpack.c.b16 %v5720, %v5716
      %v5913 = vpack.c.b16 %v5721, %v5717
      %v5914 = vpack.c.b16 %v5722, %v5718
      %v5915 = vpack.c.b16 %v5727, %v5723
      %v5916 = vpack.c.b16 %v5728, %v5724
      %v5917 = vpack.c.b16 %v5729, %v5725
      %v5918 = vpack.c.b16 %v5730, %v5726
      %v5919 = vpack.c.b16 %v5735, %v5731
      %v5920 = vpack.c.b16 %v5736, %v5732
      %v5921 = vpack.c.b16 %v5737, %v5733
      %v5922 = vpack.c.b16 %v5738, %v5734
      %v5923 = vpack.c.b16 %v5743, %v5739
      %v5924 = vpack.c.b16 %v5744, %v5740
      %v5925 = vpack.c.b16 %v5745, %v5741
      %v5926 = vpack.c.b16 %v5746, %v5742
      %v5927 = vpack.c.b16 %v5751, %v5747
      %v5928 = vpack.c.b16 %v5752, %v5748
      %v5929 = vpack.c.b16 %v5753, %v5749
      %v5930 = vpack.c.b16 %v5754, %v5750
      %v5931 = vpack.c.b16 %v5759, %v5755
      %v5932 = vpack.c.b16 %v5760, %v5756
      %v5933 = vpack.c.b16 %v5761, %v5757
      %v5934 = vpack.c.b16 %v5762, %v5758
      %v5935 = vpack.c.b16 %v5767, %v5763
      %v5936 = vpack.c.b16 %v5768, %v5764
      %v5937 = vpack.c.b16 %v5769, %v5765
      %v5938 = vpack.c.b16 %v5770, %v5766
      %v5939 = vpack.c.b16 %v5775, %v5771
      %v5940 = vpack.c.b16 %v5776, %v5772
      %v5941 = vpack.c.b16 %v5777, %v5773
      %v5942 = vpack.c.b16 %v5778, %v5774
      %v5943 = vpack.c.b16 %v5783, %v5779
      %v5944 = vpack.c.b16 %v5784, %v5780
      %v5945 = vpack.c.b16 %v5785, %v5781
      %v5946 = vpack.c.b16 %v5786, %v5782
      %v5947 = vpack.c.b16 %v5791, %v5787
      %v5948 = vpack.c.b16 %v5792, %v5788
      %v5949 = vpack.c.b16 %v5793, %v5789
      %v5950 = vpack.c.b16 %v5794, %v5790
      %v5951 = vpack.c.b16 %v5799, %v5795
      %v5952 = vpack.c.b16 %v5800, %v5796
      %v5953 = vpack.c.b16 %v5801, %v5797
      %v5954 = vpack.c.b16 %v5802, %v5798
      %v5955 = vpack.c.b16 %v5807, %v5803
      %v5956 = vpack.c.b16 %v5808, %v5804
      %v5957 = vpack.c.b16 %v5809, %v5805
      %v5958 = vpack.c.b16 %v5810, %v5806
      %v5959 = vpack.c.b16 %v5815, %v5811
      %v5960 = vpack.c.b16 %v5816, %v5812
      %v5961 = vpack.c.b16 %v5817, %v5813
      %v5962 = vpack.c.b16 %v5818, %v5814
      %v5963 = vpack.c.b16 %v5823, %v5819
      %v5964 = vpack.c.b16 %v5824, %v5820
      %v5965 = vpack.c.b16 %v5825, %v5821
      %v5966 = vpack.c.b16 %v5826, %v5822
      %v5967 = vpack.c.b16 %v5831, %v5827
      %v5968 = vpack.c.b16 %v5832, %v5828
      %v5969 = vpack.c.b16 %v5833, %v5829
      %v5970 = vpack.c.b16 %v5834, %v5830
      %v5971 = vpack.c.b16 %v5839, %v5835
      %v5972 = vpack.c.b16 %v5840, %v5836
      %v5973 = vpack.c.b16 %v5841, %v5837
      %v5974 = vpack.c.b16 %v5842, %v5838
      %v5975 = vpack.c.b16 %v5847, %v5843
      %v5976 = vpack.c.b16 %v5848, %v5844
      %v5977 = vpack.c.b16 %v5849, %v5845
      %v5978 = vpack.c.b16 %v5850, %v5846
      %6107 = vmatprep.subr.bf16.mxu0 %v5880
      %6108 = vmatpush1.bf16.msra.mxu0 %v5879
      %6109 = vmatprep.subr.bf16.mxu0 %v5876
      %6110 = vmatpush1.bf16.msra.mxu0 %v5875
      %6111 = vmatprep.subr.bf16.mxu0 %v5872
      %6112 = vmatpush1.bf16.msra.mxu0 %v5871
      %6113 = vmatprep.subr.bf16.mxu0 %v5868
      %6114 = vmatpush1.bf16.msra.mxu0 %v5867
      %6115 = vmatprep.subr.bf16.mxu0 %v5864
      %6116 = vmatpush1.bf16.msra.mxu0 %v5863
      %6117 = vmatprep.subr.bf16.mxu0 %v5860
      %6118 = vmatpush1.bf16.msra.mxu0 %v5859
      %6119 = vmatprep.subr.bf16.mxu0 %v5856
      %6120 = vmatpush1.bf16.msra.mxu0 %v5855
      %6121 = vmatprep.subr.bf16.mxu0 %v5852
      %6122 = vmatpush1.bf16.msra.mxu0 %v5851
      %6123 = vmatprep.subr.bf16.mxu0 %v5912
      %6124 = vmatpush2.bf16.msra.mxu0 %v5911
      %6125 = vmatprep.subr.bf16.mxu0 %v5908
      %6126 = vmatpush2.bf16.msra.mxu0 %v5907
      %6127 = vmatprep.subr.bf16.mxu0 %v5904
      %6128 = vmatpush2.bf16.msra.mxu0 %v5903
      %6129 = vmatprep.subr.bf16.mxu0 %v5900
      %6130 = vmatpush2.bf16.msra.mxu0 %v5899
      %6131 = vmatprep.subr.bf16.mxu0 %v5896
      %6132 = vmatpush2.bf16.msra.mxu0 %v5895
      %6133 = vmatprep.subr.bf16.mxu0 %v5892
      %6134 = vmatpush2.bf16.msra.mxu0 %v5891
      %6135 = vmatprep.subr.bf16.mxu0 %v5888
      %6136 = vmatpush2.bf16.msra.mxu0 %v5887
      %6137 = vmatprep.subr.bf16.mxu0 %v5884
      %6138 = vmatpush2.bf16.msra.mxu0 %v5883
      %6139 = vmatprep.mubr.bf16.mxu0 %v5456
      %6140 = vmatmul.mubr.bf16.gmra.mxu0 %v5453
      %v6141 = vpop.f32.mrf.mxu0
      %v6142 = vadd.f32 0.0, %v6141
      %v6143 = vpop.f32.mrf.mxu0
      %v6144 = vadd.f32 0.0, %v6143
      %v6145 = vpop.f32.mrf.mxu0
      %v6146 = vadd.f32 0.0, %v6145
      %v6147 = vpop.f32.mrf.mxu0
      %v6148 = vadd.f32 0.0, %v6147
      %6149 = vdwg.mxu0
      %6150 = vmatprep.subr.bf16.mxu0 %v5944
      %6151 = vmatpush1.bf16.msra.mxu0 %v5943
      %6152 = vmatprep.subr.bf16.mxu0 %v5940
      %6153 = vmatpush1.bf16.msra.mxu0 %v5939
      %6154 = vmatprep.subr.bf16.mxu0 %v5936
      %6155 = vmatpush1.bf16.msra.mxu0 %v5935
      %6156 = vmatprep.subr.bf16.mxu0 %v5932
      %6157 = vmatpush1.bf16.msra.mxu0 %v5931
      %6158 = vmatprep.subr.bf16.mxu0 %v5928
      %6159 = vmatpush1.bf16.msra.mxu0 %v5927
      %6160 = vmatprep.subr.bf16.mxu0 %v5924
      %6161 = vmatpush1.bf16.msra.mxu0 %v5923
      %6162 = vmatprep.subr.bf16.mxu0 %v5920
      %6163 = vmatpush1.bf16.msra.mxu0 %v5919
      %6164 = vmatprep.subr.bf16.mxu0 %v5916
      %6165 = vmatpush1.bf16.msra.mxu0 %v5915
      %6166 = vmatprep.subr.bf16.mxu0 %v5976
      %6167 = vmatpush2.bf16.msra.mxu0 %v5975
      %6168 = vmatprep.subr.bf16.mxu0 %v5972
      %6169 = vmatpush2.bf16.msra.mxu0 %v5971
      %6170 = vmatprep.subr.bf16.mxu0 %v5968
      %6171 = vmatpush2.bf16.msra.mxu0 %v5967
      %6172 = vmatprep.subr.bf16.mxu0 %v5964
      %6173 = vmatpush2.bf16.msra.mxu0 %v5963
      %6174 = vmatprep.subr.bf16.mxu0 %v5960
      %6175 = vmatpush2.bf16.msra.mxu0 %v5959
      %6176 = vmatprep.subr.bf16.mxu0 %v5956
      %6177 = vmatpush2.bf16.msra.mxu0 %v5955
      %6178 = vmatprep.subr.bf16.mxu0 %v5952
      %6179 = vmatpush2.bf16.msra.mxu0 %v5951
      %6180 = vmatprep.subr.bf16.mxu0 %v5948
      %6181 = vmatpush2.bf16.msra.mxu0 %v5947
      %6182 = vmatprep.mubr.bf16.mxu0 %v5462
      %6183 = vmatmul.mubr.bf16.gmra.mxu0 %v5459
      %v6184 = vpop.f32.mrf.mxu0
      %v6185 = vadd.f32 %v6142, %v6184
      %v6186 = vpop.f32.mrf.mxu0
      %v6187 = vadd.f32 %v6144, %v6186
      %v6188 = vpop.f32.mrf.mxu0
      %v6189 = vadd.f32 %v6146, %v6188
      %v6190 = vpop.f32.mrf.mxu0
      %v6191 = vadd.f32 %v6148, %v6190
      %6192 = vdwg.mxu0
      %6193 = vmatprep.subr.bf16.mxu0 %v5882
      %6194 = vmatpush1.bf16.msra.mxu0 %v5881
      %6195 = vmatprep.subr.bf16.mxu0 %v5878
      %6196 = vmatpush1.bf16.msra.mxu0 %v5877
      %6197 = vmatprep.subr.bf16.mxu0 %v5874
      %6198 = vmatpush1.bf16.msra.mxu0 %v5873
      %6199 = vmatprep.subr.bf16.mxu0 %v5870
      %6200 = vmatpush1.bf16.msra.mxu0 %v5869
      %6201 = vmatprep.subr.bf16.mxu0 %v5866
      %6202 = vmatpush1.bf16.msra.mxu0 %v5865
      %6203 = vmatprep.subr.bf16.mxu0 %v5862
      %6204 = vmatpush1.bf16.msra.mxu0 %v5861
      %6205 = vmatprep.subr.bf16.mxu0 %v5858
      %6206 = vmatpush1.bf16.msra.mxu0 %v5857
      %6207 = vmatprep.subr.bf16.mxu0 %v5854
      %6208 = vmatpush1.bf16.msra.mxu0 %v5853
      %6209 = vmatprep.subr.bf16.mxu0 %v5914
      %6210 = vmatpush2.bf16.msra.mxu0 %v5913
      %6211 = vmatprep.subr.bf16.mxu0 %v5910
      %6212 = vmatpush2.bf16.msra.mxu0 %v5909
      %6213 = vmatprep.subr.bf16.mxu0 %v5906
      %6214 = vmatpush2.bf16.msra.mxu0 %v5905
      %6215 = vmatprep.subr.bf16.mxu0 %v5902
      %6216 = vmatpush2.bf16.msra.mxu0 %v5901
      %6217 = vmatprep.subr.bf16.mxu0 %v5898
      %6218 = vmatpush2.bf16.msra.mxu0 %v5897
      %6219 = vmatprep.subr.bf16.mxu0 %v5894
      %6220 = vmatpush2.bf16.msra.mxu0 %v5893
      %6221 = vmatprep.subr.bf16.mxu0 %v5890
      %6222 = vmatpush2.bf16.msra.mxu0 %v5889
      %6223 = vmatprep.subr.bf16.mxu0 %v5886
      %6224 = vmatpush2.bf16.msra.mxu0 %v5885
      %6225 = vmatprep.mubr.bf16.mxu0 %v5456
      %6226 = vmatmul.mubr.bf16.gmra.mxu0 %v5453
      %v6227 = vpop.f32.mrf.mxu0
      %v6228 = vadd.f32 0.0, %v6227
      %v6229 = vpop.f32.mrf.mxu0
      %v6230 = vadd.f32 0.0, %v6229
      %v6231 = vpop.f32.mrf.mxu0
      %v6232 = vadd.f32 0.0, %v6231
      %v6233 = vpop.f32.mrf.mxu0
      %v6234 = vadd.f32 0.0, %v6233
      %6235 = vdwg.mxu0
      %6236 = vmatprep.subr.bf16.mxu0 %v5946
      %6237 = vmatpush1.bf16.msra.mxu0 %v5945
      %6238 = vmatprep.subr.bf16.mxu0 %v5942
      %6239 = vmatpush1.bf16.msra.mxu0 %v5941
      %6240 = vmatprep.subr.bf16.mxu0 %v5938
      %6241 = vmatpush1.bf16.msra.mxu0 %v5937
      %6242 = vmatprep.subr.bf16.mxu0 %v5934
      %6243 = vmatpush1.bf16.msra.mxu0 %v5933
      %6244 = vmatprep.subr.bf16.mxu0 %v5930
      %6245 = vmatpush1.bf16.msra.mxu0 %v5929
      %6246 = vmatprep.subr.bf16.mxu0 %v5926
      %6247 = vmatpush1.bf16.msra.mxu0 %v5925
      %6248 = vmatprep.subr.bf16.mxu0 %v5922
      %6249 = vmatpush1.bf16.msra.mxu0 %v5921
      %6250 = vmatprep.subr.bf16.mxu0 %v5918
      %6251 = vmatpush1.bf16.msra.mxu0 %v5917
      %6252 = vmatprep.subr.bf16.mxu0 %v5978
      %6253 = vmatpush2.bf16.msra.mxu0 %v5977
      %6254 = vmatprep.subr.bf16.mxu0 %v5974
      %6255 = vmatpush2.bf16.msra.mxu0 %v5973
      %6256 = vmatprep.subr.bf16.mxu0 %v5970
      %6257 = vmatpush2.bf16.msra.mxu0 %v5969
      %6258 = vmatprep.subr.bf16.mxu0 %v5966
      %6259 = vmatpush2.bf16.msra.mxu0 %v5965
      %6260 = vmatprep.subr.bf16.mxu0 %v5962
      %6261 = vmatpush2.bf16.msra.mxu0 %v5961
      %6262 = vmatprep.subr.bf16.mxu0 %v5958
      %6263 = vmatpush2.bf16.msra.mxu0 %v5957
      %6264 = vmatprep.subr.bf16.mxu0 %v5954
      %6265 = vmatpush2.bf16.msra.mxu0 %v5953
      %6266 = vmatprep.subr.bf16.mxu0 %v5950
      %6267 = vmatpush2.bf16.msra.mxu0 %v5949
      %6268 = vmatprep.mubr.bf16.mxu0 %v5462
      %6269 = vmatmul.mubr.bf16.gmra.mxu0 %v5459
      %v6270 = vpop.f32.mrf.mxu0
      %v6271 = vadd.f32 %v6228, %v6270
      %v6272 = vpop.f32.mrf.mxu0
      %v6273 = vadd.f32 %v6230, %v6272
      %v6274 = vpop.f32.mrf.mxu0
      %v6275 = vadd.f32 %v6232, %v6274
      %v6276 = vpop.f32.mrf.mxu0
      %v6277 = vadd.f32 %v6234, %v6276
      %6278 = vdwg.mxu0
      %v6279 = vadd.f32 %v5204, %v6185
      %v6280 = vadd.f32 %v5206, %v6187
      %v6281 = vadd.f32 %v5290, %v6271
      %v6282 = vadd.f32 %v5292, %v6273
      %v6283 = vadd.f32 %v5208, %v6189
      %v6284 = vadd.f32 %v5210, %v6191
      %v6285 = vadd.f32 %v5294, %v6275
      %v6286 = vadd.f32 %v5296, %v6277
      %v6287 = vld [vmem:[%s4] sm:$0xf]
      %v6289 = vlaneseq
      %v6290 = vshrl.u32 %v6289, 7
      %v6291 = vsub.s32 0, %v6290
      %v6292 = vrot.slane %v6287, %v6291
      %v6293 = vlaneseq
      %v6294 = vshrl.u32 %v6293, 7
      %v6295 = vsub.s32 1, %v6294
      %v6296 = vrot.slane %v6287, %v6295
      %v6297 = vlaneseq
      %v6298 = vshrl.u32 %v6297, 7
      %v6299 = vsub.s32 2, %v6298
      %v6300 = vrot.slane %v6287, %v6299
      %v6301 = vlaneseq
      %v6302 = vshrl.u32 %v6301, 7
      %v6303 = vsub.s32 3, %v6302
      %v6304 = vrot.slane %v6287, %v6303
      %v6309 = vadd.f32 %v6279, %v6292
      %v6310 = vadd.f32 %v6280, %v6296
      %v6311 = vadd.f32 %v6281, %v6300
      %v6312 = vadd.f32 %v6282, %v6304
      %v6313 = vadd.f32 %v6283, %v6292
      %v6314 = vadd.f32 %v6284, %v6296
      %v6315 = vadd.f32 %v6285, %v6300
      %v6316 = vadd.f32 %v6286, %v6304
      %v6317 = vadd.f32 %v6309, %v234
      %v6318 = vadd.f32 %v6310, %v235
      %v6319 = vadd.f32 %v6311, %v236
      %v6320 = vadd.f32 %v6312, %v237
      %v6321 = vadd.f32 %v6313, %v238
      %v6322 = vadd.f32 %v6314, %v239
      %v6323 = vadd.f32 %v6315, %v240
      %v6324 = vadd.f32 %v6316, %v241
      %6325 = vst [vmem:[%s224] sm:$0xff] %v6317
      %6326 = vst [vmem:[%s224 + $0x8] sm:$0xff] %v6318
      %6327 = vst [vmem:[%s224 + $0x10] sm:$0xff] %v6319
      %6328 = vst [vmem:[%s224 + $0x18] sm:$0xff] %v6320
      %6329 = vst [vmem:[%s224 + $0x20] sm:$0xff] %v6321
      %6330 = vst [vmem:[%s224 + $0x28] sm:$0xff] %v6322
      %6331 = vst [vmem:[%s224 + $0x30] sm:$0xff] %v6323
      %6332 = vst [vmem:[%s224 + $0x38] sm:$0xff] %v6324
      %p6333 = scmp.lt.s32.totalorder %s16, 1
      %s6334 = scalar_select %p6333, %s16, 1
      %s6335 = smul.addr %s6334, 8
      %s6336 = smul.addr %s6335, 8
      %s6337 = scalar_lea.vmem %s5, %s6336
      // Predicated region
      $region41: #{res_forward.1} parent=39 // pred_check
        %p6338 = pneg %p144
      $region42: #{res_forward.1} parent=39 // pred_check_branch
        %6340 = sbr.rel (%p6338) target = $region44
      $region43: #{res_forward.1} parent=39 // pred_region
        _
      $region44: #{res_forward.1} parent=39 // pred_fallthru
        _
    $region40: #{res_forward.1} parent=5 // pred_fallthru
      _
    %p6341 = scmp.le.s32.totalorder 2, %s11
    // Predicated region
    $region45: #{res_forward.1} parent=5 // pred_check
      %p6342 = pneg %p6341
    $region46: #{res_forward.1} parent=5 // pred_check_branch
      %6344 = sbr.rel (%p6342) target = $region48
    $region47: #{res_forward.1} parent=5 // pred_region
      %s6345 = ssub.s32 %s11, 2
      // Predicated region
      $region49: #{res_forward.1} parent=47 // pred_check
        %p6346 = pneg %p150
      $region50: #{res_forward.1} parent=47 // pred_check_branch
        %6348 = sbr.rel (%p6346) target = $region52
      $region51: #{res_forward.1} parent=47 // pred_region
        %p6349 = scmp.lt.s32.totalorder %s17, 1
        %s6350 = scalar_select %p6349, %s17, 1
        %s6351 = smul.addr %s6350, 8
        %s6352 = smul.addr %s6351, 8
        %s6353 = scalar_lea.vmem %s5, %s6352
      $region52: #{res_forward.1} parent=47 // pred_fallthru
        _
    $region48: #{res_forward.1} parent=5 // pred_fallthru
      _
  $region6: #{res_forward.1} parent=0 // loop_footer
    %s15 = sadd.s32 1, %s11
  $region7: #{res_forward.1} parent=0 // loop_footer_branch
    %10 = sbr.rel target = $region3
  $region8: #{res_forward.1} parent=0 // loop_exit
    _

</llo_original>
